<compile_context>
chip_gen: v6e
topology: v6e:2x2x1
jax: 0.10.0
libtpu: 0.0.40
codegen_flags: <defaults>
</compile_context>

<pallas_src>
import jax
import jax.numpy as jnp
import numpy as np
from jax.experimental import pallas as pl
from jax.experimental.pallas import tpu as pltpu


def rnn_kernel(x_ref, w_ih_ref, w_hh_ref, b_lstm_ref,
               w1_ref, b1_ref, w2_hbm_ref, b2_ref, w3_ref, b3_ref,
               out_ref, w2_vmem, w2_sem):
    # Kick off the big fc_2 weight copy immediately; overlap with the recurrence + fc_1.
    w2_copy = pltpu.make_async_copy(w2_hbm_ref, w2_vmem, w2_sem)
    w2_copy.start()

    H = w_hh_ref.shape[0]          # hidden_size (w_hh_t is (H, 4H))
    S = x_ref.shape[0]             # sequence length (x_ref is (S, D))

    w_hh_t = w_hh_ref[...]         # (H, 4H)

    # Hoisted input projection: one (S, D) @ (D, 4H) matmul, bias folded in.
    xw = (jnp.dot(x_ref[...], w_ih_ref[...], preferred_element_type=jnp.float32)
          + b_lstm_ref[...])                                              # (S, 4H)

    h = jnp.zeros((1, H), jnp.float32)
    c = jnp.zeros((1, H), jnp.float32)

    # Static trip count -> fully unrolled; only the h @ w_hh chain is serial.
    for t in range(S):
        gates = xw[t:t + 1, :] + jnp.dot(h, w_hh_t,
                                         preferred_element_type=jnp.float32)  # (1, 4H)
        sg = jax.nn.sigmoid(gates)        # full-width EUP op
        tg = jnp.tanh(gates)              # full-width EUP op
        i_g = sg[:, 0:H]
        f_g = sg[:, H:2 * H]
        g_g = tg[:, 2 * H:3 * H]
        o_g = sg[:, 3 * H:4 * H]
        c = f_g * c + i_g * g_g
        h = o_g * jnp.tanh(c)

    # o = relu(o[0][-1].unsqueeze(0)) ; fc_1 -> relu
    o = jnp.maximum(h, 0.0)                                               # (1, H)
    f1 = jnp.maximum(
        jnp.dot(o, w1_ref[...], preferred_element_type=jnp.float32) + b1_ref[...], 0.0)

    # Only now do we need w2.
    w2_copy.wait()
    f2 = jnp.maximum(
        jnp.dot(f1.astype(w2_vmem.dtype), w2_vmem[...],
                preferred_element_type=jnp.float32) + b2_ref[...], 0.0)
    f3 = jnp.dot(f2, w3_ref[...], preferred_element_type=jnp.float32) + b3_ref[...]
    out_ref[...] = jax.nn.sigmoid(f3)                                     # (1, 11)


def rnn_forward(x, params):
    (w_ih_t, w_hh_t, b_lstm, w1, b1, w2_bf16, b2, w3, b3) = params
    n_out = w3.shape[1]
    x0 = x[0]  # only batch element 0 feeds o[0][-1]; avoid DMAing unused rows
    vmem = pl.BlockSpec(memory_space=pltpu.MemorySpace.VMEM)
    hbm = pl.BlockSpec(memory_space=pl.ANY)
    return pl.pallas_call(
        rnn_kernel,
        out_shape=jax.ShapeDtypeStruct((1, n_out), jnp.float32),
        in_specs=[vmem, vmem, vmem, vmem, vmem, vmem, hbm, vmem, vmem, vmem],
        out_specs=vmem,
        scratch_shapes=[pltpu.VMEM(w2_bf16.shape, w2_bf16.dtype),
                        pltpu.SemaphoreType.DMA(())],
    )(x0, w_ih_t, w_hh_t, b_lstm, w1, b1, w2_bf16, b2, w3, b3)


def rnn_reference(x, params):
    """Pure-JAX reference implementing the same (eval-mode) forward."""
    w_ih_t, w_hh_t, b, w1, b1, w2, b2, w3, b3 = params
    w2 = w2.astype(jnp.float32)     # same bf16-quantized weight, f32 math
    H = w_hh_t.shape[0]
    x0 = x[0]
    h = jnp.zeros((1, H), jnp.float32)
    c = jnp.zeros((1, H), jnp.float32)
    for t in range(x0.shape[0]):
        gates = x0[t:t + 1] @ w_ih_t + h @ w_hh_t + b
        i_g = jax.nn.sigmoid(gates[:, :H])
        f_g = jax.nn.sigmoid(gates[:, H:2 * H])
        g_g = jnp.tanh(gates[:, 2 * H:3 * H])
        o_g = jax.nn.sigmoid(gates[:, 3 * H:])
        c = f_g * c + i_g * g_g
        h = o_g * jnp.tanh(c)
    o = jnp.maximum(h, 0.0)
    f1 = jnp.maximum(o @ w1 + b1, 0.0)
    f2 = jnp.maximum(f1 @ w2 + b2, 0.0)
    return jax.nn.sigmoid(f2 @ w3 + b3)


def init_params(key, input_size, hidden_size):
    """Deterministic init mirroring PyTorch default shapes (LSTM + 3 Linear)."""
    H = hidden_size
    fc = [H, 2 ** 9, 2 ** 10, 11]
    keys = jax.random.split(key, 10)

    def u(k, shape, bound):
        return jax.random.uniform(k, shape, jnp.float32, -bound, bound)

    kl = 1.0 / (H ** 0.5)
    w_ih = u(keys[0], (4 * H, input_size), kl)   # PyTorch weight_ih_l0 layout
    w_hh = u(keys[1], (4 * H, H), kl)            # PyTorch weight_hh_l0 layout
    b_ih = u(keys[2], (4 * H,), kl)
    b_hh = u(keys[3], (4 * H,), kl)

    k1 = 1.0 / (fc[0] ** 0.5)
    k2 = 1.0 / (fc[1] ** 0.5)
    k3 = 1.0 / (fc[2] ** 0.5)
    w1 = u(keys[4], (fc[1], fc[0]), k1); b1 = u(keys[5], (fc[1],), k1)
    w2 = u(keys[6], (fc[2], fc[1]), k2); b2 = u(keys[7], (fc[2],), k2)
    w3 = u(keys[8], (fc[3], fc[2]), k3); b3 = u(keys[9], (fc[3],), k3)

    # Transpose to activation @ weight layout; fold the two LSTM biases.
    # w2 (the dominant weight by bytes) is stored in bf16 and DMA'd async in the kernel.
    return (w_ih.T, w_hh.T, (b_ih + b_hh)[None, :],
            w1.T, b1[None, :],
            w2.T.astype(jnp.bfloat16), b2[None, :],
            w3.T, b3[None, :])


if __name__ == "__main__":
    input_size = 32
    hidden_size = 32
    batch = 2
    seq = 8

    key = jax.random.PRNGKey(0)
    kx, kp = jax.random.split(key)
    x = jax.random.normal(kx, (batch, seq, input_size), jnp.float32)
    params = init_params(kp, input_size, hidden_size)

    out = rnn_forward(x, params)
    out = jax.block_until_ready(out)

    ref = jax.block_until_ready(rnn_reference(x, params))
    assert out.shape == (1, 11), out.shape
    np.testing.assert_allclose(np.asarray(out), np.asarray(ref), atol=2e-2, rtol=2e-2)

    print("KERNEL_OK")
</pallas_src>

<mosaic_0001>
module attributes {stable_mosaic.version = 11 : i64} {
  func.func @rnn_kernel(%arg0: memref<8x32xf32, #tpu.memory_space<vmem>>, %arg1: memref<32x128xf32, #tpu.memory_space<vmem>>, %arg2: memref<32x128xf32, #tpu.memory_space<vmem>>, %arg3: memref<1x128xf32, #tpu.memory_space<vmem>>, %arg4: memref<32x512xf32, #tpu.memory_space<vmem>>, %arg5: memref<1x512xf32, #tpu.memory_space<vmem>>, %arg6: memref<512x1024xbf16, #tpu.memory_space<any>>, %arg7: memref<1x1024xf32, #tpu.memory_space<vmem>>, %arg8: memref<1024x11xf32, #tpu.memory_space<vmem>>, %arg9: memref<1x11xf32, #tpu.memory_space<vmem>>, %arg10: memref<1x11xf32, #tpu.memory_space<vmem>>, %arg11: memref<512x1024xbf16, #tpu.memory_space<vmem>>, %arg12: memref<!tpu.dma_semaphore, #tpu.memory_space<semaphore_mem>>) attributes {dimension_semantics = [], scalar_prefetch = 0 : i64, scratch_operands = 2 : i64, tpu.core_type = #tpu.core_type<tc>} {
    tpu.enqueue_dma source(%arg6 : memref<512x1024xbf16, #tpu.memory_space<any>>) target(%arg11 : memref<512x1024xbf16, #tpu.memory_space<vmem>>) target_semaphore(%arg12 : memref<!tpu.dma_semaphore, #tpu.memory_space<semaphore_mem>>)
    %c0 = arith.constant 0 : index
    %c0_0 = arith.constant 0 : index
    %0 = vector.load %arg2[%c0, %c0_0] : memref<32x128xf32, #tpu.memory_space<vmem>>, vector<32x128xf32>
    %c0_1 = arith.constant 0 : index
    %c0_2 = arith.constant 0 : index
    %1 = vector.load %arg0[%c0_1, %c0_2] : memref<8x32xf32, #tpu.memory_space<vmem>>, vector<8x32xf32>
    %c0_3 = arith.constant 0 : index
    %c0_4 = arith.constant 0 : index
    %2 = vector.load %arg1[%c0_3, %c0_4] : memref<32x128xf32, #tpu.memory_space<vmem>>, vector<32x128xf32>
    %cst = arith.constant dense<0.000000e+00> : vector<8x128xf32>
    %3 = tpu.matmul %1, %2, %cst {dimension_numbers = #tpu.dot_dimension_numbers<[1], [0], [0], [1], [0, 0, 1, 1], [], []>} : vector<8x32xf32>, vector<32x128xf32>, vector<8x128xf32> -> vector<8x128xf32>
    %c0_5 = arith.constant 0 : index
    %c0_6 = arith.constant 0 : index
    %4 = vector.load %arg3[%c0_5, %c0_6] : memref<1x128xf32, #tpu.memory_space<vmem>>, vector<1x128xf32>
    %5 = vector.broadcast %4 : vector<1x128xf32> to vector<8x128xf32>
    %6 = arith.addf %3, %5 : vector<8x128xf32>
    %cst_7 = arith.constant 0.000000e+00 : f32
    %7 = vector.broadcast %cst_7 : f32 to vector<1x32xf32>
    %cst_8 = arith.constant 0.000000e+00 : f32
    %8 = vector.broadcast %cst_8 : f32 to vector<1x32xf32>
    %9 = vector.extract_strided_slice %6 {offsets = [0, 0], sizes = [1, 128], strides = [1, 1]} : vector<8x128xf32> to vector<1x128xf32>
    %cst_9 = arith.constant dense<0.000000e+00> : vector<1x128xf32>
    %10 = tpu.matmul %7, %0, %cst_9 {dimension_numbers = #tpu.dot_dimension_numbers<[1], [0], [0], [1], [0, 0, 1, 1], [], []>} : vector<1x32xf32>, vector<32x128xf32>, vector<1x128xf32> -> vector<1x128xf32>
    %11 = arith.addf %9, %10 : vector<1x128xf32>
    %12 = arith.negf %11 : vector<1x128xf32>
    %13 = math.exp %12 : vector<1x128xf32>
    %cst_10 = arith.constant 1.000000e+00 : f32
    %14 = vector.broadcast %cst_10 : f32 to vector<1x128xf32>
    %15 = arith.addf %14, %13 : vector<1x128xf32>
    %16 = arith.divf %14, %15 : vector<1x128xf32>
    %17 = math.tanh %11 : vector<1x128xf32>
    %18 = vector.extract_strided_slice %16 {offsets = [0, 0], sizes = [1, 32], strides = [1, 1]} : vector<1x128xf32> to vector<1x32xf32>
    %19 = vector.extract_strided_slice %16 {offsets = [0, 32], sizes = [1, 32], strides = [1, 1]} : vector<1x128xf32> to vector<1x32xf32>
    %20 = vector.extract_strided_slice %17 {offsets = [0, 64], sizes = [1, 32], strides = [1, 1]} : vector<1x128xf32> to vector<1x32xf32>
    %21 = vector.extract_strided_slice %16 {offsets = [0, 96], sizes = [1, 32], strides = [1, 1]} : vector<1x128xf32> to vector<1x32xf32>
    %22 = arith.mulf %19, %8 : vector<1x32xf32>
    %23 = arith.mulf %18, %20 : vector<1x32xf32>
    %24 = arith.addf %22, %23 : vector<1x32xf32>
    %25 = math.tanh %24 : vector<1x32xf32>
    %26 = arith.mulf %21, %25 : vector<1x32xf32>
    %27 = vector.extract_strided_slice %6 {offsets = [1, 0], sizes = [1, 128], strides = [1, 1]} : vector<8x128xf32> to vector<1x128xf32>
    %cst_11 = arith.constant dense<0.000000e+00> : vector<1x128xf32>
    %28 = tpu.matmul %26, %0, %cst_11 {dimension_numbers = #tpu.dot_dimension_numbers<[1], [0], [0], [1], [0, 0, 1, 1], [], []>} : vector<1x32xf32>, vector<32x128xf32>, vector<1x128xf32> -> vector<1x128xf32>
    %29 = arith.addf %27, %28 : vector<1x128xf32>
    %30 = arith.negf %29 : vector<1x128xf32>
    %31 = math.exp %30 : vector<1x128xf32>
    %cst_12 = arith.constant 1.000000e+00 : f32
    %32 = vector.broadcast %cst_12 : f32 to vector<1x128xf32>
    %33 = arith.addf %32, %31 : vector<1x128xf32>
    %34 = arith.divf %32, %33 : vector<1x128xf32>
    %35 = math.tanh %29 : vector<1x128xf32>
    %36 = vector.extract_strided_slice %34 {offsets = [0, 0], sizes = [1, 32], strides = [1, 1]} : vector<1x128xf32> to vector<1x32xf32>
    %37 = vector.extract_strided_slice %34 {offsets = [0, 32], sizes = [1, 32], strides = [1, 1]} : vector<1x128xf32> to vector<1x32xf32>
    %38 = vector.extract_strided_slice %35 {offsets = [0, 64], sizes = [1, 32], strides = [1, 1]} : vector<1x128xf32> to vector<1x32xf32>
    %39 = vector.extract_strided_slice %34 {offsets = [0, 96], sizes = [1, 32], strides = [1, 1]} : vector<1x128xf32> to vector<1x32xf32>
    %40 = arith.mulf %37, %24 : vector<1x32xf32>
    %41 = arith.mulf %36, %38 : vector<1x32xf32>
    %42 = arith.addf %40, %41 : vector<1x32xf32>
    %43 = math.tanh %42 : vector<1x32xf32>
    %44 = arith.mulf %39, %43 : vector<1x32xf32>
    %45 = vector.extract_strided_slice %6 {offsets = [2, 0], sizes = [1, 128], strides = [1, 1]} : vector<8x128xf32> to vector<1x128xf32>
    %cst_13 = arith.constant dense<0.000000e+00> : vector<1x128xf32>
    %46 = tpu.matmul %44, %0, %cst_13 {dimension_numbers = #tpu.dot_dimension_numbers<[1], [0], [0], [1], [0, 0, 1, 1], [], []>} : vector<1x32xf32>, vector<32x128xf32>, vector<1x128xf32> -> vector<1x128xf32>
    %47 = arith.addf %45, %46 : vector<1x128xf32>
    %48 = arith.negf %47 : vector<1x128xf32>
    %49 = math.exp %48 : vector<1x128xf32>
    %cst_14 = arith.constant 1.000000e+00 : f32
    %50 = vector.broadcast %cst_14 : f32 to vector<1x128xf32>
    %51 = arith.addf %50, %49 : vector<1x128xf32>
    %52 = arith.divf %50, %51 : vector<1x128xf32>
    %53 = math.tanh %47 : vector<1x128xf32>
    %54 = vector.extract_strided_slice %52 {offsets = [0, 0], sizes = [1, 32], strides = [1, 1]} : vector<1x128xf32> to vector<1x32xf32>
    %55 = vector.extract_strided_slice %52 {offsets = [0, 32], sizes = [1, 32], strides = [1, 1]} : vector<1x128xf32> to vector<1x32xf32>
    %56 = vector.extract_strided_slice %53 {offsets = [0, 64], sizes = [1, 32], strides = [1, 1]} : vector<1x128xf32> to vector<1x32xf32>
    %57 = vector.extract_strided_slice %52 {offsets = [0, 96], sizes = [1, 32], strides = [1, 1]} : vector<1x128xf32> to vector<1x32xf32>
    %58 = arith.mulf %55, %42 : vector<1x32xf32>
    %59 = arith.mulf %54, %56 : vector<1x32xf32>
    %60 = arith.addf %58, %59 : vector<1x32xf32>
    %61 = math.tanh %60 : vector<1x32xf32>
    %62 = arith.mulf %57, %61 : vector<1x32xf32>
    %63 = vector.extract_strided_slice %6 {offsets = [3, 0], sizes = [1, 128], strides = [1, 1]} : vector<8x128xf32> to vector<1x128xf32>
    %cst_15 = arith.constant dense<0.000000e+00> : vector<1x128xf32>
    %64 = tpu.matmul %62, %0, %cst_15 {dimension_numbers = #tpu.dot_dimension_numbers<[1], [0], [0], [1], [0, 0, 1, 1], [], []>} : vector<1x32xf32>, vector<32x128xf32>, vector<1x128xf32> -> vector<1x128xf32>
    %65 = arith.addf %63, %64 : vector<1x128xf32>
    %66 = arith.negf %65 : vector<1x128xf32>
    %67 = math.exp %66 : vector<1x128xf32>
    %cst_16 = arith.constant 1.000000e+00 : f32
    %68 = vector.broadcast %cst_16 : f32 to vector<1x128xf32>
    %69 = arith.addf %68, %67 : vector<1x128xf32>
    %70 = arith.divf %68, %69 : vector<1x128xf32>
    %71 = math.tanh %65 : vector<1x128xf32>
    %72 = vector.extract_strided_slice %70 {offsets = [0, 0], sizes = [1, 32], strides = [1, 1]} : vector<1x128xf32> to vector<1x32xf32>
    %73 = vector.extract_strided_slice %70 {offsets = [0, 32], sizes = [1, 32], strides = [1, 1]} : vector<1x128xf32> to vector<1x32xf32>
    %74 = vector.extract_strided_slice %71 {offsets = [0, 64], sizes = [1, 32], strides = [1, 1]} : vector<1x128xf32> to vector<1x32xf32>
    %75 = vector.extract_strided_slice %70 {offsets = [0, 96], sizes = [1, 32], strides = [1, 1]} : vector<1x128xf32> to vector<1x32xf32>
    %76 = arith.mulf %73, %60 : vector<1x32xf32>
    %77 = arith.mulf %72, %74 : vector<1x32xf32>
    %78 = arith.addf %76, %77 : vector<1x32xf32>
    %79 = math.tanh %78 : vector<1x32xf32>
    %80 = arith.mulf %75, %79 : vector<1x32xf32>
    %81 = vector.extract_strided_slice %6 {offsets = [4, 0], sizes = [1, 128], strides = [1, 1]} : vector<8x128xf32> to vector<1x128xf32>
    %cst_17 = arith.constant dense<0.000000e+00> : vector<1x128xf32>
    %82 = tpu.matmul %80, %0, %cst_17 {dimension_numbers = #tpu.dot_dimension_numbers<[1], [0], [0], [1], [0, 0, 1, 1], [], []>} : vector<1x32xf32>, vector<32x128xf32>, vector<1x128xf32> -> vector<1x128xf32>
    %83 = arith.addf %81, %82 : vector<1x128xf32>
    %84 = arith.negf %83 : vector<1x128xf32>
    %85 = math.exp %84 : vector<1x128xf32>
    %cst_18 = arith.constant 1.000000e+00 : f32
    %86 = vector.broadcast %cst_18 : f32 to vector<1x128xf32>
    %87 = arith.addf %86, %85 : vector<1x128xf32>
    %88 = arith.divf %86, %87 : vector<1x128xf32>
    %89 = math.tanh %83 : vector<1x128xf32>
    %90 = vector.extract_strided_slice %88 {offsets = [0, 0], sizes = [1, 32], strides = [1, 1]} : vector<1x128xf32> to vector<1x32xf32>
    %91 = vector.extract_strided_slice %88 {offsets = [0, 32], sizes = [1, 32], strides = [1, 1]} : vector<1x128xf32> to vector<1x32xf32>
    %92 = vector.extract_strided_slice %89 {offsets = [0, 64], sizes = [1, 32], strides = [1, 1]} : vector<1x128xf32> to vector<1x32xf32>
    %93 = vector.extract_strided_slice %88 {offsets = [0, 96], sizes = [1, 32], strides = [1, 1]} : vector<1x128xf32> to vector<1x32xf32>
    %94 = arith.mulf %91, %78 : vector<1x32xf32>
    %95 = arith.mulf %90, %92 : vector<1x32xf32>
    %96 = arith.addf %94, %95 : vector<1x32xf32>
    %97 = math.tanh %96 : vector<1x32xf32>
    %98 = arith.mulf %93, %97 : vector<1x32xf32>
    %99 = vector.extract_strided_slice %6 {offsets = [5, 0], sizes = [1, 128], strides = [1, 1]} : vector<8x128xf32> to vector<1x128xf32>
    %cst_19 = arith.constant dense<0.000000e+00> : vector<1x128xf32>
    %100 = tpu.matmul %98, %0, %cst_19 {dimension_numbers = #tpu.dot_dimension_numbers<[1], [0], [0], [1], [0, 0, 1, 1], [], []>} : vector<1x32xf32>, vector<32x128xf32>, vector<1x128xf32> -> vector<1x128xf32>
    %101 = arith.addf %99, %100 : vector<1x128xf32>
    %102 = arith.negf %101 : vector<1x128xf32>
    %103 = math.exp %102 : vector<1x128xf32>
    %cst_20 = arith.constant 1.000000e+00 : f32
    %104 = vector.broadcast %cst_20 : f32 to vector<1x128xf32>
    %105 = arith.addf %104, %103 : vector<1x128xf32>
    %106 = arith.divf %104, %105 : vector<1x128xf32>
    %107 = math.tanh %101 : vector<1x128xf32>
    %108 = vector.extract_strided_slice %106 {offsets = [0, 0], sizes = [1, 32], strides = [1, 1]} : vector<1x128xf32> to vector<1x32xf32>
    %109 = vector.extract_strided_slice %106 {offsets = [0, 32], sizes = [1, 32], strides = [1, 1]} : vector<1x128xf32> to vector<1x32xf32>
    %110 = vector.extract_strided_slice %107 {offsets = [0, 64], sizes = [1, 32], strides = [1, 1]} : vector<1x128xf32> to vector<1x32xf32>
    %111 = vector.extract_strided_slice %106 {offsets = [0, 96], sizes = [1, 32], strides = [1, 1]} : vector<1x128xf32> to vector<1x32xf32>
    %112 = arith.mulf %109, %96 : vector<1x32xf32>
    %113 = arith.mulf %108, %110 : vector<1x32xf32>
    %114 = arith.addf %112, %113 : vector<1x32xf32>
    %115 = math.tanh %114 : vector<1x32xf32>
    %116 = arith.mulf %111, %115 : vector<1x32xf32>
    %117 = vector.extract_strided_slice %6 {offsets = [6, 0], sizes = [1, 128], strides = [1, 1]} : vector<8x128xf32> to vector<1x128xf32>
    %cst_21 = arith.constant dense<0.000000e+00> : vector<1x128xf32>
    %118 = tpu.matmul %116, %0, %cst_21 {dimension_numbers = #tpu.dot_dimension_numbers<[1], [0], [0], [1], [0, 0, 1, 1], [], []>} : vector<1x32xf32>, vector<32x128xf32>, vector<1x128xf32> -> vector<1x128xf32>
    %119 = arith.addf %117, %118 : vector<1x128xf32>
    %120 = arith.negf %119 : vector<1x128xf32>
    %121 = math.exp %120 : vector<1x128xf32>
    %cst_22 = arith.constant 1.000000e+00 : f32
    %122 = vector.broadcast %cst_22 : f32 to vector<1x128xf32>
    %123 = arith.addf %122, %121 : vector<1x128xf32>
    %124 = arith.divf %122, %123 : vector<1x128xf32>
    %125 = math.tanh %119 : vector<1x128xf32>
    %126 = vector.extract_strided_slice %124 {offsets = [0, 0], sizes = [1, 32], strides = [1, 1]} : vector<1x128xf32> to vector<1x32xf32>
    %127 = vector.extract_strided_slice %124 {offsets = [0, 32], sizes = [1, 32], strides = [1, 1]} : vector<1x128xf32> to vector<1x32xf32>
    %128 = vector.extract_strided_slice %125 {offsets = [0, 64], sizes = [1, 32], strides = [1, 1]} : vector<1x128xf32> to vector<1x32xf32>
    %129 = vector.extract_strided_slice %124 {offsets = [0, 96], sizes = [1, 32], strides = [1, 1]} : vector<1x128xf32> to vector<1x32xf32>
    %130 = arith.mulf %127, %114 : vector<1x32xf32>
    %131 = arith.mulf %126, %128 : vector<1x32xf32>
    %132 = arith.addf %130, %131 : vector<1x32xf32>
    %133 = math.tanh %132 : vector<1x32xf32>
    %134 = arith.mulf %129, %133 : vector<1x32xf32>
    %135 = vector.extract_strided_slice %6 {offsets = [7, 0], sizes = [1, 128], strides = [1, 1]} : vector<8x128xf32> to vector<1x128xf32>
    %cst_23 = arith.constant dense<0.000000e+00> : vector<1x128xf32>
    %136 = tpu.matmul %134, %0, %cst_23 {dimension_numbers = #tpu.dot_dimension_numbers<[1], [0], [0], [1], [0, 0, 1, 1], [], []>} : vector<1x32xf32>, vector<32x128xf32>, vector<1x128xf32> -> vector<1x128xf32>
    %137 = arith.addf %135, %136 : vector<1x128xf32>
    %138 = arith.negf %137 : vector<1x128xf32>
    %139 = math.exp %138 : vector<1x128xf32>
    %cst_24 = arith.constant 1.000000e+00 : f32
    %140 = vector.broadcast %cst_24 : f32 to vector<1x128xf32>
    %141 = arith.addf %140, %139 : vector<1x128xf32>
    %142 = arith.divf %140, %141 : vector<1x128xf32>
    %143 = math.tanh %137 : vector<1x128xf32>
    %144 = vector.extract_strided_slice %142 {offsets = [0, 0], sizes = [1, 32], strides = [1, 1]} : vector<1x128xf32> to vector<1x32xf32>
    %145 = vector.extract_strided_slice %142 {offsets = [0, 32], sizes = [1, 32], strides = [1, 1]} : vector<1x128xf32> to vector<1x32xf32>
    %146 = vector.extract_strided_slice %143 {offsets = [0, 64], sizes = [1, 32], strides = [1, 1]} : vector<1x128xf32> to vector<1x32xf32>
    %147 = vector.extract_strided_slice %142 {offsets = [0, 96], sizes = [1, 32], strides = [1, 1]} : vector<1x128xf32> to vector<1x32xf32>
    %148 = arith.mulf %145, %132 : vector<1x32xf32>
    %149 = arith.mulf %144, %146 : vector<1x32xf32>
    %150 = arith.addf %148, %149 : vector<1x32xf32>
    %151 = math.tanh %150 : vector<1x32xf32>
    %152 = arith.mulf %147, %151 : vector<1x32xf32>
    %cst_25 = arith.constant 0.000000e+00 : f32
    %153 = vector.broadcast %cst_25 : f32 to vector<1x32xf32>
    %154 = arith.maximumf %152, %153 : vector<1x32xf32>
    %c0_26 = arith.constant 0 : index
    %c0_27 = arith.constant 0 : index
    %155 = vector.load %arg4[%c0_26, %c0_27] : memref<32x512xf32, #tpu.memory_space<vmem>>, vector<32x512xf32>
    %cst_28 = arith.constant dense<0.000000e+00> : vector<1x512xf32>
    %156 = tpu.matmul %154, %155, %cst_28 {dimension_numbers = #tpu.dot_dimension_numbers<[1], [0], [0], [1], [0, 0, 1, 1], [], []>} : vector<1x32xf32>, vector<32x512xf32>, vector<1x512xf32> -> vector<1x512xf32>
    %c0_29 = arith.constant 0 : index
    %c0_30 = arith.constant 0 : index
    %157 = vector.load %arg5[%c0_29, %c0_30] : memref<1x512xf32, #tpu.memory_space<vmem>>, vector<1x512xf32>
    %158 = arith.addf %156, %157 : vector<1x512xf32>
    %cst_31 = arith.constant 0.000000e+00 : f32
    %159 = vector.broadcast %cst_31 : f32 to vector<1x512xf32>
    %160 = arith.maximumf %158, %159 : vector<1x512xf32>
    tpu.wait_dma2 semaphore(%arg12 : memref<!tpu.dma_semaphore, #tpu.memory_space<semaphore_mem>>) src(%arg6 : memref<512x1024xbf16, #tpu.memory_space<any>>) dst(%arg11 : memref<512x1024xbf16, #tpu.memory_space<vmem>>)
    %161 = arith.truncf %160 : vector<1x512xf32> to vector<1x512xbf16>
    %c0_32 = arith.constant 0 : index
    %c0_33 = arith.constant 0 : index
    %162 = vector.load %arg11[%c0_32, %c0_33] : memref<512x1024xbf16, #tpu.memory_space<vmem>>, vector<512x1024xbf16>
    %cst_34 = arith.constant dense<0.000000e+00> : vector<1x1024xf32>
    %163 = tpu.matmul %161, %162, %cst_34 {dimension_numbers = #tpu.dot_dimension_numbers<[1], [0], [0], [1], [0, 0, 1, 1], [], []>} : vector<1x512xbf16>, vector<512x1024xbf16>, vector<1x1024xf32> -> vector<1x1024xf32>
    %c0_35 = arith.constant 0 : index
    %c0_36 = arith.constant 0 : index
    %164 = vector.load %arg7[%c0_35, %c0_36] : memref<1x1024xf32, #tpu.memory_space<vmem>>, vector<1x1024xf32>
    %165 = arith.addf %163, %164 : vector<1x1024xf32>
    %cst_37 = arith.constant 0.000000e+00 : f32
    %166 = vector.broadcast %cst_37 : f32 to vector<1x1024xf32>
    %167 = arith.maximumf %165, %166 : vector<1x1024xf32>
    %c0_38 = arith.constant 0 : index
    %c0_39 = arith.constant 0 : index
    %168 = vector.load %arg8[%c0_38, %c0_39] : memref<1024x11xf32, #tpu.memory_space<vmem>>, vector<1024x11xf32>
    %cst_40 = arith.constant dense<0.000000e+00> : vector<1x11xf32>
    %169 = tpu.matmul %167, %168, %cst_40 {dimension_numbers = #tpu.dot_dimension_numbers<[1], [0], [0], [1], [0, 0, 1, 1], [], []>} : vector<1x1024xf32>, vector<1024x11xf32>, vector<1x11xf32> -> vector<1x11xf32>
    %c0_41 = arith.constant 0 : index
    %c0_42 = arith.constant 0 : index
    %170 = vector.load %arg9[%c0_41, %c0_42] : memref<1x11xf32, #tpu.memory_space<vmem>>, vector<1x11xf32>
    %171 = arith.addf %169, %170 : vector<1x11xf32>
    %172 = arith.negf %171 : vector<1x11xf32>
    %173 = math.exp %172 : vector<1x11xf32>
    %cst_43 = arith.constant 1.000000e+00 : f32
    %174 = vector.broadcast %cst_43 : f32 to vector<1x11xf32>
    %175 = arith.addf %174, %173 : vector<1x11xf32>
    %176 = arith.divf %174, %175 : vector<1x11xf32>
    %c0_44 = arith.constant 0 : index
    %c0_45 = arith.constant 0 : index
    %177 = vector.load %arg10[%c0_44, %c0_45] : memref<1x11xf32, #tpu.memory_space<vmem>>, vector<1x11xf32>
    tpu.vector_store %arg10[%c0_44, %c0_45], %176 {strides = array<i32>} : memref<1x11xf32, #tpu.memory_space<vmem>>, vector<1x11xf32>,
    return
  }
}

</mosaic_0001>

<llo_original>
// kernel: tpu_custom_call.1
$region0: #{tpu_custom_call.1}
  #allocation0 [shape = 'u32[]', space=smem, size = 0x4, offset = 0x4, fixed_abs, tag = 'smem constant byte address 0x4 - core index']
  #allocation1 [shape = 'u32[144,128]{1,0:T(1,128)}', space=vmem, size = 0x12000, scoped, tag = 'internal scratch']
  #allocation2 [shape = 'bf16[512,1024]{1,0:T(8,128)(2,1)}', space=vmem, size = 0x100000, scoped, tag = 'scratch operand']
  #allocation3 [shape = 's32[1]{0}', space=sflag, size = 0x4, scoped, tag = 'scratch operand']
  #allocation6 [shape = 's32[]', space=sflag, size = 0x4, offset = 0, fixed_abs, tag = 'sflag constant byte address 0x0 - dummy sync flag']
  #allocation7 [shape = 's32[]', space=sflag, size = 0x4, offset = 0, fixed_abs, tag = 'sflag constant byte address 0x0 - dummy sync flag']
  #allocation8 [shape = 'u32[]', space=smem, size = 0x4, offset = 0x44, fixed_abs, tag = 'smem constant byte address 0x44 - assertion arg 0']
  #allocation9 [shape = 'u32[]', space=smem, size = 0x4, offset = 0x48, fixed_abs, tag = 'smem constant byte address 0x48 - assertion arg 1']
  %s0 = inlined_call_operand.vmem [shape: f32[8,32], index: 0, kind: input, shape index: {}]
  %s1 = inlined_call_operand.vmem [shape: f32[32,128], index: 1, kind: input, shape index: {}]
  %s2 = inlined_call_operand.vmem [shape: f32[32,128], index: 2, kind: input, shape index: {}]
  %s3 = inlined_call_operand.vmem [shape: f32[1,128], index: 3, kind: input, shape index: {}]
  %s4 = inlined_call_operand.vmem [shape: f32[32,512], index: 4, kind: input, shape index: {}]
  %s5 = inlined_call_operand.vmem [shape: f32[1,512], index: 5, kind: input, shape index: {}]
  %s6 = inlined_call_operand.hbm [shape: bf16[512,1024], index: 6, kind: input, shape index: {}]
  %s7 = inlined_call_operand.vmem [shape: f32[1,1024], index: 7, kind: input, shape index: {}]
  %s8 = inlined_call_operand.vmem [shape: f32[1024,11], index: 8, kind: input, shape index: {}]
  %s9 = inlined_call_operand.vmem [shape: f32[1,11], index: 9, kind: input, shape index: {}]
  %s10 = inlined_call_operand.hbm [shape: f32[1,11], index: 10, kind: output, shape index: {}]
  %s11 = sld [smem:[#allocation0]]
  $region50: #{tpu_custom_call.1} parent=0
    _
  %s13 = ssub.s32 1, %s11
  %s14 = scalar_select 0, %s13, %s11
  $region1: #{tpu_custom_call.1} parent=0
    #allocation4 [shape = 'u8[512]{0}', space=vmem, size = 0x400, scoped, tag = 'output window, operand 0, single buffered']
    #allocation5 [shape = 's32[1]{0}', space=sflag, size = 0x4, scoped, tag = 'scoped memory for tpu_custom_call.1']
    %15 = vsyncpa [#allocation5], 0
    // Predicated region
    $region2: #{tpu_custom_call.1} parent=1 // pred_check
      _
    $region3: #{tpu_custom_call.1} parent=1 // pred_check_branch
      %17 = sbr.rel (0) target = $region5
    $region4: #{tpu_custom_call.1} parent=1 // pred_region
      _
    $region5: #{tpu_custom_call.1} parent=1 // pred_fallthru
      _
    // Predicated region
    $region6: #{tpu_custom_call.1} parent=1 // pred_check
      _
    $region7: #{tpu_custom_call.1} parent=1 // pred_check_branch
      %19 = sbr.rel (0) target = $region9
    $region8: #{tpu_custom_call.1} parent=1 // pred_region
      _
    $region9: #{tpu_custom_call.1} parent=1 // pred_fallthru
      _
    // Predicated region
    $region10: #{tpu_custom_call.1} parent=1 // pred_check
      _
    $region11: #{tpu_custom_call.1} parent=1 // pred_check_branch
      %21 = sbr.rel (0) target = $region13
    $region12: #{tpu_custom_call.1} parent=1 // pred_region
      _
    $region13: #{tpu_custom_call.1} parent=1 // pred_fallthru
      _
    // Predicated region
    $region14: #{tpu_custom_call.1} parent=1 // pred_check
      _
    $region15: #{tpu_custom_call.1} parent=1 // pred_check_branch
      %23 = sbr.rel (0) target = $region17
    $region16: #{tpu_custom_call.1} parent=1 // pred_region
      _
    $region17: #{tpu_custom_call.1} parent=1 // pred_fallthru
      _
    // Predicated region
    $region18: #{tpu_custom_call.1} parent=1 // pred_check
      _
    $region19: #{tpu_custom_call.1} parent=1 // pred_check_branch
      %25 = sbr.rel (0) target = $region21
    $region20: #{tpu_custom_call.1} parent=1 // pred_region
      _
    $region21: #{tpu_custom_call.1} parent=1 // pred_fallthru
      _
    // Predicated region
    $region22: #{tpu_custom_call.1} parent=1 // pred_check
      _
    $region23: #{tpu_custom_call.1} parent=1 // pred_check_branch
      %27 = sbr.rel (0) target = $region25
    $region24: #{tpu_custom_call.1} parent=1 // pred_region
      _
    $region25: #{tpu_custom_call.1} parent=1 // pred_fallthru
      _
    // Predicated region
    $region26: #{tpu_custom_call.1} parent=1 // pred_check
      _
    $region27: #{tpu_custom_call.1} parent=1 // pred_check_branch
      %29 = sbr.rel (0) target = $region29
    $region28: #{tpu_custom_call.1} parent=1 // pred_region
      _
    $region29: #{tpu_custom_call.1} parent=1 // pred_fallthru
      _
    // Predicated region
    $region30: #{tpu_custom_call.1} parent=1 // pred_check
      _
    $region31: #{tpu_custom_call.1} parent=1 // pred_check_branch
      %31 = sbr.rel (0) target = $region33
    $region32: #{tpu_custom_call.1} parent=1 // pred_region
      _
    $region33: #{tpu_custom_call.1} parent=1 // pred_fallthru
      _
    // Predicated region
    $region34: #{tpu_custom_call.1} parent=1 // pred_check
      _
    $region35: #{tpu_custom_call.1} parent=1 // pred_check_branch
      %33 = sbr.rel (0) target = $region37
    $region36: #{tpu_custom_call.1} parent=1 // pred_region
      _
    $region37: #{tpu_custom_call.1} parent=1 // pred_fallthru
      _
    // Predicated region
    $region38: #{tpu_custom_call.1} parent=1 // pred_check
      _
    $region39: #{tpu_custom_call.1} parent=1 // pred_check_branch
      %35 = sbr.rel target = $region41
    $region40: #{tpu_custom_call.1} parent=1 // pred_region
      %36 = sst [smem:[#allocation8]] [#allocation7]
      %37 = sst [smem:[#allocation9]] [#allocation6]
    $region41: #{tpu_custom_call.1} parent=1 // pred_fallthru
      _
    %39 = shalt.err (0)
    %s41 = sshll.u32 [#allocation2], 4
    %s42 = int_to_ptr.vmem [resolvable:$true] %s41
    %44 = dma.hbm_to_vmem [thread:$0]  %s6, 32768, %s42, [#allocation3]
    %v45 = vld [vmem:[%s2] sm:$0xff]
    %v46 = vld [vmem:[%s2 + $0x8] sm:$0xff]
    %v47 = vld [vmem:[%s2 + $0x10] sm:$0xff]
    %v48 = vld [vmem:[%s2 + $0x18] sm:$0xff]
    %v49 = vld [vmem:[%s0] sm:$0xff]
    %v50 = vld [vmem:[%s1] sm:$0xff]
    %v51 = vld [vmem:[%s1 + $0x8] sm:$0xff]
    %v52 = vld [vmem:[%s1 + $0x10] sm:$0xff]
    %v53 = vld [vmem:[%s1 + $0x18] sm:$0xff]
    %v54 = vld [vmem:[%s3] sm:$0x1]
    %v56 = vlaneseq
    %v57 = vshrl.u32 %v56, 7
    %v58 = vsub.s32 0, %v57
    %v59 = vrot.slane %v54, %v58
    %vm61 = vcmask 261120
    %v63 = vsel %vm61, %v49, 0
    %65 = vmatprep.subr.mxu0 0.0
    %66 = vmatpush1.msra.mxu0 0.0
    %67 = vmatprep.subr.mxu0 0.0
    %68 = vmatpush1.msra.mxu0 0.0
    %69 = vmatprep.subr.mxu0 0.0
    %70 = vmatpush1.msra.mxu0 0.0
    %71 = vmatprep.subr.mxu0 0.0
    %72 = vmatpush1.msra.mxu0 0.0
    %73 = vmatprep.subr.mxu0 0.0
    %74 = vmatpush1.msra.mxu0 0.0
    %75 = vmatprep.subr.mxu0 0.0
    %76 = vmatpush1.msra.mxu0 0.0
    %77 = vmatprep.subr.mxu0 0.0
    %78 = vmatpush1.msra.mxu0 0.0
    %79 = vmatprep.subr.mxu0 0.0
    %80 = vmatpush1.msra.mxu0 0.0
    %81 = vmatprep.subr.mxu0 0.0
    %82 = vmatpush1.msra.mxu0 0.0
    %83 = vmatprep.subr.mxu0 0.0
    %84 = vmatpush1.msra.mxu0 0.0
    %85 = vmatprep.subr.mxu0 0.0
    %86 = vmatpush1.msra.mxu0 0.0
    %87 = vmatprep.subr.mxu0 0.0
    %88 = vmatpush1.msra.mxu0 0.0
    %89 = vmatprep.subr.mxu0 0.0
    %90 = vmatpush1.msra.mxu0 %v53
    %91 = vmatprep.subr.mxu0 0.0
    %92 = vmatpush1.msra.mxu0 %v52
    %93 = vmatprep.subr.mxu0 0.0
    %94 = vmatpush1.msra.mxu0 %v51
    %95 = vmatprep.subr.mxu0 0.0
    %96 = vmatpush1.msra.mxu0 %v50
    %97 = vmatprep.subr.mxu0 0.0
    %98 = vmatpush2.msra.mxu0 0.0
    %99 = vmatprep.subr.mxu0 0.0
    %100 = vmatpush2.msra.mxu0 0.0
    %101 = vmatprep.subr.mxu0 0.0
    %102 = vmatpush2.msra.mxu0 0.0
    %103 = vmatprep.subr.mxu0 0.0
    %104 = vmatpush2.msra.mxu0 0.0
    %105 = vmatprep.subr.mxu0 0.0
    %106 = vmatpush2.msra.mxu0 0.0
    %107 = vmatprep.subr.mxu0 0.0
    %108 = vmatpush2.msra.mxu0 0.0
    %109 = vmatprep.subr.mxu0 0.0
    %110 = vmatpush2.msra.mxu0 0.0
    %111 = vmatprep.subr.mxu0 0.0
    %112 = vmatpush2.msra.mxu0 0.0
    %113 = vmatprep.subr.mxu0 0.0
    %114 = vmatpush2.msra.mxu0 0.0
    %115 = vmatprep.subr.mxu0 0.0
    %116 = vmatpush2.msra.mxu0 0.0
    %117 = vmatprep.subr.mxu0 0.0
    %118 = vmatpush2.msra.mxu0 0.0
    %119 = vmatprep.subr.mxu0 0.0
    %120 = vmatpush2.msra.mxu0 0.0
    %121 = vmatprep.subr.mxu0 0.0
    %122 = vmatpush2.msra.mxu0 0.0
    %123 = vmatprep.subr.mxu0 0.0
    %124 = vmatpush2.msra.mxu0 0.0
    %125 = vmatprep.subr.mxu0 0.0
    %126 = vmatpush2.msra.mxu0 0.0
    %127 = vmatprep.subr.mxu0 0.0
    %128 = vmatpush2.msra.mxu0 0.0
    %129 = vmatprep.mubr.f32.mxu0 0.0
    %130 = vmatmul.mubr.f32.gmra.mxu0 %v63
    %v131 = vpop.f32.mrf.mxu0
    %v132 = vadd.f32 %v59, %v131
    %v133 = vpop.f32.mrf.mxu0
    %134 = vdwg.mxu0
    %v136 = vsel %vm61, 0.0, 0
    %138 = vmatprep.subr.mxu0 0.0
    %139 = vmatpush1.msra.mxu0 0.0
    %140 = vmatprep.subr.mxu0 0.0
    %141 = vmatpush1.msra.mxu0 0.0
    %142 = vmatprep.subr.mxu0 0.0
    %143 = vmatpush1.msra.mxu0 0.0
    %144 = vmatprep.subr.mxu0 0.0
    %145 = vmatpush1.msra.mxu0 0.0
    %146 = vmatprep.subr.mxu0 0.0
    %147 = vmatpush1.msra.mxu0 0.0
    %148 = vmatprep.subr.mxu0 0.0
    %149 = vmatpush1.msra.mxu0 0.0
    %150 = vmatprep.subr.mxu0 0.0
    %151 = vmatpush1.msra.mxu0 0.0
    %152 = vmatprep.subr.mxu0 0.0
    %153 = vmatpush1.msra.mxu0 0.0
    %154 = vmatprep.subr.mxu0 0.0
    %155 = vmatpush1.msra.mxu0 0.0
    %156 = vmatprep.subr.mxu0 0.0
    %157 = vmatpush1.msra.mxu0 0.0
    %158 = vmatprep.subr.mxu0 0.0
    %159 = vmatpush1.msra.mxu0 0.0
    %160 = vmatprep.subr.mxu0 0.0
    %161 = vmatpush1.msra.mxu0 0.0
    %162 = vmatprep.subr.mxu0 0.0
    %163 = vmatpush1.msra.mxu0 %v48
    %164 = vmatprep.subr.mxu0 0.0
    %165 = vmatpush1.msra.mxu0 %v47
    %166 = vmatprep.subr.mxu0 0.0
    %167 = vmatpush1.msra.mxu0 %v46
    %168 = vmatprep.subr.mxu0 0.0
    %169 = vmatpush1.msra.mxu0 %v45
    %170 = vmatprep.subr.mxu0 0.0
    %171 = vmatpush2.msra.mxu0 0.0
    %172 = vmatprep.subr.mxu0 0.0
    %173 = vmatpush2.msra.mxu0 0.0
    %174 = vmatprep.subr.mxu0 0.0
    %175 = vmatpush2.msra.mxu0 0.0
    %176 = vmatprep.subr.mxu0 0.0
    %177 = vmatpush2.msra.mxu0 0.0
    %178 = vmatprep.subr.mxu0 0.0
    %179 = vmatpush2.msra.mxu0 0.0
    %180 = vmatprep.subr.mxu0 0.0
    %181 = vmatpush2.msra.mxu0 0.0
    %182 = vmatprep.subr.mxu0 0.0
    %183 = vmatpush2.msra.mxu0 0.0
    %184 = vmatprep.subr.mxu0 0.0
    %185 = vmatpush2.msra.mxu0 0.0
    %186 = vmatprep.subr.mxu0 0.0
    %187 = vmatpush2.msra.mxu0 0.0
    %188 = vmatprep.subr.mxu0 0.0
    %189 = vmatpush2.msra.mxu0 0.0
    %190 = vmatprep.subr.mxu0 0.0
    %191 = vmatpush2.msra.mxu0 0.0
    %192 = vmatprep.subr.mxu0 0.0
    %193 = vmatpush2.msra.mxu0 0.0
    %194 = vmatprep.subr.mxu0 0.0
    %195 = vmatpush2.msra.mxu0 0.0
    %196 = vmatprep.subr.mxu0 0.0
    %197 = vmatpush2.msra.mxu0 0.0
    %198 = vmatprep.subr.mxu0 0.0
    %199 = vmatpush2.msra.mxu0 0.0
    %200 = vmatprep.subr.mxu0 0.0
    %201 = vmatpush2.msra.mxu0 0.0
    %202 = vmatprep.mubr.f32.mxu0 0.0
    %203 = vmatmul.mubr.f32.gmra.mxu0 %v136
    %v204 = vpop.f32.mrf.mxu0
    %v205 = vadd.f32 0.0, %v204
    %v206 = vpop.f32.mrf.mxu0
    %207 = vdwg.mxu0
    %v208 = vadd.f32 %v132, %v205
    %v209 = vxor.u32 %v208, 2147483648
    %v210 = vmul.f32 %v209, 1.442695
    %v211 = vpow.pop %v210
    %v212 = vadd.f32 %v211, 1.0
    %v213 = vrcp.pop %v212
    %v214 = vmul.f32 1.0, %v213
    %v215 = vtanh.pop %v208
    %v216 = vmul.f32 %v214, 0.0
    %218 = vrot.lane.b32.xlu0 %v215, 64
    %v219 = vpop.permute.xlu0 %218
    %v221 = vmul.f32 %v214, %v219
    %223 = vrot.lane.b32.xlu0 %v221, 32
    %v224 = vpop.permute.xlu0 %223
    %v226 = vadd.f32 %v216, %v224
    %v227 = vtanh.pop %v226
    %229 = vrot.lane.b32.xlu0 %v227, 64
    %v230 = vpop.permute.xlu0 %229
    %v232 = vmul.f32 %v214, %v230
    %234 = vrot.lane.b32.xlu0 %v232, 32
    %v235 = vpop.permute.xlu0 %234
    %v236 = vsel %vm61, %v235, 0
    %238 = vmatprep.subr.mxu0 0.0
    %239 = vmatpush1.msra.mxu0 0.0
    %240 = vmatprep.subr.mxu0 0.0
    %241 = vmatpush1.msra.mxu0 0.0
    %242 = vmatprep.subr.mxu0 0.0
    %243 = vmatpush1.msra.mxu0 0.0
    %244 = vmatprep.subr.mxu0 0.0
    %245 = vmatpush1.msra.mxu0 0.0
    %246 = vmatprep.subr.mxu0 0.0
    %247 = vmatpush1.msra.mxu0 0.0
    %248 = vmatprep.subr.mxu0 0.0
    %249 = vmatpush1.msra.mxu0 0.0
    %250 = vmatprep.subr.mxu0 0.0
    %251 = vmatpush1.msra.mxu0 0.0
    %252 = vmatprep.subr.mxu0 0.0
    %253 = vmatpush1.msra.mxu0 0.0
    %254 = vmatprep.subr.mxu0 0.0
    %255 = vmatpush1.msra.mxu0 0.0
    %256 = vmatprep.subr.mxu0 0.0
    %257 = vmatpush1.msra.mxu0 0.0
    %258 = vmatprep.subr.mxu0 0.0
    %259 = vmatpush1.msra.mxu0 0.0
    %260 = vmatprep.subr.mxu0 0.0
    %261 = vmatpush1.msra.mxu0 0.0
    %262 = vmatprep.subr.mxu0 0.0
    %263 = vmatpush1.msra.mxu0 %v48
    %264 = vmatprep.subr.mxu0 0.0
    %265 = vmatpush1.msra.mxu0 %v47
    %266 = vmatprep.subr.mxu0 0.0
    %267 = vmatpush1.msra.mxu0 %v46
    %268 = vmatprep.subr.mxu0 0.0
    %269 = vmatpush1.msra.mxu0 %v45
    %270 = vmatprep.subr.mxu0 0.0
    %271 = vmatpush2.msra.mxu0 0.0
    %272 = vmatprep.subr.mxu0 0.0
    %273 = vmatpush2.msra.mxu0 0.0
    %274 = vmatprep.subr.mxu0 0.0
    %275 = vmatpush2.msra.mxu0 0.0
    %276 = vmatprep.subr.mxu0 0.0
    %277 = vmatpush2.msra.mxu0 0.0
    %278 = vmatprep.subr.mxu0 0.0
    %279 = vmatpush2.msra.mxu0 0.0
    %280 = vmatprep.subr.mxu0 0.0
    %281 = vmatpush2.msra.mxu0 0.0
    %282 = vmatprep.subr.mxu0 0.0
    %283 = vmatpush2.msra.mxu0 0.0
    %284 = vmatprep.subr.mxu0 0.0
    %285 = vmatpush2.msra.mxu0 0.0
    %286 = vmatprep.subr.mxu0 0.0
    %287 = vmatpush2.msra.mxu0 0.0
    %288 = vmatprep.subr.mxu0 0.0
    %289 = vmatpush2.msra.mxu0 0.0
    %290 = vmatprep.subr.mxu0 0.0
    %291 = vmatpush2.msra.mxu0 0.0
    %292 = vmatprep.subr.mxu0 0.0
    %293 = vmatpush2.msra.mxu0 0.0
    %294 = vmatprep.subr.mxu0 0.0
    %295 = vmatpush2.msra.mxu0 0.0
    %296 = vmatprep.subr.mxu0 0.0
    %297 = vmatpush2.msra.mxu0 0.0
    %298 = vmatprep.subr.mxu0 0.0
    %299 = vmatpush2.msra.mxu0 0.0
    %300 = vmatprep.subr.mxu0 0.0
    %301 = vmatpush2.msra.mxu0 0.0
    %302 = vmatprep.mubr.f32.mxu0 0.0
    %303 = vmatmul.mubr.f32.gmra.mxu0 %v236
    %v304 = vpop.f32.mrf.mxu0
    %v305 = vadd.f32 0.0, %v304
    %v306 = vpop.f32.mrf.mxu0
    %307 = vdwg.mxu0
    %v309 = vrot.slane %v305, 7
    %v311 = vadd.f32 %v132, %v309
    %v312 = vxor.u32 %v311, 2147483648
    %v313 = vmul.f32 %v312, 1.442695
    %v314 = vpow.pop %v313
    %v315 = vadd.f32 %v314, 1.0
    %v316 = vrcp.pop %v315
    %v317 = vmul.f32 1.0, %v316
    %v318 = vtanh.pop %v311
    %v320 = vrot.slane %v226, 7
    %v322 = vmul.f32 %v317, %v320
    %324 = vrot.lane.b32.xlu0 %v318, 64
    %v325 = vpop.permute.xlu0 %324
    %v327 = vmul.f32 %v317, %v325
    %329 = vrot.lane.b32.xlu0 %v327, 32
    %v330 = vpop.permute.xlu0 %329
    %v332 = vadd.f32 %v322, %v330
    %v333 = vtanh.pop %v332
    %335 = vrot.lane.b32.xlu0 %v333, 64
    %v336 = vpop.permute.xlu0 %335
    %v338 = vmul.f32 %v317, %v336
    %v340 = vrot.slane %v338, 1
    %341 = vrot.lane.b32.xlu0 %v340, 32
    %v342 = vpop.permute.xlu0 %341
    %v343 = vsel %vm61, %v342, 0
    %345 = vmatprep.subr.mxu0 0.0
    %346 = vmatpush1.msra.mxu0 0.0
    %347 = vmatprep.subr.mxu0 0.0
    %348 = vmatpush1.msra.mxu0 0.0
    %349 = vmatprep.subr.mxu0 0.0
    %350 = vmatpush1.msra.mxu0 0.0
    %351 = vmatprep.subr.mxu0 0.0
    %352 = vmatpush1.msra.mxu0 0.0
    %353 = vmatprep.subr.mxu0 0.0
    %354 = vmatpush1.msra.mxu0 0.0
    %355 = vmatprep.subr.mxu0 0.0
    %356 = vmatpush1.msra.mxu0 0.0
    %357 = vmatprep.subr.mxu0 0.0
    %358 = vmatpush1.msra.mxu0 0.0
    %359 = vmatprep.subr.mxu0 0.0
    %360 = vmatpush1.msra.mxu0 0.0
    %361 = vmatprep.subr.mxu0 0.0
    %362 = vmatpush1.msra.mxu0 0.0
    %363 = vmatprep.subr.mxu0 0.0
    %364 = vmatpush1.msra.mxu0 0.0
    %365 = vmatprep.subr.mxu0 0.0
    %366 = vmatpush1.msra.mxu0 0.0
    %367 = vmatprep.subr.mxu0 0.0
    %368 = vmatpush1.msra.mxu0 0.0
    %369 = vmatprep.subr.mxu0 0.0
    %370 = vmatpush1.msra.mxu0 %v48
    %371 = vmatprep.subr.mxu0 0.0
    %372 = vmatpush1.msra.mxu0 %v47
    %373 = vmatprep.subr.mxu0 0.0
    %374 = vmatpush1.msra.mxu0 %v46
    %375 = vmatprep.subr.mxu0 0.0
    %376 = vmatpush1.msra.mxu0 %v45
    %377 = vmatprep.subr.mxu0 0.0
    %378 = vmatpush2.msra.mxu0 0.0
    %379 = vmatprep.subr.mxu0 0.0
    %380 = vmatpush2.msra.mxu0 0.0
    %381 = vmatprep.subr.mxu0 0.0
    %382 = vmatpush2.msra.mxu0 0.0
    %383 = vmatprep.subr.mxu0 0.0
    %384 = vmatpush2.msra.mxu0 0.0
    %385 = vmatprep.subr.mxu0 0.0
    %386 = vmatpush2.msra.mxu0 0.0
    %387 = vmatprep.subr.mxu0 0.0
    %388 = vmatpush2.msra.mxu0 0.0
    %389 = vmatprep.subr.mxu0 0.0
    %390 = vmatpush2.msra.mxu0 0.0
    %391 = vmatprep.subr.mxu0 0.0
    %392 = vmatpush2.msra.mxu0 0.0
    %393 = vmatprep.subr.mxu0 0.0
    %394 = vmatpush2.msra.mxu0 0.0
    %395 = vmatprep.subr.mxu0 0.0
    %396 = vmatpush2.msra.mxu0 0.0
    %397 = vmatprep.subr.mxu0 0.0
    %398 = vmatpush2.msra.mxu0 0.0
    %399 = vmatprep.subr.mxu0 0.0
    %400 = vmatpush2.msra.mxu0 0.0
    %401 = vmatprep.subr.mxu0 0.0
    %402 = vmatpush2.msra.mxu0 0.0
    %403 = vmatprep.subr.mxu0 0.0
    %404 = vmatpush2.msra.mxu0 0.0
    %405 = vmatprep.subr.mxu0 0.0
    %406 = vmatpush2.msra.mxu0 0.0
    %407 = vmatprep.subr.mxu0 0.0
    %408 = vmatpush2.msra.mxu0 0.0
    %409 = vmatprep.mubr.f32.mxu0 0.0
    %410 = vmatmul.mubr.f32.gmra.mxu0 %v343
    %v411 = vpop.f32.mrf.mxu0
    %v412 = vadd.f32 0.0, %v411
    %v413 = vpop.f32.mrf.mxu0
    %414 = vdwg.mxu0
    %v416 = vrot.slane %v412, 6
    %v418 = vadd.f32 %v132, %v416
    %v419 = vxor.u32 %v418, 2147483648
    %v420 = vmul.f32 %v419, 1.442695
    %v421 = vpow.pop %v420
    %v422 = vadd.f32 %v421, 1.0
    %v423 = vrcp.pop %v422
    %v424 = vmul.f32 1.0, %v423
    %v425 = vtanh.pop %v418
    %v427 = vrot.slane %v332, 7
    %v429 = vmul.f32 %v424, %v427
    %431 = vrot.lane.b32.xlu0 %v425, 64
    %v432 = vpop.permute.xlu0 %431
    %v434 = vmul.f32 %v424, %v432
    %436 = vrot.lane.b32.xlu0 %v434, 32
    %v437 = vpop.permute.xlu0 %436
    %v439 = vadd.f32 %v429, %v437
    %v440 = vtanh.pop %v439
    %442 = vrot.lane.b32.xlu0 %v440, 64
    %v443 = vpop.permute.xlu0 %442
    %v445 = vmul.f32 %v424, %v443
    %v447 = vrot.slane %v445, 2
    %448 = vrot.lane.b32.xlu0 %v447, 32
    %v449 = vpop.permute.xlu0 %448
    %v450 = vsel %vm61, %v449, 0
    %452 = vmatprep.subr.mxu0 0.0
    %453 = vmatpush1.msra.mxu0 0.0
    %454 = vmatprep.subr.mxu0 0.0
    %455 = vmatpush1.msra.mxu0 0.0
    %456 = vmatprep.subr.mxu0 0.0
    %457 = vmatpush1.msra.mxu0 0.0
    %458 = vmatprep.subr.mxu0 0.0
    %459 = vmatpush1.msra.mxu0 0.0
    %460 = vmatprep.subr.mxu0 0.0
    %461 = vmatpush1.msra.mxu0 0.0
    %462 = vmatprep.subr.mxu0 0.0
    %463 = vmatpush1.msra.mxu0 0.0
    %464 = vmatprep.subr.mxu0 0.0
    %465 = vmatpush1.msra.mxu0 0.0
    %466 = vmatprep.subr.mxu0 0.0
    %467 = vmatpush1.msra.mxu0 0.0
    %468 = vmatprep.subr.mxu0 0.0
    %469 = vmatpush1.msra.mxu0 0.0
    %470 = vmatprep.subr.mxu0 0.0
    %471 = vmatpush1.msra.mxu0 0.0
    %472 = vmatprep.subr.mxu0 0.0
    %473 = vmatpush1.msra.mxu0 0.0
    %474 = vmatprep.subr.mxu0 0.0
    %475 = vmatpush1.msra.mxu0 0.0
    %476 = vmatprep.subr.mxu0 0.0
    %477 = vmatpush1.msra.mxu0 %v48
    %478 = vmatprep.subr.mxu0 0.0
    %479 = vmatpush1.msra.mxu0 %v47
    %480 = vmatprep.subr.mxu0 0.0
    %481 = vmatpush1.msra.mxu0 %v46
    %482 = vmatprep.subr.mxu0 0.0
    %483 = vmatpush1.msra.mxu0 %v45
    %484 = vmatprep.subr.mxu0 0.0
    %485 = vmatpush2.msra.mxu0 0.0
    %486 = vmatprep.subr.mxu0 0.0
    %487 = vmatpush2.msra.mxu0 0.0
    %488 = vmatprep.subr.mxu0 0.0
    %489 = vmatpush2.msra.mxu0 0.0
    %490 = vmatprep.subr.mxu0 0.0
    %491 = vmatpush2.msra.mxu0 0.0
    %492 = vmatprep.subr.mxu0 0.0
    %493 = vmatpush2.msra.mxu0 0.0
    %494 = vmatprep.subr.mxu0 0.0
    %495 = vmatpush2.msra.mxu0 0.0
    %496 = vmatprep.subr.mxu0 0.0
    %497 = vmatpush2.msra.mxu0 0.0
    %498 = vmatprep.subr.mxu0 0.0
    %499 = vmatpush2.msra.mxu0 0.0
    %500 = vmatprep.subr.mxu0 0.0
    %501 = vmatpush2.msra.mxu0 0.0
    %502 = vmatprep.subr.mxu0 0.0
    %503 = vmatpush2.msra.mxu0 0.0
    %504 = vmatprep.subr.mxu0 0.0
    %505 = vmatpush2.msra.mxu0 0.0
    %506 = vmatprep.subr.mxu0 0.0
    %507 = vmatpush2.msra.mxu0 0.0
    %508 = vmatprep.subr.mxu0 0.0
    %509 = vmatpush2.msra.mxu0 0.0
    %510 = vmatprep.subr.mxu0 0.0
    %511 = vmatpush2.msra.mxu0 0.0
    %512 = vmatprep.subr.mxu0 0.0
    %513 = vmatpush2.msra.mxu0 0.0
    %514 = vmatprep.subr.mxu0 0.0
    %515 = vmatpush2.msra.mxu0 0.0
    %516 = vmatprep.mubr.f32.mxu0 0.0
    %517 = vmatmul.mubr.f32.gmra.mxu0 %v450
    %v518 = vpop.f32.mrf.mxu0
    %v519 = vadd.f32 0.0, %v518
    %v520 = vpop.f32.mrf.mxu0
    %521 = vdwg.mxu0
    %v523 = vrot.slane %v519, 5
    %v525 = vadd.f32 %v132, %v523
    %v526 = vxor.u32 %v525, 2147483648
    %v527 = vmul.f32 %v526, 1.442695
    %v528 = vpow.pop %v527
    %v529 = vadd.f32 %v528, 1.0
    %v530 = vrcp.pop %v529
    %v531 = vmul.f32 1.0, %v530
    %v532 = vtanh.pop %v525
    %v534 = vrot.slane %v439, 7
    %v536 = vmul.f32 %v531, %v534
    %538 = vrot.lane.b32.xlu0 %v532, 64
    %v539 = vpop.permute.xlu0 %538
    %v541 = vmul.f32 %v531, %v539
    %543 = vrot.lane.b32.xlu0 %v541, 32
    %v544 = vpop.permute.xlu0 %543
    %v546 = vadd.f32 %v536, %v544
    %v547 = vtanh.pop %v546
    %549 = vrot.lane.b32.xlu0 %v547, 64
    %v550 = vpop.permute.xlu0 %549
    %v552 = vmul.f32 %v531, %v550
    %v554 = vrot.slane %v552, 3
    %555 = vrot.lane.b32.xlu0 %v554, 32
    %v556 = vpop.permute.xlu0 %555
    %v557 = vsel %vm61, %v556, 0
    %559 = vmatprep.subr.mxu0 0.0
    %560 = vmatpush1.msra.mxu0 0.0
    %561 = vmatprep.subr.mxu0 0.0
    %562 = vmatpush1.msra.mxu0 0.0
    %563 = vmatprep.subr.mxu0 0.0
    %564 = vmatpush1.msra.mxu0 0.0
    %565 = vmatprep.subr.mxu0 0.0
    %566 = vmatpush1.msra.mxu0 0.0
    %567 = vmatprep.subr.mxu0 0.0
    %568 = vmatpush1.msra.mxu0 0.0
    %569 = vmatprep.subr.mxu0 0.0
    %570 = vmatpush1.msra.mxu0 0.0
    %571 = vmatprep.subr.mxu0 0.0
    %572 = vmatpush1.msra.mxu0 0.0
    %573 = vmatprep.subr.mxu0 0.0
    %574 = vmatpush1.msra.mxu0 0.0
    %575 = vmatprep.subr.mxu0 0.0
    %576 = vmatpush1.msra.mxu0 0.0
    %577 = vmatprep.subr.mxu0 0.0
    %578 = vmatpush1.msra.mxu0 0.0
    %579 = vmatprep.subr.mxu0 0.0
    %580 = vmatpush1.msra.mxu0 0.0
    %581 = vmatprep.subr.mxu0 0.0
    %582 = vmatpush1.msra.mxu0 0.0
    %583 = vmatprep.subr.mxu0 0.0
    %584 = vmatpush1.msra.mxu0 %v48
    %585 = vmatprep.subr.mxu0 0.0
    %586 = vmatpush1.msra.mxu0 %v47
    %587 = vmatprep.subr.mxu0 0.0
    %588 = vmatpush1.msra.mxu0 %v46
    %589 = vmatprep.subr.mxu0 0.0
    %590 = vmatpush1.msra.mxu0 %v45
    %591 = vmatprep.subr.mxu0 0.0
    %592 = vmatpush2.msra.mxu0 0.0
    %593 = vmatprep.subr.mxu0 0.0
    %594 = vmatpush2.msra.mxu0 0.0
    %595 = vmatprep.subr.mxu0 0.0
    %596 = vmatpush2.msra.mxu0 0.0
    %597 = vmatprep.subr.mxu0 0.0
    %598 = vmatpush2.msra.mxu0 0.0
    %599 = vmatprep.subr.mxu0 0.0
    %600 = vmatpush2.msra.mxu0 0.0
    %601 = vmatprep.subr.mxu0 0.0
    %602 = vmatpush2.msra.mxu0 0.0
    %603 = vmatprep.subr.mxu0 0.0
    %604 = vmatpush2.msra.mxu0 0.0
    %605 = vmatprep.subr.mxu0 0.0
    %606 = vmatpush2.msra.mxu0 0.0
    %607 = vmatprep.subr.mxu0 0.0
    %608 = vmatpush2.msra.mxu0 0.0
    %609 = vmatprep.subr.mxu0 0.0
    %610 = vmatpush2.msra.mxu0 0.0
    %611 = vmatprep.subr.mxu0 0.0
    %612 = vmatpush2.msra.mxu0 0.0
    %613 = vmatprep.subr.mxu0 0.0
    %614 = vmatpush2.msra.mxu0 0.0
    %615 = vmatprep.subr.mxu0 0.0
    %616 = vmatpush2.msra.mxu0 0.0
    %617 = vmatprep.subr.mxu0 0.0
    %618 = vmatpush2.msra.mxu0 0.0
    %619 = vmatprep.subr.mxu0 0.0
    %620 = vmatpush2.msra.mxu0 0.0
    %621 = vmatprep.subr.mxu0 0.0
    %622 = vmatpush2.msra.mxu0 0.0
    %623 = vmatprep.mubr.f32.mxu0 0.0
    %624 = vmatmul.mubr.f32.gmra.mxu0 %v557
    %v625 = vpop.f32.mrf.mxu0
    %v626 = vadd.f32 0.0, %v625
    %v627 = vpop.f32.mrf.mxu0
    %628 = vdwg.mxu0
    %v630 = vrot.slane %v626, 4
    %v632 = vadd.f32 %v132, %v630
    %v633 = vxor.u32 %v632, 2147483648
    %v634 = vmul.f32 %v633, 1.442695
    %v635 = vpow.pop %v634
    %v636 = vadd.f32 %v635, 1.0
    %v637 = vrcp.pop %v636
    %v638 = vmul.f32 1.0, %v637
    %v639 = vtanh.pop %v632
    %v641 = vrot.slane %v546, 7
    %v643 = vmul.f32 %v638, %v641
    %645 = vrot.lane.b32.xlu0 %v639, 64
    %v646 = vpop.permute.xlu0 %645
    %v648 = vmul.f32 %v638, %v646
    %650 = vrot.lane.b32.xlu0 %v648, 32
    %v651 = vpop.permute.xlu0 %650
    %v653 = vadd.f32 %v643, %v651
    %v654 = vtanh.pop %v653
    %656 = vrot.lane.b32.xlu0 %v654, 64
    %v657 = vpop.permute.xlu0 %656
    %v659 = vmul.f32 %v638, %v657
    %v661 = vrot.slane %v659, 4
    %662 = vrot.lane.b32.xlu0 %v661, 32
    %v663 = vpop.permute.xlu0 %662
    %v664 = vsel %vm61, %v663, 0
    %666 = vmatprep.subr.mxu0 0.0
    %667 = vmatpush1.msra.mxu0 0.0
    %668 = vmatprep.subr.mxu0 0.0
    %669 = vmatpush1.msra.mxu0 0.0
    %670 = vmatprep.subr.mxu0 0.0
    %671 = vmatpush1.msra.mxu0 0.0
    %672 = vmatprep.subr.mxu0 0.0
    %673 = vmatpush1.msra.mxu0 0.0
    %674 = vmatprep.subr.mxu0 0.0
    %675 = vmatpush1.msra.mxu0 0.0
    %676 = vmatprep.subr.mxu0 0.0
    %677 = vmatpush1.msra.mxu0 0.0
    %678 = vmatprep.subr.mxu0 0.0
    %679 = vmatpush1.msra.mxu0 0.0
    %680 = vmatprep.subr.mxu0 0.0
    %681 = vmatpush1.msra.mxu0 0.0
    %682 = vmatprep.subr.mxu0 0.0
    %683 = vmatpush1.msra.mxu0 0.0
    %684 = vmatprep.subr.mxu0 0.0
    %685 = vmatpush1.msra.mxu0 0.0
    %686 = vmatprep.subr.mxu0 0.0
    %687 = vmatpush1.msra.mxu0 0.0
    %688 = vmatprep.subr.mxu0 0.0
    %689 = vmatpush1.msra.mxu0 0.0
    %690 = vmatprep.subr.mxu0 0.0
    %691 = vmatpush1.msra.mxu0 %v48
    %692 = vmatprep.subr.mxu0 0.0
    %693 = vmatpush1.msra.mxu0 %v47
    %694 = vmatprep.subr.mxu0 0.0
    %695 = vmatpush1.msra.mxu0 %v46
    %696 = vmatprep.subr.mxu0 0.0
    %697 = vmatpush1.msra.mxu0 %v45
    %698 = vmatprep.subr.mxu0 0.0
    %699 = vmatpush2.msra.mxu0 0.0
    %700 = vmatprep.subr.mxu0 0.0
    %701 = vmatpush2.msra.mxu0 0.0
    %702 = vmatprep.subr.mxu0 0.0
    %703 = vmatpush2.msra.mxu0 0.0
    %704 = vmatprep.subr.mxu0 0.0
    %705 = vmatpush2.msra.mxu0 0.0
    %706 = vmatprep.subr.mxu0 0.0
    %707 = vmatpush2.msra.mxu0 0.0
    %708 = vmatprep.subr.mxu0 0.0
    %709 = vmatpush2.msra.mxu0 0.0
    %710 = vmatprep.subr.mxu0 0.0
    %711 = vmatpush2.msra.mxu0 0.0
    %712 = vmatprep.subr.mxu0 0.0
    %713 = vmatpush2.msra.mxu0 0.0
    %714 = vmatprep.subr.mxu0 0.0
    %715 = vmatpush2.msra.mxu0 0.0
    %716 = vmatprep.subr.mxu0 0.0
    %717 = vmatpush2.msra.mxu0 0.0
    %718 = vmatprep.subr.mxu0 0.0
    %719 = vmatpush2.msra.mxu0 0.0
    %720 = vmatprep.subr.mxu0 0.0
    %721 = vmatpush2.msra.mxu0 0.0
    %722 = vmatprep.subr.mxu0 0.0
    %723 = vmatpush2.msra.mxu0 0.0
    %724 = vmatprep.subr.mxu0 0.0
    %725 = vmatpush2.msra.mxu0 0.0
    %726 = vmatprep.subr.mxu0 0.0
    %727 = vmatpush2.msra.mxu0 0.0
    %728 = vmatprep.subr.mxu0 0.0
    %729 = vmatpush2.msra.mxu0 0.0
    %730 = vmatprep.mubr.f32.mxu0 0.0
    %731 = vmatmul.mubr.f32.gmra.mxu0 %v664
    %v732 = vpop.f32.mrf.mxu0
    %v733 = vadd.f32 0.0, %v732
    %v734 = vpop.f32.mrf.mxu0
    %735 = vdwg.mxu0
    %v737 = vrot.slane %v733, 3
    %v739 = vadd.f32 %v132, %v737
    %v740 = vxor.u32 %v739, 2147483648
    %v741 = vmul.f32 %v740, 1.442695
    %v742 = vpow.pop %v741
    %v743 = vadd.f32 %v742, 1.0
    %v744 = vrcp.pop %v743
    %v745 = vmul.f32 1.0, %v744
    %v746 = vtanh.pop %v739
    %v748 = vrot.slane %v653, 7
    %v750 = vmul.f32 %v745, %v748
    %752 = vrot.lane.b32.xlu0 %v746, 64
    %v753 = vpop.permute.xlu0 %752
    %v755 = vmul.f32 %v745, %v753
    %757 = vrot.lane.b32.xlu0 %v755, 32
    %v758 = vpop.permute.xlu0 %757
    %v760 = vadd.f32 %v750, %v758
    %v761 = vtanh.pop %v760
    %763 = vrot.lane.b32.xlu0 %v761, 64
    %v764 = vpop.permute.xlu0 %763
    %v766 = vmul.f32 %v745, %v764
    %v768 = vrot.slane %v766, 5
    %769 = vrot.lane.b32.xlu0 %v768, 32
    %v770 = vpop.permute.xlu0 %769
    %v771 = vsel %vm61, %v770, 0
    %773 = vmatprep.subr.mxu0 0.0
    %774 = vmatpush1.msra.mxu0 0.0
    %775 = vmatprep.subr.mxu0 0.0
    %776 = vmatpush1.msra.mxu0 0.0
    %777 = vmatprep.subr.mxu0 0.0
    %778 = vmatpush1.msra.mxu0 0.0
    %779 = vmatprep.subr.mxu0 0.0
    %780 = vmatpush1.msra.mxu0 0.0
    %781 = vmatprep.subr.mxu0 0.0
    %782 = vmatpush1.msra.mxu0 0.0
    %783 = vmatprep.subr.mxu0 0.0
    %784 = vmatpush1.msra.mxu0 0.0
    %785 = vmatprep.subr.mxu0 0.0
    %786 = vmatpush1.msra.mxu0 0.0
    %787 = vmatprep.subr.mxu0 0.0
    %788 = vmatpush1.msra.mxu0 0.0
    %789 = vmatprep.subr.mxu0 0.0
    %790 = vmatpush1.msra.mxu0 0.0
    %791 = vmatprep.subr.mxu0 0.0
    %792 = vmatpush1.msra.mxu0 0.0
    %793 = vmatprep.subr.mxu0 0.0
    %794 = vmatpush1.msra.mxu0 0.0
    %795 = vmatprep.subr.mxu0 0.0
    %796 = vmatpush1.msra.mxu0 0.0
    %797 = vmatprep.subr.mxu0 0.0
    %798 = vmatpush1.msra.mxu0 %v48
    %799 = vmatprep.subr.mxu0 0.0
    %800 = vmatpush1.msra.mxu0 %v47
    %801 = vmatprep.subr.mxu0 0.0
    %802 = vmatpush1.msra.mxu0 %v46
    %803 = vmatprep.subr.mxu0 0.0
    %804 = vmatpush1.msra.mxu0 %v45
    %805 = vmatprep.subr.mxu0 0.0
    %806 = vmatpush2.msra.mxu0 0.0
    %807 = vmatprep.subr.mxu0 0.0
    %808 = vmatpush2.msra.mxu0 0.0
    %809 = vmatprep.subr.mxu0 0.0
    %810 = vmatpush2.msra.mxu0 0.0
    %811 = vmatprep.subr.mxu0 0.0
    %812 = vmatpush2.msra.mxu0 0.0
    %813 = vmatprep.subr.mxu0 0.0
    %814 = vmatpush2.msra.mxu0 0.0
    %815 = vmatprep.subr.mxu0 0.0
    %816 = vmatpush2.msra.mxu0 0.0
    %817 = vmatprep.subr.mxu0 0.0
    %818 = vmatpush2.msra.mxu0 0.0
    %819 = vmatprep.subr.mxu0 0.0
    %820 = vmatpush2.msra.mxu0 0.0
    %821 = vmatprep.subr.mxu0 0.0
    %822 = vmatpush2.msra.mxu0 0.0
    %823 = vmatprep.subr.mxu0 0.0
    %824 = vmatpush2.msra.mxu0 0.0
    %825 = vmatprep.subr.mxu0 0.0
    %826 = vmatpush2.msra.mxu0 0.0
    %827 = vmatprep.subr.mxu0 0.0
    %828 = vmatpush2.msra.mxu0 0.0
    %829 = vmatprep.subr.mxu0 0.0
    %830 = vmatpush2.msra.mxu0 0.0
    %831 = vmatprep.subr.mxu0 0.0
    %832 = vmatpush2.msra.mxu0 0.0
    %833 = vmatprep.subr.mxu0 0.0
    %834 = vmatpush2.msra.mxu0 0.0
    %835 = vmatprep.subr.mxu0 0.0
    %836 = vmatpush2.msra.mxu0 0.0
    %837 = vmatprep.mubr.f32.mxu0 0.0
    %838 = vmatmul.mubr.f32.gmra.mxu0 %v771
    %v839 = vpop.f32.mrf.mxu0
    %v840 = vadd.f32 0.0, %v839
    %v841 = vpop.f32.mrf.mxu0
    %842 = vdwg.mxu0
    %v844 = vrot.slane %v840, 2
    %v846 = vadd.f32 %v132, %v844
    %v847 = vxor.u32 %v846, 2147483648
    %v848 = vmul.f32 %v847, 1.442695
    %v849 = vpow.pop %v848
    %v850 = vadd.f32 %v849, 1.0
    %v851 = vrcp.pop %v850
    %v852 = vmul.f32 1.0, %v851
    %v853 = vtanh.pop %v846
    %v855 = vrot.slane %v760, 7
    %v857 = vmul.f32 %v852, %v855
    %859 = vrot.lane.b32.xlu0 %v853, 64
    %v860 = vpop.permute.xlu0 %859
    %v862 = vmul.f32 %v852, %v860
    %864 = vrot.lane.b32.xlu0 %v862, 32
    %v865 = vpop.permute.xlu0 %864
    %v867 = vadd.f32 %v857, %v865
    %v868 = vtanh.pop %v867
    %870 = vrot.lane.b32.xlu0 %v868, 64
    %v871 = vpop.permute.xlu0 %870
    %v873 = vmul.f32 %v852, %v871
    %v875 = vrot.slane %v873, 6
    %876 = vrot.lane.b32.xlu0 %v875, 32
    %v877 = vpop.permute.xlu0 %876
    %v878 = vsel %vm61, %v877, 0
    %880 = vmatprep.subr.mxu0 0.0
    %881 = vmatpush1.msra.mxu0 0.0
    %882 = vmatprep.subr.mxu0 0.0
    %883 = vmatpush1.msra.mxu0 0.0
    %884 = vmatprep.subr.mxu0 0.0
    %885 = vmatpush1.msra.mxu0 0.0
    %886 = vmatprep.subr.mxu0 0.0
    %887 = vmatpush1.msra.mxu0 0.0
    %888 = vmatprep.subr.mxu0 0.0
    %889 = vmatpush1.msra.mxu0 0.0
    %890 = vmatprep.subr.mxu0 0.0
    %891 = vmatpush1.msra.mxu0 0.0
    %892 = vmatprep.subr.mxu0 0.0
    %893 = vmatpush1.msra.mxu0 0.0
    %894 = vmatprep.subr.mxu0 0.0
    %895 = vmatpush1.msra.mxu0 0.0
    %896 = vmatprep.subr.mxu0 0.0
    %897 = vmatpush1.msra.mxu0 0.0
    %898 = vmatprep.subr.mxu0 0.0
    %899 = vmatpush1.msra.mxu0 0.0
    %900 = vmatprep.subr.mxu0 0.0
    %901 = vmatpush1.msra.mxu0 0.0
    %902 = vmatprep.subr.mxu0 0.0
    %903 = vmatpush1.msra.mxu0 0.0
    %904 = vmatprep.subr.mxu0 0.0
    %905 = vmatpush1.msra.mxu0 %v48
    %906 = vmatprep.subr.mxu0 0.0
    %907 = vmatpush1.msra.mxu0 %v47
    %908 = vmatprep.subr.mxu0 0.0
    %909 = vmatpush1.msra.mxu0 %v46
    %910 = vmatprep.subr.mxu0 0.0
    %911 = vmatpush1.msra.mxu0 %v45
    %912 = vmatprep.subr.mxu0 0.0
    %913 = vmatpush2.msra.mxu0 0.0
    %914 = vmatprep.subr.mxu0 0.0
    %915 = vmatpush2.msra.mxu0 0.0
    %916 = vmatprep.subr.mxu0 0.0
    %917 = vmatpush2.msra.mxu0 0.0
    %918 = vmatprep.subr.mxu0 0.0
    %919 = vmatpush2.msra.mxu0 0.0
    %920 = vmatprep.subr.mxu0 0.0
    %921 = vmatpush2.msra.mxu0 0.0
    %922 = vmatprep.subr.mxu0 0.0
    %923 = vmatpush2.msra.mxu0 0.0
    %924 = vmatprep.subr.mxu0 0.0
    %925 = vmatpush2.msra.mxu0 0.0
    %926 = vmatprep.subr.mxu0 0.0
    %927 = vmatpush2.msra.mxu0 0.0
    %928 = vmatprep.subr.mxu0 0.0
    %929 = vmatpush2.msra.mxu0 0.0
    %930 = vmatprep.subr.mxu0 0.0
    %931 = vmatpush2.msra.mxu0 0.0
    %932 = vmatprep.subr.mxu0 0.0
    %933 = vmatpush2.msra.mxu0 0.0
    %934 = vmatprep.subr.mxu0 0.0
    %935 = vmatpush2.msra.mxu0 0.0
    %936 = vmatprep.subr.mxu0 0.0
    %937 = vmatpush2.msra.mxu0 0.0
    %938 = vmatprep.subr.mxu0 0.0
    %939 = vmatpush2.msra.mxu0 0.0
    %940 = vmatprep.subr.mxu0 0.0
    %941 = vmatpush2.msra.mxu0 0.0
    %942 = vmatprep.subr.mxu0 0.0
    %943 = vmatpush2.msra.mxu0 0.0
    %944 = vmatprep.mubr.f32.mxu0 0.0
    %945 = vmatmul.mubr.f32.gmra.mxu0 %v878
    %v946 = vpop.f32.mrf.mxu0
    %v947 = vadd.f32 0.0, %v946
    %v948 = vpop.f32.mrf.mxu0
    %949 = vdwg.mxu0
    %v951 = vrot.slane %v947, 1
    %v953 = vadd.f32 %v132, %v951
    %v954 = vxor.u32 %v953, 2147483648
    %v955 = vmul.f32 %v954, 1.442695
    %v956 = vpow.pop %v955
    %v957 = vadd.f32 %v956, 1.0
    %v958 = vrcp.pop %v957
    %v959 = vmul.f32 1.0, %v958
    %v960 = vtanh.pop %v953
    %v962 = vrot.slane %v867, 7
    %v964 = vmul.f32 %v959, %v962
    %966 = vrot.lane.b32.xlu0 %v960, 64
    %v967 = vpop.permute.xlu0 %966
    %v969 = vmul.f32 %v959, %v967
    %971 = vrot.lane.b32.xlu0 %v969, 32
    %v972 = vpop.permute.xlu0 %971
    %v974 = vadd.f32 %v964, %v972
    %v975 = vtanh.pop %v974
    %977 = vrot.lane.b32.xlu0 %v975, 64
    %v978 = vpop.permute.xlu0 %977
    %v980 = vmul.f32 %v959, %v978
    %v981 = vmax.f32 %v980, 0.0
    %v982 = vld [vmem:[%s4] sm:$0xff]
    %v983 = vld [vmem:[%s4 + $0x8] sm:$0xff]
    %v984 = vld [vmem:[%s4 + $0x10] sm:$0xff]
    %v985 = vld [vmem:[%s4 + $0x18] sm:$0xff]
    %v986 = vld [vmem:[%s4 + $0x20] sm:$0xff]
    %v987 = vld [vmem:[%s4 + $0x28] sm:$0xff]
    %v988 = vld [vmem:[%s4 + $0x30] sm:$0xff]
    %v989 = vld [vmem:[%s4 + $0x38] sm:$0xff]
    %v990 = vld [vmem:[%s4 + $0x40] sm:$0xff]
    %v991 = vld [vmem:[%s4 + $0x48] sm:$0xff]
    %v992 = vld [vmem:[%s4 + $0x50] sm:$0xff]
    %v993 = vld [vmem:[%s4 + $0x58] sm:$0xff]
    %v994 = vld [vmem:[%s4 + $0x60] sm:$0xff]
    %v995 = vld [vmem:[%s4 + $0x68] sm:$0xff]
    %v996 = vld [vmem:[%s4 + $0x70] sm:$0xff]
    %v997 = vld [vmem:[%s4 + $0x78] sm:$0xff]
    %v998 = vld [vmem:[%s5] sm:$0xf]
    %v1000 = vrot.slane %v981, 7
    %1001 = vrot.lane.b32.xlu0 %v1000, 32
    %v1002 = vpop.permute.xlu0 %1001
    %v1004 = vlaneseq
    %v1005 = vshrl.u32 %v1004, 7
    %v1006 = vsub.s32 0, %v1005
    %v1007 = vrot.slane %v998, %v1006
    %v1008 = vlaneseq
    %v1009 = vshrl.u32 %v1008, 7
    %v1010 = vsub.s32 1, %v1009
    %v1011 = vrot.slane %v998, %v1010
    %v1012 = vlaneseq
    %v1013 = vshrl.u32 %v1012, 7
    %v1014 = vsub.s32 2, %v1013
    %v1015 = vrot.slane %v998, %v1014
    %v1016 = vlaneseq
    %v1017 = vshrl.u32 %v1016, 7
    %v1018 = vsub.s32 3, %v1017
    %v1019 = vrot.slane %v998, %v1018
    %v1024 = vsel %vm61, %v1002, 0
    %1026 = vmatprep.subr.mxu0 0.0
    %1027 = vmatpush1.msra.mxu0 0.0
    %1028 = vmatprep.subr.mxu0 0.0
    %1029 = vmatpush1.msra.mxu0 0.0
    %1030 = vmatprep.subr.mxu0 0.0
    %1031 = vmatpush1.msra.mxu0 0.0
    %1032 = vmatprep.subr.mxu0 0.0
    %1033 = vmatpush1.msra.mxu0 0.0
    %1034 = vmatprep.subr.mxu0 0.0
    %1035 = vmatpush1.msra.mxu0 0.0
    %1036 = vmatprep.subr.mxu0 0.0
    %1037 = vmatpush1.msra.mxu0 0.0
    %1038 = vmatprep.subr.mxu0 0.0
    %1039 = vmatpush1.msra.mxu0 0.0
    %1040 = vmatprep.subr.mxu0 0.0
    %1041 = vmatpush1.msra.mxu0 0.0
    %1042 = vmatprep.subr.mxu0 0.0
    %1043 = vmatpush1.msra.mxu0 0.0
    %1044 = vmatprep.subr.mxu0 0.0
    %1045 = vmatpush1.msra.mxu0 0.0
    %1046 = vmatprep.subr.mxu0 0.0
    %1047 = vmatpush1.msra.mxu0 0.0
    %1048 = vmatprep.subr.mxu0 0.0
    %1049 = vmatpush1.msra.mxu0 0.0
    %1050 = vmatprep.subr.mxu0 %v995
    %1051 = vmatpush1.msra.mxu0 %v994
    %1052 = vmatprep.subr.mxu0 %v991
    %1053 = vmatpush1.msra.mxu0 %v990
    %1054 = vmatprep.subr.mxu0 %v987
    %1055 = vmatpush1.msra.mxu0 %v986
    %1056 = vmatprep.subr.mxu0 %v983
    %1057 = vmatpush1.msra.mxu0 %v982
    %1058 = vmatprep.subr.mxu0 0.0
    %1059 = vmatpush2.msra.mxu0 0.0
    %1060 = vmatprep.subr.mxu0 0.0
    %1061 = vmatpush2.msra.mxu0 0.0
    %1062 = vmatprep.subr.mxu0 0.0
    %1063 = vmatpush2.msra.mxu0 0.0
    %1064 = vmatprep.subr.mxu0 0.0
    %1065 = vmatpush2.msra.mxu0 0.0
    %1066 = vmatprep.subr.mxu0 0.0
    %1067 = vmatpush2.msra.mxu0 0.0
    %1068 = vmatprep.subr.mxu0 0.0
    %1069 = vmatpush2.msra.mxu0 0.0
    %1070 = vmatprep.subr.mxu0 0.0
    %1071 = vmatpush2.msra.mxu0 0.0
    %1072 = vmatprep.subr.mxu0 0.0
    %1073 = vmatpush2.msra.mxu0 0.0
    %1074 = vmatprep.subr.mxu0 0.0
    %1075 = vmatpush2.msra.mxu0 0.0
    %1076 = vmatprep.subr.mxu0 0.0
    %1077 = vmatpush2.msra.mxu0 0.0
    %1078 = vmatprep.subr.mxu0 0.0
    %1079 = vmatpush2.msra.mxu0 0.0
    %1080 = vmatprep.subr.mxu0 0.0
    %1081 = vmatpush2.msra.mxu0 0.0
    %1082 = vmatprep.subr.mxu0 0.0
    %1083 = vmatpush2.msra.mxu0 0.0
    %1084 = vmatprep.subr.mxu0 0.0
    %1085 = vmatpush2.msra.mxu0 0.0
    %1086 = vmatprep.subr.mxu0 0.0
    %1087 = vmatpush2.msra.mxu0 0.0
    %1088 = vmatprep.subr.mxu0 0.0
    %1089 = vmatpush2.msra.mxu0 0.0
    %1090 = vmatprep.mubr.f32.mxu0 0.0
    %1091 = vmatmul.mubr.f32.gmra.mxu0 %v1024
    %v1092 = vpop.f32.mrf.mxu0
    %v1093 = vadd.f32 %v1007, %v1092
    %v1094 = vpop.f32.mrf.mxu0
    %v1095 = vadd.f32 %v1011, %v1094
    %1096 = vdwg.mxu0
    %1097 = vmatprep.subr.mxu0 0.0
    %1098 = vmatpush1.msra.mxu0 0.0
    %1099 = vmatprep.subr.mxu0 0.0
    %1100 = vmatpush1.msra.mxu0 0.0
    %1101 = vmatprep.subr.mxu0 0.0
    %1102 = vmatpush1.msra.mxu0 0.0
    %1103 = vmatprep.subr.mxu0 0.0
    %1104 = vmatpush1.msra.mxu0 0.0
    %1105 = vmatprep.subr.mxu0 0.0
    %1106 = vmatpush1.msra.mxu0 0.0
    %1107 = vmatprep.subr.mxu0 0.0
    %1108 = vmatpush1.msra.mxu0 0.0
    %1109 = vmatprep.subr.mxu0 0.0
    %1110 = vmatpush1.msra.mxu0 0.0
    %1111 = vmatprep.subr.mxu0 0.0
    %1112 = vmatpush1.msra.mxu0 0.0
    %1113 = vmatprep.subr.mxu0 0.0
    %1114 = vmatpush1.msra.mxu0 0.0
    %1115 = vmatprep.subr.mxu0 0.0
    %1116 = vmatpush1.msra.mxu0 0.0
    %1117 = vmatprep.subr.mxu0 0.0
    %1118 = vmatpush1.msra.mxu0 0.0
    %1119 = vmatprep.subr.mxu0 0.0
    %1120 = vmatpush1.msra.mxu0 0.0
    %1121 = vmatprep.subr.mxu0 %v997
    %1122 = vmatpush1.msra.mxu0 %v996
    %1123 = vmatprep.subr.mxu0 %v993
    %1124 = vmatpush1.msra.mxu0 %v992
    %1125 = vmatprep.subr.mxu0 %v989
    %1126 = vmatpush1.msra.mxu0 %v988
    %1127 = vmatprep.subr.mxu0 %v985
    %1128 = vmatpush1.msra.mxu0 %v984
    %1129 = vmatprep.subr.mxu0 0.0
    %1130 = vmatpush2.msra.mxu0 0.0
    %1131 = vmatprep.subr.mxu0 0.0
    %1132 = vmatpush2.msra.mxu0 0.0
    %1133 = vmatprep.subr.mxu0 0.0
    %1134 = vmatpush2.msra.mxu0 0.0
    %1135 = vmatprep.subr.mxu0 0.0
    %1136 = vmatpush2.msra.mxu0 0.0
    %1137 = vmatprep.subr.mxu0 0.0
    %1138 = vmatpush2.msra.mxu0 0.0
    %1139 = vmatprep.subr.mxu0 0.0
    %1140 = vmatpush2.msra.mxu0 0.0
    %1141 = vmatprep.subr.mxu0 0.0
    %1142 = vmatpush2.msra.mxu0 0.0
    %1143 = vmatprep.subr.mxu0 0.0
    %1144 = vmatpush2.msra.mxu0 0.0
    %1145 = vmatprep.subr.mxu0 0.0
    %1146 = vmatpush2.msra.mxu0 0.0
    %1147 = vmatprep.subr.mxu0 0.0
    %1148 = vmatpush2.msra.mxu0 0.0
    %1149 = vmatprep.subr.mxu0 0.0
    %1150 = vmatpush2.msra.mxu0 0.0
    %1151 = vmatprep.subr.mxu0 0.0
    %1152 = vmatpush2.msra.mxu0 0.0
    %1153 = vmatprep.subr.mxu0 0.0
    %1154 = vmatpush2.msra.mxu0 0.0
    %1155 = vmatprep.subr.mxu0 0.0
    %1156 = vmatpush2.msra.mxu0 0.0
    %1157 = vmatprep.subr.mxu0 0.0
    %1158 = vmatpush2.msra.mxu0 0.0
    %1159 = vmatprep.subr.mxu0 0.0
    %1160 = vmatpush2.msra.mxu0 0.0
    %1161 = vmatprep.mubr.f32.mxu0 0.0
    %1162 = vmatmul.mubr.f32.gmra.mxu0 %v1024
    %v1163 = vpop.f32.mrf.mxu0
    %v1164 = vadd.f32 %v1015, %v1163
    %v1165 = vpop.f32.mrf.mxu0
    %v1166 = vadd.f32 %v1019, %v1165
    %1167 = vdwg.mxu0
    %v1168 = vmax.f32 %v1093, 0.0
    %v1169 = vmax.f32 %v1095, 0.0
    %v1170 = vmax.f32 %v1164, 0.0
    %v1171 = vmax.f32 %v1166, 0.0
    %s1172 = smul.u32 4, 64
    %s1173 = smul.u32 %s1172, 8
    %s1174 = sshll.u32 %s1173, 4
    %1175 = dma.done [#allocation3], %s1174
    %v1176 = vpack.c.bf16 %v1168, %v1168
    %v1177 = vpack.c.bf16 %v1169, %v1169
    %v1178 = vpack.c.bf16 %v1170, %v1170
    %v1179 = vpack.c.bf16 %v1171, %v1171
    %v1180 = vld [vmem:[#allocation2] sm:$0xff]
    %v1181 = vld [vmem:[#allocation2 + $0x8] sm:$0xff]
    %v1182 = vld [vmem:[#allocation2 + $0x10] sm:$0xff]
    %v1183 = vld [vmem:[#allocation2 + $0x18] sm:$0xff]
    %v1184 = vld [vmem:[#allocation2 + $0x20] sm:$0xff]
    %v1185 = vld [vmem:[#allocation2 + $0x28] sm:$0xff]
    %v1186 = vld [vmem:[#allocation2 + $0x30] sm:$0xff]
    %v1187 = vld [vmem:[#allocation2 + $0x38] sm:$0xff]
    %v1188 = vld [vmem:[#allocation2 + $0x40] sm:$0xff]
    %v1189 = vld [vmem:[#allocation2 + $0x48] sm:$0xff]
    %v1190 = vld [vmem:[#allocation2 + $0x50] sm:$0xff]
    %v1191 = vld [vmem:[#allocation2 + $0x58] sm:$0xff]
    %v1192 = vld [vmem:[#allocation2 + $0x60] sm:$0xff]
    %v1193 = vld [vmem:[#allocation2 + $0x68] sm:$0xff]
    %v1194 = vld [vmem:[#allocation2 + $0x70] sm:$0xff]
    %v1195 = vld [vmem:[#allocation2 + $0x78] sm:$0xff]
    %v1196 = vld [vmem:[#allocation2 + $0x80] sm:$0xff]
    %v1197 = vld [vmem:[#allocation2 + $0x88] sm:$0xff]
    %v1198 = vld [vmem:[#allocation2 + $0x90] sm:$0xff]
    %v1199 = vld [vmem:[#allocation2 + $0x98] sm:$0xff]
    %v1200 = vld [vmem:[#allocation2 + $0xa0] sm:$0xff]
    %v1201 = vld [vmem:[#allocation2 + $0xa8] sm:$0xff]
    %v1202 = vld [vmem:[#allocation2 + $0xb0] sm:$0xff]
    %v1203 = vld [vmem:[#allocation2 + $0xb8] sm:$0xff]
    %v1204 = vld [vmem:[#allocation2 + $0xc0] sm:$0xff]
    %v1205 = vld [vmem:[#allocation2 + $0xc8] sm:$0xff]
    %v1206 = vld [vmem:[#allocation2 + $0xd0] sm:$0xff]
    %v1207 = vld [vmem:[#allocation2 + $0xd8] sm:$0xff]
    %v1208 = vld [vmem:[#allocation2 + $0xe0] sm:$0xff]
    %v1209 = vld [vmem:[#allocation2 + $0xe8] sm:$0xff]
    %v1210 = vld [vmem:[#allocation2 + $0xf0] sm:$0xff]
    %v1211 = vld [vmem:[#allocation2 + $0xf8] sm:$0xff]
    %v1212 = vld [vmem:[#allocation2 + $0x100] sm:$0xff]
    %v1213 = vld [vmem:[#allocation2 + $0x108] sm:$0xff]
    %v1214 = vld [vmem:[#allocation2 + $0x110] sm:$0xff]
    %v1215 = vld [vmem:[#allocation2 + $0x118] sm:$0xff]
    %v1216 = vld [vmem:[#allocation2 + $0x120] sm:$0xff]
    %v1217 = vld [vmem:[#allocation2 + $0x128] sm:$0xff]
    %v1218 = vld [vmem:[#allocation2 + $0x130] sm:$0xff]
    %v1219 = vld [vmem:[#allocation2 + $0x138] sm:$0xff]
    %v1220 = vld [vmem:[#allocation2 + $0x140] sm:$0xff]
    %v1221 = vld [vmem:[#allocation2 + $0x148] sm:$0xff]
    %v1222 = vld [vmem:[#allocation2 + $0x150] sm:$0xff]
    %v1223 = vld [vmem:[#allocation2 + $0x158] sm:$0xff]
    %v1224 = vld [vmem:[#allocation2 + $0x160] sm:$0xff]
    %v1225 = vld [vmem:[#allocation2 + $0x168] sm:$0xff]
    %v1226 = vld [vmem:[#allocation2 + $0x170] sm:$0xff]
    %v1227 = vld [vmem:[#allocation2 + $0x178] sm:$0xff]
    %v1228 = vld [vmem:[#allocation2 + $0x180] sm:$0xff]
    %v1229 = vld [vmem:[#allocation2 + $0x188] sm:$0xff]
    %v1230 = vld [vmem:[#allocation2 + $0x190] sm:$0xff]
    %v1231 = vld [vmem:[#allocation2 + $0x198] sm:$0xff]
    %v1232 = vld [vmem:[#allocation2 + $0x1a0] sm:$0xff]
    %v1233 = vld [vmem:[#allocation2 + $0x1a8] sm:$0xff]
    %v1234 = vld [vmem:[#allocation2 + $0x1b0] sm:$0xff]
    %v1235 = vld [vmem:[#allocation2 + $0x1b8] sm:$0xff]
    %v1236 = vld [vmem:[#allocation2 + $0x1c0] sm:$0xff]
    %v1237 = vld [vmem:[#allocation2 + $0x1c8] sm:$0xff]
    %v1238 = vld [vmem:[#allocation2 + $0x1d0] sm:$0xff]
    %v1239 = vld [vmem:[#allocation2 + $0x1d8] sm:$0xff]
    %v1240 = vld [vmem:[#allocation2 + $0x1e0] sm:$0xff]
    %v1241 = vld [vmem:[#allocation2 + $0x1e8] sm:$0xff]
    %v1242 = vld [vmem:[#allocation2 + $0x1f0] sm:$0xff]
    %v1243 = vld [vmem:[#allocation2 + $0x1f8] sm:$0xff]
    %v1244 = vld [vmem:[#allocation2 + $0x200] sm:$0xff]
    %v1245 = vld [vmem:[#allocation2 + $0x208] sm:$0xff]
    %v1246 = vld [vmem:[#allocation2 + $0x210] sm:$0xff]
    %v1247 = vld [vmem:[#allocation2 + $0x218] sm:$0xff]
    %v1248 = vld [vmem:[#allocation2 + $0x220] sm:$0xff]
    %v1249 = vld [vmem:[#allocation2 + $0x228] sm:$0xff]
    %v1250 = vld [vmem:[#allocation2 + $0x230] sm:$0xff]
    %v1251 = vld [vmem:[#allocation2 + $0x238] sm:$0xff]
    %v1252 = vld [vmem:[#allocation2 + $0x240] sm:$0xff]
    %v1253 = vld [vmem:[#allocation2 + $0x248] sm:$0xff]
    %v1254 = vld [vmem:[#allocation2 + $0x250] sm:$0xff]
    %v1255 = vld [vmem:[#allocation2 + $0x258] sm:$0xff]
    %v1256 = vld [vmem:[#allocation2 + $0x260] sm:$0xff]
    %v1257 = vld [vmem:[#allocation2 + $0x268] sm:$0xff]
    %v1258 = vld [vmem:[#allocation2 + $0x270] sm:$0xff]
    %v1259 = vld [vmem:[#allocation2 + $0x278] sm:$0xff]
    %v1260 = vld [vmem:[#allocation2 + $0x280] sm:$0xff]
    %v1261 = vld [vmem:[#allocation2 + $0x288] sm:$0xff]
    %v1262 = vld [vmem:[#allocation2 + $0x290] sm:$0xff]
    %v1263 = vld [vmem:[#allocation2 + $0x298] sm:$0xff]
    %v1264 = vld [vmem:[#allocation2 + $0x2a0] sm:$0xff]
    %v1265 = vld [vmem:[#allocation2 + $0x2a8] sm:$0xff]
    %v1266 = vld [vmem:[#allocation2 + $0x2b0] sm:$0xff]
    %v1267 = vld [vmem:[#allocation2 + $0x2b8] sm:$0xff]
    %v1268 = vld [vmem:[#allocation2 + $0x2c0] sm:$0xff]
    %v1269 = vld [vmem:[#allocation2 + $0x2c8] sm:$0xff]
    %v1270 = vld [vmem:[#allocation2 + $0x2d0] sm:$0xff]
    %v1271 = vld [vmem:[#allocation2 + $0x2d8] sm:$0xff]
    %v1272 = vld [vmem:[#allocation2 + $0x2e0] sm:$0xff]
    %v1273 = vld [vmem:[#allocation2 + $0x2e8] sm:$0xff]
    %v1274 = vld [vmem:[#allocation2 + $0x2f0] sm:$0xff]
    %v1275 = vld [vmem:[#allocation2 + $0x2f8] sm:$0xff]
    %v1276 = vld [vmem:[#allocation2 + $0x300] sm:$0xff]
    %v1277 = vld [vmem:[#allocation2 + $0x308] sm:$0xff]
    %v1278 = vld [vmem:[#allocation2 + $0x310] sm:$0xff]
    %v1279 = vld [vmem:[#allocation2 + $0x318] sm:$0xff]
    %v1280 = vld [vmem:[#allocation2 + $0x320] sm:$0xff]
    %v1281 = vld [vmem:[#allocation2 + $0x328] sm:$0xff]
    %v1282 = vld [vmem:[#allocation2 + $0x330] sm:$0xff]
    %v1283 = vld [vmem:[#allocation2 + $0x338] sm:$0xff]
    %v1284 = vld [vmem:[#allocation2 + $0x340] sm:$0xff]
    %v1285 = vld [vmem:[#allocation2 + $0x348] sm:$0xff]
    %v1286 = vld [vmem:[#allocation2 + $0x350] sm:$0xff]
    %v1287 = vld [vmem:[#allocation2 + $0x358] sm:$0xff]
    %v1288 = vld [vmem:[#allocation2 + $0x360] sm:$0xff]
    %v1289 = vld [vmem:[#allocation2 + $0x368] sm:$0xff]
    %v1290 = vld [vmem:[#allocation2 + $0x370] sm:$0xff]
    %v1291 = vld [vmem:[#allocation2 + $0x378] sm:$0xff]
    %v1292 = vld [vmem:[#allocation2 + $0x380] sm:$0xff]
    %v1293 = vld [vmem:[#allocation2 + $0x388] sm:$0xff]
    %v1294 = vld [vmem:[#allocation2 + $0x390] sm:$0xff]
    %v1295 = vld [vmem:[#allocation2 + $0x398] sm:$0xff]
    %v1296 = vld [vmem:[#allocation2 + $0x3a0] sm:$0xff]
    %v1297 = vld [vmem:[#allocation2 + $0x3a8] sm:$0xff]
    %v1298 = vld [vmem:[#allocation2 + $0x3b0] sm:$0xff]
    %v1299 = vld [vmem:[#allocation2 + $0x3b8] sm:$0xff]
    %v1300 = vld [vmem:[#allocation2 + $0x3c0] sm:$0xff]
    %v1301 = vld [vmem:[#allocation2 + $0x3c8] sm:$0xff]
    %v1302 = vld [vmem:[#allocation2 + $0x3d0] sm:$0xff]
    %v1303 = vld [vmem:[#allocation2 + $0x3d8] sm:$0xff]
    %v1304 = vld [vmem:[#allocation2 + $0x3e0] sm:$0xff]
    %v1305 = vld [vmem:[#allocation2 + $0x3e8] sm:$0xff]
    %v1306 = vld [vmem:[#allocation2 + $0x3f0] sm:$0xff]
    %v1307 = vld [vmem:[#allocation2 + $0x3f8] sm:$0xff]
    %v1308 = vld [vmem:[#allocation2 + $0x400] sm:$0xff]
    %v1309 = vld [vmem:[#allocation2 + $0x408] sm:$0xff]
    %v1310 = vld [vmem:[#allocation2 + $0x410] sm:$0xff]
    %v1311 = vld [vmem:[#allocation2 + $0x418] sm:$0xff]
    %v1312 = vld [vmem:[#allocation2 + $0x420] sm:$0xff]
    %v1313 = vld [vmem:[#allocation2 + $0x428] sm:$0xff]
    %v1314 = vld [vmem:[#allocation2 + $0x430] sm:$0xff]
    %v1315 = vld [vmem:[#allocation2 + $0x438] sm:$0xff]
    %v1316 = vld [vmem:[#allocation2 + $0x440] sm:$0xff]
    %v1317 = vld [vmem:[#allocation2 + $0x448] sm:$0xff]
    %v1318 = vld [vmem:[#allocation2 + $0x450] sm:$0xff]
    %v1319 = vld [vmem:[#allocation2 + $0x458] sm:$0xff]
    %v1320 = vld [vmem:[#allocation2 + $0x460] sm:$0xff]
    %v1321 = vld [vmem:[#allocation2 + $0x468] sm:$0xff]
    %v1322 = vld [vmem:[#allocation2 + $0x470] sm:$0xff]
    %v1323 = vld [vmem:[#allocation2 + $0x478] sm:$0xff]
    %v1324 = vld [vmem:[#allocation2 + $0x480] sm:$0xff]
    %v1325 = vld [vmem:[#allocation2 + $0x488] sm:$0xff]
    %v1326 = vld [vmem:[#allocation2 + $0x490] sm:$0xff]
    %v1327 = vld [vmem:[#allocation2 + $0x498] sm:$0xff]
    %v1328 = vld [vmem:[#allocation2 + $0x4a0] sm:$0xff]
    %v1329 = vld [vmem:[#allocation2 + $0x4a8] sm:$0xff]
    %v1330 = vld [vmem:[#allocation2 + $0x4b0] sm:$0xff]
    %v1331 = vld [vmem:[#allocation2 + $0x4b8] sm:$0xff]
    %v1332 = vld [vmem:[#allocation2 + $0x4c0] sm:$0xff]
    %v1333 = vld [vmem:[#allocation2 + $0x4c8] sm:$0xff]
    %v1334 = vld [vmem:[#allocation2 + $0x4d0] sm:$0xff]
    %v1335 = vld [vmem:[#allocation2 + $0x4d8] sm:$0xff]
    %v1336 = vld [vmem:[#allocation2 + $0x4e0] sm:$0xff]
    %v1337 = vld [vmem:[#allocation2 + $0x4e8] sm:$0xff]
    %v1338 = vld [vmem:[#allocation2 + $0x4f0] sm:$0xff]
    %v1339 = vld [vmem:[#allocation2 + $0x4f8] sm:$0xff]
    %v1340 = vld [vmem:[#allocation2 + $0x500] sm:$0xff]
    %v1341 = vld [vmem:[#allocation2 + $0x508] sm:$0xff]
    %v1342 = vld [vmem:[#allocation2 + $0x510] sm:$0xff]
    %v1343 = vld [vmem:[#allocation2 + $0x518] sm:$0xff]
    %v1344 = vld [vmem:[#allocation2 + $0x520] sm:$0xff]
    %v1345 = vld [vmem:[#allocation2 + $0x528] sm:$0xff]
    %v1346 = vld [vmem:[#allocation2 + $0x530] sm:$0xff]
    %v1347 = vld [vmem:[#allocation2 + $0x538] sm:$0xff]
    %v1348 = vld [vmem:[#allocation2 + $0x540] sm:$0xff]
    %v1349 = vld [vmem:[#allocation2 + $0x548] sm:$0xff]
    %v1350 = vld [vmem:[#allocation2 + $0x550] sm:$0xff]
    %v1351 = vld [vmem:[#allocation2 + $0x558] sm:$0xff]
    %v1352 = vld [vmem:[#allocation2 + $0x560] sm:$0xff]
    %v1353 = vld [vmem:[#allocation2 + $0x568] sm:$0xff]
    %v1354 = vld [vmem:[#allocation2 + $0x570] sm:$0xff]
    %v1355 = vld [vmem:[#allocation2 + $0x578] sm:$0xff]
    %v1356 = vld [vmem:[#allocation2 + $0x580] sm:$0xff]
    %v1357 = vld [vmem:[#allocation2 + $0x588] sm:$0xff]
    %v1358 = vld [vmem:[#allocation2 + $0x590] sm:$0xff]
    %v1359 = vld [vmem:[#allocation2 + $0x598] sm:$0xff]
    %v1360 = vld [vmem:[#allocation2 + $0x5a0] sm:$0xff]
    %v1361 = vld [vmem:[#allocation2 + $0x5a8] sm:$0xff]
    %v1362 = vld [vmem:[#allocation2 + $0x5b0] sm:$0xff]
    %v1363 = vld [vmem:[#allocation2 + $0x5b8] sm:$0xff]
    %v1364 = vld [vmem:[#allocation2 + $0x5c0] sm:$0xff]
    %v1365 = vld [vmem:[#allocation2 + $0x5c8] sm:$0xff]
    %v1366 = vld [vmem:[#allocation2 + $0x5d0] sm:$0xff]
    %v1367 = vld [vmem:[#allocation2 + $0x5d8] sm:$0xff]
    %v1368 = vld [vmem:[#allocation2 + $0x5e0] sm:$0xff]
    %v1369 = vld [vmem:[#allocation2 + $0x5e8] sm:$0xff]
    %v1370 = vld [vmem:[#allocation2 + $0x5f0] sm:$0xff]
    %v1371 = vld [vmem:[#allocation2 + $0x5f8] sm:$0xff]
    %v1372 = vld [vmem:[#allocation2 + $0x600] sm:$0xff]
    %v1373 = vld [vmem:[#allocation2 + $0x608] sm:$0xff]
    %v1374 = vld [vmem:[#allocation2 + $0x610] sm:$0xff]
    %v1375 = vld [vmem:[#allocation2 + $0x618] sm:$0xff]
    %v1376 = vld [vmem:[#allocation2 + $0x620] sm:$0xff]
    %v1377 = vld [vmem:[#allocation2 + $0x628] sm:$0xff]
    %v1378 = vld [vmem:[#allocation2 + $0x630] sm:$0xff]
    %v1379 = vld [vmem:[#allocation2 + $0x638] sm:$0xff]
    %v1380 = vld [vmem:[#allocation2 + $0x640] sm:$0xff]
    %v1381 = vld [vmem:[#allocation2 + $0x648] sm:$0xff]
    %v1382 = vld [vmem:[#allocation2 + $0x650] sm:$0xff]
    %v1383 = vld [vmem:[#allocation2 + $0x658] sm:$0xff]
    %v1384 = vld [vmem:[#allocation2 + $0x660] sm:$0xff]
    %v1385 = vld [vmem:[#allocation2 + $0x668] sm:$0xff]
    %v1386 = vld [vmem:[#allocation2 + $0x670] sm:$0xff]
    %v1387 = vld [vmem:[#allocation2 + $0x678] sm:$0xff]
    %v1388 = vld [vmem:[#allocation2 + $0x680] sm:$0xff]
    %v1389 = vld [vmem:[#allocation2 + $0x688] sm:$0xff]
    %v1390 = vld [vmem:[#allocation2 + $0x690] sm:$0xff]
    %v1391 = vld [vmem:[#allocation2 + $0x698] sm:$0xff]
    %v1392 = vld [vmem:[#allocation2 + $0x6a0] sm:$0xff]
    %v1393 = vld [vmem:[#allocation2 + $0x6a8] sm:$0xff]
    %v1394 = vld [vmem:[#allocation2 + $0x6b0] sm:$0xff]
    %v1395 = vld [vmem:[#allocation2 + $0x6b8] sm:$0xff]
    %v1396 = vld [vmem:[#allocation2 + $0x6c0] sm:$0xff]
    %v1397 = vld [vmem:[#allocation2 + $0x6c8] sm:$0xff]
    %v1398 = vld [vmem:[#allocation2 + $0x6d0] sm:$0xff]
    %v1399 = vld [vmem:[#allocation2 + $0x6d8] sm:$0xff]
    %v1400 = vld [vmem:[#allocation2 + $0x6e0] sm:$0xff]
    %v1401 = vld [vmem:[#allocation2 + $0x6e8] sm:$0xff]
    %v1402 = vld [vmem:[#allocation2 + $0x6f0] sm:$0xff]
    %v1403 = vld [vmem:[#allocation2 + $0x6f8] sm:$0xff]
    %v1404 = vld [vmem:[#allocation2 + $0x700] sm:$0xff]
    %v1405 = vld [vmem:[#allocation2 + $0x708] sm:$0xff]
    %v1406 = vld [vmem:[#allocation2 + $0x710] sm:$0xff]
    %v1407 = vld [vmem:[#allocation2 + $0x718] sm:$0xff]
    %v1408 = vld [vmem:[#allocation2 + $0x720] sm:$0xff]
    %v1409 = vld [vmem:[#allocation2 + $0x728] sm:$0xff]
    %v1410 = vld [vmem:[#allocation2 + $0x730] sm:$0xff]
    %v1411 = vld [vmem:[#allocation2 + $0x738] sm:$0xff]
    %v1412 = vld [vmem:[#allocation2 + $0x740] sm:$0xff]
    %v1413 = vld [vmem:[#allocation2 + $0x748] sm:$0xff]
    %v1414 = vld [vmem:[#allocation2 + $0x750] sm:$0xff]
    %v1415 = vld [vmem:[#allocation2 + $0x758] sm:$0xff]
    %v1416 = vld [vmem:[#allocation2 + $0x760] sm:$0xff]
    %v1417 = vld [vmem:[#allocation2 + $0x768] sm:$0xff]
    %v1418 = vld [vmem:[#allocation2 + $0x770] sm:$0xff]
    %v1419 = vld [vmem:[#allocation2 + $0x778] sm:$0xff]
    %v1420 = vld [vmem:[#allocation2 + $0x780] sm:$0xff]
    %v1421 = vld [vmem:[#allocation2 + $0x788] sm:$0xff]
    %v1422 = vld [vmem:[#allocation2 + $0x790] sm:$0xff]
    %v1423 = vld [vmem:[#allocation2 + $0x798] sm:$0xff]
    %v1424 = vld [vmem:[#allocation2 + $0x7a0] sm:$0xff]
    %v1425 = vld [vmem:[#allocation2 + $0x7a8] sm:$0xff]
    %v1426 = vld [vmem:[#allocation2 + $0x7b0] sm:$0xff]
    %v1427 = vld [vmem:[#allocation2 + $0x7b8] sm:$0xff]
    %v1428 = vld [vmem:[#allocation2 + $0x7c0] sm:$0xff]
    %v1429 = vld [vmem:[#allocation2 + $0x7c8] sm:$0xff]
    %v1430 = vld [vmem:[#allocation2 + $0x7d0] sm:$0xff]
    %v1431 = vld [vmem:[#allocation2 + $0x7d8] sm:$0xff]
    %v1432 = vld [vmem:[#allocation2 + $0x7e0] sm:$0xff]
    %v1433 = vld [vmem:[#allocation2 + $0x7e8] sm:$0xff]
    %v1434 = vld [vmem:[#allocation2 + $0x7f0] sm:$0xff]
    %v1435 = vld [vmem:[#allocation2 + $0x7f8] sm:$0xff]
    %v1436 = vld [vmem:[%s7] sm:$0xff]
    %v1693 = vunpack.c.l.b16 %v1180
    %v1694 = vunpack.c.h.b16 %v1180
    %v1695 = vunpack.c.l.b16 %v1181
    %v1696 = vunpack.c.h.b16 %v1181
    %v1697 = vunpack.c.l.b16 %v1182
    %v1698 = vunpack.c.h.b16 %v1182
    %v1699 = vunpack.c.l.b16 %v1183
    %v1700 = vunpack.c.h.b16 %v1183
    %v1701 = vunpack.c.l.b16 %v1184
    %v1702 = vunpack.c.h.b16 %v1184
    %v1703 = vunpack.c.l.b16 %v1185
    %v1704 = vunpack.c.h.b16 %v1185
    %v1705 = vunpack.c.l.b16 %v1186
    %v1706 = vunpack.c.h.b16 %v1186
    %v1707 = vunpack.c.l.b16 %v1187
    %v1708 = vunpack.c.h.b16 %v1187
    %v1709 = vunpack.c.l.b16 %v1188
    %v1710 = vunpack.c.h.b16 %v1188
    %v1711 = vunpack.c.l.b16 %v1189
    %v1712 = vunpack.c.h.b16 %v1189
    %v1713 = vunpack.c.l.b16 %v1190
    %v1714 = vunpack.c.h.b16 %v1190
    %v1715 = vunpack.c.l.b16 %v1191
    %v1716 = vunpack.c.h.b16 %v1191
    %v1717 = vunpack.c.l.b16 %v1192
    %v1718 = vunpack.c.h.b16 %v1192
    %v1719 = vunpack.c.l.b16 %v1193
    %v1720 = vunpack.c.h.b16 %v1193
    %v1721 = vunpack.c.l.b16 %v1194
    %v1722 = vunpack.c.h.b16 %v1194
    %v1723 = vunpack.c.l.b16 %v1195
    %v1724 = vunpack.c.h.b16 %v1195
    %v1725 = vunpack.c.l.b16 %v1196
    %v1726 = vunpack.c.h.b16 %v1196
    %v1727 = vunpack.c.l.b16 %v1197
    %v1728 = vunpack.c.h.b16 %v1197
    %v1729 = vunpack.c.l.b16 %v1198
    %v1730 = vunpack.c.h.b16 %v1198
    %v1731 = vunpack.c.l.b16 %v1199
    %v1732 = vunpack.c.h.b16 %v1199
    %v1733 = vunpack.c.l.b16 %v1200
    %v1734 = vunpack.c.h.b16 %v1200
    %v1735 = vunpack.c.l.b16 %v1201
    %v1736 = vunpack.c.h.b16 %v1201
    %v1737 = vunpack.c.l.b16 %v1202
    %v1738 = vunpack.c.h.b16 %v1202
    %v1739 = vunpack.c.l.b16 %v1203
    %v1740 = vunpack.c.h.b16 %v1203
    %v1741 = vunpack.c.l.b16 %v1204
    %v1742 = vunpack.c.h.b16 %v1204
    %v1743 = vunpack.c.l.b16 %v1205
    %v1744 = vunpack.c.h.b16 %v1205
    %v1745 = vunpack.c.l.b16 %v1206
    %v1746 = vunpack.c.h.b16 %v1206
    %v1747 = vunpack.c.l.b16 %v1207
    %v1748 = vunpack.c.h.b16 %v1207
    %v1749 = vunpack.c.l.b16 %v1208
    %v1750 = vunpack.c.h.b16 %v1208
    %v1751 = vunpack.c.l.b16 %v1209
    %v1752 = vunpack.c.h.b16 %v1209
    %v1753 = vunpack.c.l.b16 %v1210
    %v1754 = vunpack.c.h.b16 %v1210
    %v1755 = vunpack.c.l.b16 %v1211
    %v1756 = vunpack.c.h.b16 %v1211
    %v1757 = vunpack.c.l.b16 %v1212
    %v1758 = vunpack.c.h.b16 %v1212
    %v1759 = vunpack.c.l.b16 %v1213
    %v1760 = vunpack.c.h.b16 %v1213
    %v1761 = vunpack.c.l.b16 %v1214
    %v1762 = vunpack.c.h.b16 %v1214
    %v1763 = vunpack.c.l.b16 %v1215
    %v1764 = vunpack.c.h.b16 %v1215
    %v1765 = vunpack.c.l.b16 %v1216
    %v1766 = vunpack.c.h.b16 %v1216
    %v1767 = vunpack.c.l.b16 %v1217
    %v1768 = vunpack.c.h.b16 %v1217
    %v1769 = vunpack.c.l.b16 %v1218
    %v1770 = vunpack.c.h.b16 %v1218
    %v1771 = vunpack.c.l.b16 %v1219
    %v1772 = vunpack.c.h.b16 %v1219
    %v1773 = vunpack.c.l.b16 %v1220
    %v1774 = vunpack.c.h.b16 %v1220
    %v1775 = vunpack.c.l.b16 %v1221
    %v1776 = vunpack.c.h.b16 %v1221
    %v1777 = vunpack.c.l.b16 %v1222
    %v1778 = vunpack.c.h.b16 %v1222
    %v1779 = vunpack.c.l.b16 %v1223
    %v1780 = vunpack.c.h.b16 %v1223
    %v1781 = vunpack.c.l.b16 %v1224
    %v1782 = vunpack.c.h.b16 %v1224
    %v1783 = vunpack.c.l.b16 %v1225
    %v1784 = vunpack.c.h.b16 %v1225
    %v1785 = vunpack.c.l.b16 %v1226
    %v1786 = vunpack.c.h.b16 %v1226
    %v1787 = vunpack.c.l.b16 %v1227
    %v1788 = vunpack.c.h.b16 %v1227
    %v1789 = vunpack.c.l.b16 %v1228
    %v1790 = vunpack.c.h.b16 %v1228
    %v1791 = vunpack.c.l.b16 %v1229
    %v1792 = vunpack.c.h.b16 %v1229
    %v1793 = vunpack.c.l.b16 %v1230
    %v1794 = vunpack.c.h.b16 %v1230
    %v1795 = vunpack.c.l.b16 %v1231
    %v1796 = vunpack.c.h.b16 %v1231
    %v1797 = vunpack.c.l.b16 %v1232
    %v1798 = vunpack.c.h.b16 %v1232
    %v1799 = vunpack.c.l.b16 %v1233
    %v1800 = vunpack.c.h.b16 %v1233
    %v1801 = vunpack.c.l.b16 %v1234
    %v1802 = vunpack.c.h.b16 %v1234
    %v1803 = vunpack.c.l.b16 %v1235
    %v1804 = vunpack.c.h.b16 %v1235
    %v1805 = vunpack.c.l.b16 %v1236
    %v1806 = vunpack.c.h.b16 %v1236
    %v1807 = vunpack.c.l.b16 %v1237
    %v1808 = vunpack.c.h.b16 %v1237
    %v1809 = vunpack.c.l.b16 %v1238
    %v1810 = vunpack.c.h.b16 %v1238
    %v1811 = vunpack.c.l.b16 %v1239
    %v1812 = vunpack.c.h.b16 %v1239
    %v1813 = vunpack.c.l.b16 %v1240
    %v1814 = vunpack.c.h.b16 %v1240
    %v1815 = vunpack.c.l.b16 %v1241
    %v1816 = vunpack.c.h.b16 %v1241
    %v1817 = vunpack.c.l.b16 %v1242
    %v1818 = vunpack.c.h.b16 %v1242
    %v1819 = vunpack.c.l.b16 %v1243
    %v1820 = vunpack.c.h.b16 %v1243
    %v1821 = vunpack.c.l.b16 %v1244
    %v1822 = vunpack.c.h.b16 %v1244
    %v1823 = vunpack.c.l.b16 %v1245
    %v1824 = vunpack.c.h.b16 %v1245
    %v1825 = vunpack.c.l.b16 %v1246
    %v1826 = vunpack.c.h.b16 %v1246
    %v1827 = vunpack.c.l.b16 %v1247
    %v1828 = vunpack.c.h.b16 %v1247
    %v1829 = vunpack.c.l.b16 %v1248
    %v1830 = vunpack.c.h.b16 %v1248
    %v1831 = vunpack.c.l.b16 %v1249
    %v1832 = vunpack.c.h.b16 %v1249
    %v1833 = vunpack.c.l.b16 %v1250
    %v1834 = vunpack.c.h.b16 %v1250
    %v1835 = vunpack.c.l.b16 %v1251
    %v1836 = vunpack.c.h.b16 %v1251
    %v1837 = vunpack.c.l.b16 %v1252
    %v1838 = vunpack.c.h.b16 %v1252
    %v1839 = vunpack.c.l.b16 %v1253
    %v1840 = vunpack.c.h.b16 %v1253
    %v1841 = vunpack.c.l.b16 %v1254
    %v1842 = vunpack.c.h.b16 %v1254
    %v1843 = vunpack.c.l.b16 %v1255
    %v1844 = vunpack.c.h.b16 %v1255
    %v1845 = vunpack.c.l.b16 %v1256
    %v1846 = vunpack.c.h.b16 %v1256
    %v1847 = vunpack.c.l.b16 %v1257
    %v1848 = vunpack.c.h.b16 %v1257
    %v1849 = vunpack.c.l.b16 %v1258
    %v1850 = vunpack.c.h.b16 %v1258
    %v1851 = vunpack.c.l.b16 %v1259
    %v1852 = vunpack.c.h.b16 %v1259
    %v1853 = vunpack.c.l.b16 %v1260
    %v1854 = vunpack.c.h.b16 %v1260
    %v1855 = vunpack.c.l.b16 %v1261
    %v1856 = vunpack.c.h.b16 %v1261
    %v1857 = vunpack.c.l.b16 %v1262
    %v1858 = vunpack.c.h.b16 %v1262
    %v1859 = vunpack.c.l.b16 %v1263
    %v1860 = vunpack.c.h.b16 %v1263
    %v1861 = vunpack.c.l.b16 %v1264
    %v1862 = vunpack.c.h.b16 %v1264
    %v1863 = vunpack.c.l.b16 %v1265
    %v1864 = vunpack.c.h.b16 %v1265
    %v1865 = vunpack.c.l.b16 %v1266
    %v1866 = vunpack.c.h.b16 %v1266
    %v1867 = vunpack.c.l.b16 %v1267
    %v1868 = vunpack.c.h.b16 %v1267
    %v1869 = vunpack.c.l.b16 %v1268
    %v1870 = vunpack.c.h.b16 %v1268
    %v1871 = vunpack.c.l.b16 %v1269
    %v1872 = vunpack.c.h.b16 %v1269
    %v1873 = vunpack.c.l.b16 %v1270
    %v1874 = vunpack.c.h.b16 %v1270
    %v1875 = vunpack.c.l.b16 %v1271
    %v1876 = vunpack.c.h.b16 %v1271
    %v1877 = vunpack.c.l.b16 %v1272
    %v1878 = vunpack.c.h.b16 %v1272
    %v1879 = vunpack.c.l.b16 %v1273
    %v1880 = vunpack.c.h.b16 %v1273
    %v1881 = vunpack.c.l.b16 %v1274
    %v1882 = vunpack.c.h.b16 %v1274
    %v1883 = vunpack.c.l.b16 %v1275
    %v1884 = vunpack.c.h.b16 %v1275
    %v1885 = vunpack.c.l.b16 %v1276
    %v1886 = vunpack.c.h.b16 %v1276
    %v1887 = vunpack.c.l.b16 %v1277
    %v1888 = vunpack.c.h.b16 %v1277
    %v1889 = vunpack.c.l.b16 %v1278
    %v1890 = vunpack.c.h.b16 %v1278
    %v1891 = vunpack.c.l.b16 %v1279
    %v1892 = vunpack.c.h.b16 %v1279
    %v1893 = vunpack.c.l.b16 %v1280
    %v1894 = vunpack.c.h.b16 %v1280
    %v1895 = vunpack.c.l.b16 %v1281
    %v1896 = vunpack.c.h.b16 %v1281
    %v1897 = vunpack.c.l.b16 %v1282
    %v1898 = vunpack.c.h.b16 %v1282
    %v1899 = vunpack.c.l.b16 %v1283
    %v1900 = vunpack.c.h.b16 %v1283
    %v1901 = vunpack.c.l.b16 %v1284
    %v1902 = vunpack.c.h.b16 %v1284
    %v1903 = vunpack.c.l.b16 %v1285
    %v1904 = vunpack.c.h.b16 %v1285
    %v1905 = vunpack.c.l.b16 %v1286
    %v1906 = vunpack.c.h.b16 %v1286
    %v1907 = vunpack.c.l.b16 %v1287
    %v1908 = vunpack.c.h.b16 %v1287
    %v1909 = vunpack.c.l.b16 %v1288
    %v1910 = vunpack.c.h.b16 %v1288
    %v1911 = vunpack.c.l.b16 %v1289
    %v1912 = vunpack.c.h.b16 %v1289
    %v1913 = vunpack.c.l.b16 %v1290
    %v1914 = vunpack.c.h.b16 %v1290
    %v1915 = vunpack.c.l.b16 %v1291
    %v1916 = vunpack.c.h.b16 %v1291
    %v1917 = vunpack.c.l.b16 %v1292
    %v1918 = vunpack.c.h.b16 %v1292
    %v1919 = vunpack.c.l.b16 %v1293
    %v1920 = vunpack.c.h.b16 %v1293
    %v1921 = vunpack.c.l.b16 %v1294
    %v1922 = vunpack.c.h.b16 %v1294
    %v1923 = vunpack.c.l.b16 %v1295
    %v1924 = vunpack.c.h.b16 %v1295
    %v1925 = vunpack.c.l.b16 %v1296
    %v1926 = vunpack.c.h.b16 %v1296
    %v1927 = vunpack.c.l.b16 %v1297
    %v1928 = vunpack.c.h.b16 %v1297
    %v1929 = vunpack.c.l.b16 %v1298
    %v1930 = vunpack.c.h.b16 %v1298
    %v1931 = vunpack.c.l.b16 %v1299
    %v1932 = vunpack.c.h.b16 %v1299
    %v1933 = vunpack.c.l.b16 %v1300
    %v1934 = vunpack.c.h.b16 %v1300
    %v1935 = vunpack.c.l.b16 %v1301
    %v1936 = vunpack.c.h.b16 %v1301
    %v1937 = vunpack.c.l.b16 %v1302
    %v1938 = vunpack.c.h.b16 %v1302
    %v1939 = vunpack.c.l.b16 %v1303
    %v1940 = vunpack.c.h.b16 %v1303
    %v1941 = vunpack.c.l.b16 %v1304
    %v1942 = vunpack.c.h.b16 %v1304
    %v1943 = vunpack.c.l.b16 %v1305
    %v1944 = vunpack.c.h.b16 %v1305
    %v1945 = vunpack.c.l.b16 %v1306
    %v1946 = vunpack.c.h.b16 %v1306
    %v1947 = vunpack.c.l.b16 %v1307
    %v1948 = vunpack.c.h.b16 %v1307
    %v1949 = vunpack.c.l.b16 %v1308
    %v1950 = vunpack.c.h.b16 %v1308
    %v1951 = vunpack.c.l.b16 %v1309
    %v1952 = vunpack.c.h.b16 %v1309
    %v1953 = vunpack.c.l.b16 %v1310
    %v1954 = vunpack.c.h.b16 %v1310
    %v1955 = vunpack.c.l.b16 %v1311
    %v1956 = vunpack.c.h.b16 %v1311
    %v1957 = vunpack.c.l.b16 %v1312
    %v1958 = vunpack.c.h.b16 %v1312
    %v1959 = vunpack.c.l.b16 %v1313
    %v1960 = vunpack.c.h.b16 %v1313
    %v1961 = vunpack.c.l.b16 %v1314
    %v1962 = vunpack.c.h.b16 %v1314
    %v1963 = vunpack.c.l.b16 %v1315
    %v1964 = vunpack.c.h.b16 %v1315
    %v1965 = vunpack.c.l.b16 %v1316
    %v1966 = vunpack.c.h.b16 %v1316
    %v1967 = vunpack.c.l.b16 %v1317
    %v1968 = vunpack.c.h.b16 %v1317
    %v1969 = vunpack.c.l.b16 %v1318
    %v1970 = vunpack.c.h.b16 %v1318
    %v1971 = vunpack.c.l.b16 %v1319
    %v1972 = vunpack.c.h.b16 %v1319
    %v1973 = vunpack.c.l.b16 %v1320
    %v1974 = vunpack.c.h.b16 %v1320
    %v1975 = vunpack.c.l.b16 %v1321
    %v1976 = vunpack.c.h.b16 %v1321
    %v1977 = vunpack.c.l.b16 %v1322
    %v1978 = vunpack.c.h.b16 %v1322
    %v1979 = vunpack.c.l.b16 %v1323
    %v1980 = vunpack.c.h.b16 %v1323
    %v1981 = vunpack.c.l.b16 %v1324
    %v1982 = vunpack.c.h.b16 %v1324
    %v1983 = vunpack.c.l.b16 %v1325
    %v1984 = vunpack.c.h.b16 %v1325
    %v1985 = vunpack.c.l.b16 %v1326
    %v1986 = vunpack.c.h.b16 %v1326
    %v1987 = vunpack.c.l.b16 %v1327
    %v1988 = vunpack.c.h.b16 %v1327
    %v1989 = vunpack.c.l.b16 %v1328
    %v1990 = vunpack.c.h.b16 %v1328
    %v1991 = vunpack.c.l.b16 %v1329
    %v1992 = vunpack.c.h.b16 %v1329
    %v1993 = vunpack.c.l.b16 %v1330
    %v1994 = vunpack.c.h.b16 %v1330
    %v1995 = vunpack.c.l.b16 %v1331
    %v1996 = vunpack.c.h.b16 %v1331
    %v1997 = vunpack.c.l.b16 %v1332
    %v1998 = vunpack.c.h.b16 %v1332
    %v1999 = vunpack.c.l.b16 %v1333
    %v2000 = vunpack.c.h.b16 %v1333
    %v2001 = vunpack.c.l.b16 %v1334
    %v2002 = vunpack.c.h.b16 %v1334
    %v2003 = vunpack.c.l.b16 %v1335
    %v2004 = vunpack.c.h.b16 %v1335
    %v2005 = vunpack.c.l.b16 %v1336
    %v2006 = vunpack.c.h.b16 %v1336
    %v2007 = vunpack.c.l.b16 %v1337
    %v2008 = vunpack.c.h.b16 %v1337
    %v2009 = vunpack.c.l.b16 %v1338
    %v2010 = vunpack.c.h.b16 %v1338
    %v2011 = vunpack.c.l.b16 %v1339
    %v2012 = vunpack.c.h.b16 %v1339
    %v2013 = vunpack.c.l.b16 %v1340
    %v2014 = vunpack.c.h.b16 %v1340
    %v2015 = vunpack.c.l.b16 %v1341
    %v2016 = vunpack.c.h.b16 %v1341
    %v2017 = vunpack.c.l.b16 %v1342
    %v2018 = vunpack.c.h.b16 %v1342
    %v2019 = vunpack.c.l.b16 %v1343
    %v2020 = vunpack.c.h.b16 %v1343
    %v2021 = vunpack.c.l.b16 %v1344
    %v2022 = vunpack.c.h.b16 %v1344
    %v2023 = vunpack.c.l.b16 %v1345
    %v2024 = vunpack.c.h.b16 %v1345
    %v2025 = vunpack.c.l.b16 %v1346
    %v2026 = vunpack.c.h.b16 %v1346
    %v2027 = vunpack.c.l.b16 %v1347
    %v2028 = vunpack.c.h.b16 %v1347
    %v2029 = vunpack.c.l.b16 %v1348
    %v2030 = vunpack.c.h.b16 %v1348
    %v2031 = vunpack.c.l.b16 %v1349
    %v2032 = vunpack.c.h.b16 %v1349
    %v2033 = vunpack.c.l.b16 %v1350
    %v2034 = vunpack.c.h.b16 %v1350
    %v2035 = vunpack.c.l.b16 %v1351
    %v2036 = vunpack.c.h.b16 %v1351
    %v2037 = vunpack.c.l.b16 %v1352
    %v2038 = vunpack.c.h.b16 %v1352
    %v2039 = vunpack.c.l.b16 %v1353
    %v2040 = vunpack.c.h.b16 %v1353
    %v2041 = vunpack.c.l.b16 %v1354
    %v2042 = vunpack.c.h.b16 %v1354
    %v2043 = vunpack.c.l.b16 %v1355
    %v2044 = vunpack.c.h.b16 %v1355
    %v2045 = vunpack.c.l.b16 %v1356
    %v2046 = vunpack.c.h.b16 %v1356
    %v2047 = vunpack.c.l.b16 %v1357
    %v2048 = vunpack.c.h.b16 %v1357
    %v2049 = vunpack.c.l.b16 %v1358
    %v2050 = vunpack.c.h.b16 %v1358
    %v2051 = vunpack.c.l.b16 %v1359
    %v2052 = vunpack.c.h.b16 %v1359
    %v2053 = vunpack.c.l.b16 %v1360
    %v2054 = vunpack.c.h.b16 %v1360
    %v2055 = vunpack.c.l.b16 %v1361
    %v2056 = vunpack.c.h.b16 %v1361
    %v2057 = vunpack.c.l.b16 %v1362
    %v2058 = vunpack.c.h.b16 %v1362
    %v2059 = vunpack.c.l.b16 %v1363
    %v2060 = vunpack.c.h.b16 %v1363
    %v2061 = vunpack.c.l.b16 %v1364
    %v2062 = vunpack.c.h.b16 %v1364
    %v2063 = vunpack.c.l.b16 %v1365
    %v2064 = vunpack.c.h.b16 %v1365
    %v2065 = vunpack.c.l.b16 %v1366
    %v2066 = vunpack.c.h.b16 %v1366
    %v2067 = vunpack.c.l.b16 %v1367
    %v2068 = vunpack.c.h.b16 %v1367
    %v2069 = vunpack.c.l.b16 %v1368
    %v2070 = vunpack.c.h.b16 %v1368
    %v2071 = vunpack.c.l.b16 %v1369
    %v2072 = vunpack.c.h.b16 %v1369
    %v2073 = vunpack.c.l.b16 %v1370
    %v2074 = vunpack.c.h.b16 %v1370
    %v2075 = vunpack.c.l.b16 %v1371
    %v2076 = vunpack.c.h.b16 %v1371
    %v2077 = vunpack.c.l.b16 %v1372
    %v2078 = vunpack.c.h.b16 %v1372
    %v2079 = vunpack.c.l.b16 %v1373
    %v2080 = vunpack.c.h.b16 %v1373
    %v2081 = vunpack.c.l.b16 %v1374
    %v2082 = vunpack.c.h.b16 %v1374
    %v2083 = vunpack.c.l.b16 %v1375
    %v2084 = vunpack.c.h.b16 %v1375
    %v2085 = vunpack.c.l.b16 %v1376
    %v2086 = vunpack.c.h.b16 %v1376
    %v2087 = vunpack.c.l.b16 %v1377
    %v2088 = vunpack.c.h.b16 %v1377
    %v2089 = vunpack.c.l.b16 %v1378
    %v2090 = vunpack.c.h.b16 %v1378
    %v2091 = vunpack.c.l.b16 %v1379
    %v2092 = vunpack.c.h.b16 %v1379
    %v2093 = vunpack.c.l.b16 %v1380
    %v2094 = vunpack.c.h.b16 %v1380
    %v2095 = vunpack.c.l.b16 %v1381
    %v2096 = vunpack.c.h.b16 %v1381
    %v2097 = vunpack.c.l.b16 %v1382
    %v2098 = vunpack.c.h.b16 %v1382
    %v2099 = vunpack.c.l.b16 %v1383
    %v2100 = vunpack.c.h.b16 %v1383
    %v2101 = vunpack.c.l.b16 %v1384
    %v2102 = vunpack.c.h.b16 %v1384
    %v2103 = vunpack.c.l.b16 %v1385
    %v2104 = vunpack.c.h.b16 %v1385
    %v2105 = vunpack.c.l.b16 %v1386
    %v2106 = vunpack.c.h.b16 %v1386
    %v2107 = vunpack.c.l.b16 %v1387
    %v2108 = vunpack.c.h.b16 %v1387
    %v2109 = vunpack.c.l.b16 %v1388
    %v2110 = vunpack.c.h.b16 %v1388
    %v2111 = vunpack.c.l.b16 %v1389
    %v2112 = vunpack.c.h.b16 %v1389
    %v2113 = vunpack.c.l.b16 %v1390
    %v2114 = vunpack.c.h.b16 %v1390
    %v2115 = vunpack.c.l.b16 %v1391
    %v2116 = vunpack.c.h.b16 %v1391
    %v2117 = vunpack.c.l.b16 %v1392
    %v2118 = vunpack.c.h.b16 %v1392
    %v2119 = vunpack.c.l.b16 %v1393
    %v2120 = vunpack.c.h.b16 %v1393
    %v2121 = vunpack.c.l.b16 %v1394
    %v2122 = vunpack.c.h.b16 %v1394
    %v2123 = vunpack.c.l.b16 %v1395
    %v2124 = vunpack.c.h.b16 %v1395
    %v2125 = vunpack.c.l.b16 %v1396
    %v2126 = vunpack.c.h.b16 %v1396
    %v2127 = vunpack.c.l.b16 %v1397
    %v2128 = vunpack.c.h.b16 %v1397
    %v2129 = vunpack.c.l.b16 %v1398
    %v2130 = vunpack.c.h.b16 %v1398
    %v2131 = vunpack.c.l.b16 %v1399
    %v2132 = vunpack.c.h.b16 %v1399
    %v2133 = vunpack.c.l.b16 %v1400
    %v2134 = vunpack.c.h.b16 %v1400
    %v2135 = vunpack.c.l.b16 %v1401
    %v2136 = vunpack.c.h.b16 %v1401
    %v2137 = vunpack.c.l.b16 %v1402
    %v2138 = vunpack.c.h.b16 %v1402
    %v2139 = vunpack.c.l.b16 %v1403
    %v2140 = vunpack.c.h.b16 %v1403
    %v2141 = vunpack.c.l.b16 %v1404
    %v2142 = vunpack.c.h.b16 %v1404
    %v2143 = vunpack.c.l.b16 %v1405
    %v2144 = vunpack.c.h.b16 %v1405
    %v2145 = vunpack.c.l.b16 %v1406
    %v2146 = vunpack.c.h.b16 %v1406
    %v2147 = vunpack.c.l.b16 %v1407
    %v2148 = vunpack.c.h.b16 %v1407
    %v2149 = vunpack.c.l.b16 %v1408
    %v2150 = vunpack.c.h.b16 %v1408
    %v2151 = vunpack.c.l.b16 %v1409
    %v2152 = vunpack.c.h.b16 %v1409
    %v2153 = vunpack.c.l.b16 %v1410
    %v2154 = vunpack.c.h.b16 %v1410
    %v2155 = vunpack.c.l.b16 %v1411
    %v2156 = vunpack.c.h.b16 %v1411
    %v2157 = vunpack.c.l.b16 %v1412
    %v2158 = vunpack.c.h.b16 %v1412
    %v2159 = vunpack.c.l.b16 %v1413
    %v2160 = vunpack.c.h.b16 %v1413
    %v2161 = vunpack.c.l.b16 %v1414
    %v2162 = vunpack.c.h.b16 %v1414
    %v2163 = vunpack.c.l.b16 %v1415
    %v2164 = vunpack.c.h.b16 %v1415
    %v2165 = vunpack.c.l.b16 %v1416
    %v2166 = vunpack.c.h.b16 %v1416
    %v2167 = vunpack.c.l.b16 %v1417
    %v2168 = vunpack.c.h.b16 %v1417
    %v2169 = vunpack.c.l.b16 %v1418
    %v2170 = vunpack.c.h.b16 %v1418
    %v2171 = vunpack.c.l.b16 %v1419
    %v2172 = vunpack.c.h.b16 %v1419
    %v2173 = vunpack.c.l.b16 %v1420
    %v2174 = vunpack.c.h.b16 %v1420
    %v2175 = vunpack.c.l.b16 %v1421
    %v2176 = vunpack.c.h.b16 %v1421
    %v2177 = vunpack.c.l.b16 %v1422
    %v2178 = vunpack.c.h.b16 %v1422
    %v2179 = vunpack.c.l.b16 %v1423
    %v2180 = vunpack.c.h.b16 %v1423
    %v2181 = vunpack.c.l.b16 %v1424
    %v2182 = vunpack.c.h.b16 %v1424
    %v2183 = vunpack.c.l.b16 %v1425
    %v2184 = vunpack.c.h.b16 %v1425
    %v2185 = vunpack.c.l.b16 %v1426
    %v2186 = vunpack.c.h.b16 %v1426
    %v2187 = vunpack.c.l.b16 %v1427
    %v2188 = vunpack.c.h.b16 %v1427
    %v2189 = vunpack.c.l.b16 %v1428
    %v2190 = vunpack.c.h.b16 %v1428
    %v2191 = vunpack.c.l.b16 %v1429
    %v2192 = vunpack.c.h.b16 %v1429
    %v2193 = vunpack.c.l.b16 %v1430
    %v2194 = vunpack.c.h.b16 %v1430
    %v2195 = vunpack.c.l.b16 %v1431
    %v2196 = vunpack.c.h.b16 %v1431
    %v2197 = vunpack.c.l.b16 %v1432
    %v2198 = vunpack.c.h.b16 %v1432
    %v2199 = vunpack.c.l.b16 %v1433
    %v2200 = vunpack.c.h.b16 %v1433
    %v2201 = vunpack.c.l.b16 %v1434
    %v2202 = vunpack.c.h.b16 %v1434
    %v2203 = vunpack.c.l.b16 %v1435
    %v2204 = vunpack.c.h.b16 %v1435
    %v2205 = vpack.c.b16 %v1701, %v1693
    %v2206 = vpack.c.b16 %v1702, %v1694
    %v2207 = vpack.c.b16 %v1703, %v1695
    %v2208 = vpack.c.b16 %v1704, %v1696
    %v2209 = vpack.c.b16 %v1705, %v1697
    %v2210 = vpack.c.b16 %v1706, %v1698
    %v2211 = vpack.c.b16 %v1707, %v1699
    %v2212 = vpack.c.b16 %v1708, %v1700
    %v2213 = vpack.c.b16 %v1717, %v1709
    %v2214 = vpack.c.b16 %v1718, %v1710
    %v2215 = vpack.c.b16 %v1719, %v1711
    %v2216 = vpack.c.b16 %v1720, %v1712
    %v2217 = vpack.c.b16 %v1721, %v1713
    %v2218 = vpack.c.b16 %v1722, %v1714
    %v2219 = vpack.c.b16 %v1723, %v1715
    %v2220 = vpack.c.b16 %v1724, %v1716
    %v2221 = vpack.c.b16 %v1733, %v1725
    %v2222 = vpack.c.b16 %v1734, %v1726
    %v2223 = vpack.c.b16 %v1735, %v1727
    %v2224 = vpack.c.b16 %v1736, %v1728
    %v2225 = vpack.c.b16 %v1737, %v1729
    %v2226 = vpack.c.b16 %v1738, %v1730
    %v2227 = vpack.c.b16 %v1739, %v1731
    %v2228 = vpack.c.b16 %v1740, %v1732
    %v2229 = vpack.c.b16 %v1749, %v1741
    %v2230 = vpack.c.b16 %v1750, %v1742
    %v2231 = vpack.c.b16 %v1751, %v1743
    %v2232 = vpack.c.b16 %v1752, %v1744
    %v2233 = vpack.c.b16 %v1753, %v1745
    %v2234 = vpack.c.b16 %v1754, %v1746
    %v2235 = vpack.c.b16 %v1755, %v1747
    %v2236 = vpack.c.b16 %v1756, %v1748
    %v2237 = vpack.c.b16 %v1765, %v1757
    %v2238 = vpack.c.b16 %v1766, %v1758
    %v2239 = vpack.c.b16 %v1767, %v1759
    %v2240 = vpack.c.b16 %v1768, %v1760
    %v2241 = vpack.c.b16 %v1769, %v1761
    %v2242 = vpack.c.b16 %v1770, %v1762
    %v2243 = vpack.c.b16 %v1771, %v1763
    %v2244 = vpack.c.b16 %v1772, %v1764
    %v2245 = vpack.c.b16 %v1781, %v1773
    %v2246 = vpack.c.b16 %v1782, %v1774
    %v2247 = vpack.c.b16 %v1783, %v1775
    %v2248 = vpack.c.b16 %v1784, %v1776
    %v2249 = vpack.c.b16 %v1785, %v1777
    %v2250 = vpack.c.b16 %v1786, %v1778
    %v2251 = vpack.c.b16 %v1787, %v1779
    %v2252 = vpack.c.b16 %v1788, %v1780
    %v2253 = vpack.c.b16 %v1797, %v1789
    %v2254 = vpack.c.b16 %v1798, %v1790
    %v2255 = vpack.c.b16 %v1799, %v1791
    %v2256 = vpack.c.b16 %v1800, %v1792
    %v2257 = vpack.c.b16 %v1801, %v1793
    %v2258 = vpack.c.b16 %v1802, %v1794
    %v2259 = vpack.c.b16 %v1803, %v1795
    %v2260 = vpack.c.b16 %v1804, %v1796
    %v2261 = vpack.c.b16 %v1813, %v1805
    %v2262 = vpack.c.b16 %v1814, %v1806
    %v2263 = vpack.c.b16 %v1815, %v1807
    %v2264 = vpack.c.b16 %v1816, %v1808
    %v2265 = vpack.c.b16 %v1817, %v1809
    %v2266 = vpack.c.b16 %v1818, %v1810
    %v2267 = vpack.c.b16 %v1819, %v1811
    %v2268 = vpack.c.b16 %v1820, %v1812
    %v2269 = vpack.c.b16 %v1829, %v1821
    %v2270 = vpack.c.b16 %v1830, %v1822
    %v2271 = vpack.c.b16 %v1831, %v1823
    %v2272 = vpack.c.b16 %v1832, %v1824
    %v2273 = vpack.c.b16 %v1833, %v1825
    %v2274 = vpack.c.b16 %v1834, %v1826
    %v2275 = vpack.c.b16 %v1835, %v1827
    %v2276 = vpack.c.b16 %v1836, %v1828
    %v2277 = vpack.c.b16 %v1845, %v1837
    %v2278 = vpack.c.b16 %v1846, %v1838
    %v2279 = vpack.c.b16 %v1847, %v1839
    %v2280 = vpack.c.b16 %v1848, %v1840
    %v2281 = vpack.c.b16 %v1849, %v1841
    %v2282 = vpack.c.b16 %v1850, %v1842
    %v2283 = vpack.c.b16 %v1851, %v1843
    %v2284 = vpack.c.b16 %v1852, %v1844
    %v2285 = vpack.c.b16 %v1861, %v1853
    %v2286 = vpack.c.b16 %v1862, %v1854
    %v2287 = vpack.c.b16 %v1863, %v1855
    %v2288 = vpack.c.b16 %v1864, %v1856
    %v2289 = vpack.c.b16 %v1865, %v1857
    %v2290 = vpack.c.b16 %v1866, %v1858
    %v2291 = vpack.c.b16 %v1867, %v1859
    %v2292 = vpack.c.b16 %v1868, %v1860
    %v2293 = vpack.c.b16 %v1877, %v1869
    %v2294 = vpack.c.b16 %v1878, %v1870
    %v2295 = vpack.c.b16 %v1879, %v1871
    %v2296 = vpack.c.b16 %v1880, %v1872
    %v2297 = vpack.c.b16 %v1881, %v1873
    %v2298 = vpack.c.b16 %v1882, %v1874
    %v2299 = vpack.c.b16 %v1883, %v1875
    %v2300 = vpack.c.b16 %v1884, %v1876
    %v2301 = vpack.c.b16 %v1893, %v1885
    %v2302 = vpack.c.b16 %v1894, %v1886
    %v2303 = vpack.c.b16 %v1895, %v1887
    %v2304 = vpack.c.b16 %v1896, %v1888
    %v2305 = vpack.c.b16 %v1897, %v1889
    %v2306 = vpack.c.b16 %v1898, %v1890
    %v2307 = vpack.c.b16 %v1899, %v1891
    %v2308 = vpack.c.b16 %v1900, %v1892
    %v2309 = vpack.c.b16 %v1909, %v1901
    %v2310 = vpack.c.b16 %v1910, %v1902
    %v2311 = vpack.c.b16 %v1911, %v1903
    %v2312 = vpack.c.b16 %v1912, %v1904
    %v2313 = vpack.c.b16 %v1913, %v1905
    %v2314 = vpack.c.b16 %v1914, %v1906
    %v2315 = vpack.c.b16 %v1915, %v1907
    %v2316 = vpack.c.b16 %v1916, %v1908
    %v2317 = vpack.c.b16 %v1925, %v1917
    %v2318 = vpack.c.b16 %v1926, %v1918
    %v2319 = vpack.c.b16 %v1927, %v1919
    %v2320 = vpack.c.b16 %v1928, %v1920
    %v2321 = vpack.c.b16 %v1929, %v1921
    %v2322 = vpack.c.b16 %v1930, %v1922
    %v2323 = vpack.c.b16 %v1931, %v1923
    %v2324 = vpack.c.b16 %v1932, %v1924
    %v2325 = vpack.c.b16 %v1941, %v1933
    %v2326 = vpack.c.b16 %v1942, %v1934
    %v2327 = vpack.c.b16 %v1943, %v1935
    %v2328 = vpack.c.b16 %v1944, %v1936
    %v2329 = vpack.c.b16 %v1945, %v1937
    %v2330 = vpack.c.b16 %v1946, %v1938
    %v2331 = vpack.c.b16 %v1947, %v1939
    %v2332 = vpack.c.b16 %v1948, %v1940
    %v2333 = vpack.c.b16 %v1957, %v1949
    %v2334 = vpack.c.b16 %v1958, %v1950
    %v2335 = vpack.c.b16 %v1959, %v1951
    %v2336 = vpack.c.b16 %v1960, %v1952
    %v2337 = vpack.c.b16 %v1961, %v1953
    %v2338 = vpack.c.b16 %v1962, %v1954
    %v2339 = vpack.c.b16 %v1963, %v1955
    %v2340 = vpack.c.b16 %v1964, %v1956
    %v2341 = vpack.c.b16 %v1973, %v1965
    %v2342 = vpack.c.b16 %v1974, %v1966
    %v2343 = vpack.c.b16 %v1975, %v1967
    %v2344 = vpack.c.b16 %v1976, %v1968
    %v2345 = vpack.c.b16 %v1977, %v1969
    %v2346 = vpack.c.b16 %v1978, %v1970
    %v2347 = vpack.c.b16 %v1979, %v1971
    %v2348 = vpack.c.b16 %v1980, %v1972
    %v2349 = vpack.c.b16 %v1989, %v1981
    %v2350 = vpack.c.b16 %v1990, %v1982
    %v2351 = vpack.c.b16 %v1991, %v1983
    %v2352 = vpack.c.b16 %v1992, %v1984
    %v2353 = vpack.c.b16 %v1993, %v1985
    %v2354 = vpack.c.b16 %v1994, %v1986
    %v2355 = vpack.c.b16 %v1995, %v1987
    %v2356 = vpack.c.b16 %v1996, %v1988
    %v2357 = vpack.c.b16 %v2005, %v1997
    %v2358 = vpack.c.b16 %v2006, %v1998
    %v2359 = vpack.c.b16 %v2007, %v1999
    %v2360 = vpack.c.b16 %v2008, %v2000
    %v2361 = vpack.c.b16 %v2009, %v2001
    %v2362 = vpack.c.b16 %v2010, %v2002
    %v2363 = vpack.c.b16 %v2011, %v2003
    %v2364 = vpack.c.b16 %v2012, %v2004
    %v2365 = vpack.c.b16 %v2021, %v2013
    %v2366 = vpack.c.b16 %v2022, %v2014
    %v2367 = vpack.c.b16 %v2023, %v2015
    %v2368 = vpack.c.b16 %v2024, %v2016
    %v2369 = vpack.c.b16 %v2025, %v2017
    %v2370 = vpack.c.b16 %v2026, %v2018
    %v2371 = vpack.c.b16 %v2027, %v2019
    %v2372 = vpack.c.b16 %v2028, %v2020
    %v2373 = vpack.c.b16 %v2037, %v2029
    %v2374 = vpack.c.b16 %v2038, %v2030
    %v2375 = vpack.c.b16 %v2039, %v2031
    %v2376 = vpack.c.b16 %v2040, %v2032
    %v2377 = vpack.c.b16 %v2041, %v2033
    %v2378 = vpack.c.b16 %v2042, %v2034
    %v2379 = vpack.c.b16 %v2043, %v2035
    %v2380 = vpack.c.b16 %v2044, %v2036
    %v2381 = vpack.c.b16 %v2053, %v2045
    %v2382 = vpack.c.b16 %v2054, %v2046
    %v2383 = vpack.c.b16 %v2055, %v2047
    %v2384 = vpack.c.b16 %v2056, %v2048
    %v2385 = vpack.c.b16 %v2057, %v2049
    %v2386 = vpack.c.b16 %v2058, %v2050
    %v2387 = vpack.c.b16 %v2059, %v2051
    %v2388 = vpack.c.b16 %v2060, %v2052
    %v2389 = vpack.c.b16 %v2069, %v2061
    %v2390 = vpack.c.b16 %v2070, %v2062
    %v2391 = vpack.c.b16 %v2071, %v2063
    %v2392 = vpack.c.b16 %v2072, %v2064
    %v2393 = vpack.c.b16 %v2073, %v2065
    %v2394 = vpack.c.b16 %v2074, %v2066
    %v2395 = vpack.c.b16 %v2075, %v2067
    %v2396 = vpack.c.b16 %v2076, %v2068
    %v2397 = vpack.c.b16 %v2085, %v2077
    %v2398 = vpack.c.b16 %v2086, %v2078
    %v2399 = vpack.c.b16 %v2087, %v2079
    %v2400 = vpack.c.b16 %v2088, %v2080
    %v2401 = vpack.c.b16 %v2089, %v2081
    %v2402 = vpack.c.b16 %v2090, %v2082
    %v2403 = vpack.c.b16 %v2091, %v2083
    %v2404 = vpack.c.b16 %v2092, %v2084
    %v2405 = vpack.c.b16 %v2101, %v2093
    %v2406 = vpack.c.b16 %v2102, %v2094
    %v2407 = vpack.c.b16 %v2103, %v2095
    %v2408 = vpack.c.b16 %v2104, %v2096
    %v2409 = vpack.c.b16 %v2105, %v2097
    %v2410 = vpack.c.b16 %v2106, %v2098
    %v2411 = vpack.c.b16 %v2107, %v2099
    %v2412 = vpack.c.b16 %v2108, %v2100
    %v2413 = vpack.c.b16 %v2117, %v2109
    %v2414 = vpack.c.b16 %v2118, %v2110
    %v2415 = vpack.c.b16 %v2119, %v2111
    %v2416 = vpack.c.b16 %v2120, %v2112
    %v2417 = vpack.c.b16 %v2121, %v2113
    %v2418 = vpack.c.b16 %v2122, %v2114
    %v2419 = vpack.c.b16 %v2123, %v2115
    %v2420 = vpack.c.b16 %v2124, %v2116
    %v2421 = vpack.c.b16 %v2133, %v2125
    %v2422 = vpack.c.b16 %v2134, %v2126
    %v2423 = vpack.c.b16 %v2135, %v2127
    %v2424 = vpack.c.b16 %v2136, %v2128
    %v2425 = vpack.c.b16 %v2137, %v2129
    %v2426 = vpack.c.b16 %v2138, %v2130
    %v2427 = vpack.c.b16 %v2139, %v2131
    %v2428 = vpack.c.b16 %v2140, %v2132
    %v2429 = vpack.c.b16 %v2149, %v2141
    %v2430 = vpack.c.b16 %v2150, %v2142
    %v2431 = vpack.c.b16 %v2151, %v2143
    %v2432 = vpack.c.b16 %v2152, %v2144
    %v2433 = vpack.c.b16 %v2153, %v2145
    %v2434 = vpack.c.b16 %v2154, %v2146
    %v2435 = vpack.c.b16 %v2155, %v2147
    %v2436 = vpack.c.b16 %v2156, %v2148
    %v2437 = vpack.c.b16 %v2165, %v2157
    %v2438 = vpack.c.b16 %v2166, %v2158
    %v2439 = vpack.c.b16 %v2167, %v2159
    %v2440 = vpack.c.b16 %v2168, %v2160
    %v2441 = vpack.c.b16 %v2169, %v2161
    %v2442 = vpack.c.b16 %v2170, %v2162
    %v2443 = vpack.c.b16 %v2171, %v2163
    %v2444 = vpack.c.b16 %v2172, %v2164
    %v2445 = vpack.c.b16 %v2181, %v2173
    %v2446 = vpack.c.b16 %v2182, %v2174
    %v2447 = vpack.c.b16 %v2183, %v2175
    %v2448 = vpack.c.b16 %v2184, %v2176
    %v2449 = vpack.c.b16 %v2185, %v2177
    %v2450 = vpack.c.b16 %v2186, %v2178
    %v2451 = vpack.c.b16 %v2187, %v2179
    %v2452 = vpack.c.b16 %v2188, %v2180
    %v2453 = vpack.c.b16 %v2197, %v2189
    %v2454 = vpack.c.b16 %v2198, %v2190
    %v2455 = vpack.c.b16 %v2199, %v2191
    %v2456 = vpack.c.b16 %v2200, %v2192
    %v2457 = vpack.c.b16 %v2201, %v2193
    %v2458 = vpack.c.b16 %v2202, %v2194
    %v2459 = vpack.c.b16 %v2203, %v2195
    %v2460 = vpack.c.b16 %v2204, %v2196
    %v2718 = vlaneseq
    %v2719 = vshrl.u32 %v2718, 7
    %v2720 = vsub.s32 0, %v2719
    %v2721 = vrot.slane %v1436, %v2720
    %v2722 = vlaneseq
    %v2723 = vshrl.u32 %v2722, 7
    %v2724 = vsub.s32 1, %v2723
    %v2725 = vrot.slane %v1436, %v2724
    %v2726 = vlaneseq
    %v2727 = vshrl.u32 %v2726, 7
    %v2728 = vsub.s32 2, %v2727
    %v2729 = vrot.slane %v1436, %v2728
    %v2730 = vlaneseq
    %v2731 = vshrl.u32 %v2730, 7
    %v2732 = vsub.s32 3, %v2731
    %v2733 = vrot.slane %v1436, %v2732
    %v2734 = vlaneseq
    %v2735 = vshrl.u32 %v2734, 7
    %v2736 = vsub.s32 4, %v2735
    %v2737 = vrot.slane %v1436, %v2736
    %v2738 = vlaneseq
    %v2739 = vshrl.u32 %v2738, 7
    %v2740 = vsub.s32 5, %v2739
    %v2741 = vrot.slane %v1436, %v2740
    %v2742 = vlaneseq
    %v2743 = vshrl.u32 %v2742, 7
    %v2744 = vsub.s32 6, %v2743
    %v2745 = vrot.slane %v1436, %v2744
    %v2746 = vlaneseq
    %v2747 = vshrl.u32 %v2746, 7
    %v2748 = vsub.s32 7, %v2747
    %v2749 = vrot.slane %v1436, %v2748
    %2758 = vmatprep.subr.bf16.mxu0 %v2262
    %2759 = vmatpush1.bf16.msra.mxu0 %v2261
    %2760 = vmatprep.subr.bf16.mxu0 %v2254
    %2761 = vmatpush1.bf16.msra.mxu0 %v2253
    %2762 = vmatprep.subr.bf16.mxu0 %v2246
    %2763 = vmatpush1.bf16.msra.mxu0 %v2245
    %2764 = vmatprep.subr.bf16.mxu0 %v2238
    %2765 = vmatpush1.bf16.msra.mxu0 %v2237
    %2766 = vmatprep.subr.bf16.mxu0 %v2230
    %2767 = vmatpush1.bf16.msra.mxu0 %v2229
    %2768 = vmatprep.subr.bf16.mxu0 %v2222
    %2769 = vmatpush1.bf16.msra.mxu0 %v2221
    %2770 = vmatprep.subr.bf16.mxu0 %v2214
    %2771 = vmatpush1.bf16.msra.mxu0 %v2213
    %2772 = vmatprep.subr.bf16.mxu0 %v2206
    %2773 = vmatpush1.bf16.msra.mxu0 %v2205
    %2774 = vmatprep.subr.bf16.mxu0 %v2326
    %2775 = vmatpush2.bf16.msra.mxu0 %v2325
    %2776 = vmatprep.subr.bf16.mxu0 %v2318
    %2777 = vmatpush2.bf16.msra.mxu0 %v2317
    %2778 = vmatprep.subr.bf16.mxu0 %v2310
    %2779 = vmatpush2.bf16.msra.mxu0 %v2309
    %2780 = vmatprep.subr.bf16.mxu0 %v2302
    %2781 = vmatpush2.bf16.msra.mxu0 %v2301
    %2782 = vmatprep.subr.bf16.mxu0 %v2294
    %2783 = vmatpush2.bf16.msra.mxu0 %v2293
    %2784 = vmatprep.subr.bf16.mxu0 %v2286
    %2785 = vmatpush2.bf16.msra.mxu0 %v2285
    %2786 = vmatprep.subr.bf16.mxu0 %v2278
    %2787 = vmatpush2.bf16.msra.mxu0 %v2277
    %2788 = vmatprep.subr.bf16.mxu0 %v2270
    %2789 = vmatpush2.bf16.msra.mxu0 %v2269
    %2790 = vmatprep.mubr.bf16.mxu0 %v1177
    %2791 = vmatmul.mubr.bf16.gmra.mxu0 %v1176
    %v2792 = vpop.f32.mrf.mxu0
    %v2793 = vadd.f32 %v2721, %v2792
    %v2794 = vpop.f32.mrf.mxu0
    %v2795 = vadd.f32 %v2725, %v2794
    %v2796 = vpop.f32.mrf.mxu0
    %v2797 = vpop.f32.mrf.mxu0
    %2798 = vdwg.mxu0
    %2799 = vmatprep.subr.bf16.mxu0 %v2390
    %2800 = vmatpush1.bf16.msra.mxu0 %v2389
    %2801 = vmatprep.subr.bf16.mxu0 %v2382
    %2802 = vmatpush1.bf16.msra.mxu0 %v2381
    %2803 = vmatprep.subr.bf16.mxu0 %v2374
    %2804 = vmatpush1.bf16.msra.mxu0 %v2373
    %2805 = vmatprep.subr.bf16.mxu0 %v2366
    %2806 = vmatpush1.bf16.msra.mxu0 %v2365
    %2807 = vmatprep.subr.bf16.mxu0 %v2358
    %2808 = vmatpush1.bf16.msra.mxu0 %v2357
    %2809 = vmatprep.subr.bf16.mxu0 %v2350
    %2810 = vmatpush1.bf16.msra.mxu0 %v2349
    %2811 = vmatprep.subr.bf16.mxu0 %v2342
    %2812 = vmatpush1.bf16.msra.mxu0 %v2341
    %2813 = vmatprep.subr.bf16.mxu0 %v2334
    %2814 = vmatpush1.bf16.msra.mxu0 %v2333
    %2815 = vmatprep.subr.bf16.mxu0 %v2454
    %2816 = vmatpush2.bf16.msra.mxu0 %v2453
    %2817 = vmatprep.subr.bf16.mxu0 %v2446
    %2818 = vmatpush2.bf16.msra.mxu0 %v2445
    %2819 = vmatprep.subr.bf16.mxu0 %v2438
    %2820 = vmatpush2.bf16.msra.mxu0 %v2437
    %2821 = vmatprep.subr.bf16.mxu0 %v2430
    %2822 = vmatpush2.bf16.msra.mxu0 %v2429
    %2823 = vmatprep.subr.bf16.mxu0 %v2422
    %2824 = vmatpush2.bf16.msra.mxu0 %v2421
    %2825 = vmatprep.subr.bf16.mxu0 %v2414
    %2826 = vmatpush2.bf16.msra.mxu0 %v2413
    %2827 = vmatprep.subr.bf16.mxu0 %v2406
    %2828 = vmatpush2.bf16.msra.mxu0 %v2405
    %2829 = vmatprep.subr.bf16.mxu0 %v2398
    %2830 = vmatpush2.bf16.msra.mxu0 %v2397
    %2831 = vmatprep.mubr.bf16.mxu0 %v1179
    %2832 = vmatmul.mubr.bf16.gmra.mxu0 %v1178
    %v2833 = vpop.f32.mrf.mxu0
    %v2834 = vadd.f32 %v2793, %v2833
    %v2835 = vpop.f32.mrf.mxu0
    %v2836 = vadd.f32 %v2795, %v2835
    %v2837 = vpop.f32.mrf.mxu0
    %v2838 = vpop.f32.mrf.mxu0
    %2839 = vdwg.mxu0
    %2840 = vmatprep.subr.bf16.mxu0 %v2264
    %2841 = vmatpush1.bf16.msra.mxu0 %v2263
    %2842 = vmatprep.subr.bf16.mxu0 %v2256
    %2843 = vmatpush1.bf16.msra.mxu0 %v2255
    %2844 = vmatprep.subr.bf16.mxu0 %v2248
    %2845 = vmatpush1.bf16.msra.mxu0 %v2247
    %2846 = vmatprep.subr.bf16.mxu0 %v2240
    %2847 = vmatpush1.bf16.msra.mxu0 %v2239
    %2848 = vmatprep.subr.bf16.mxu0 %v2232
    %2849 = vmatpush1.bf16.msra.mxu0 %v2231
    %2850 = vmatprep.subr.bf16.mxu0 %v2224
    %2851 = vmatpush1.bf16.msra.mxu0 %v2223
    %2852 = vmatprep.subr.bf16.mxu0 %v2216
    %2853 = vmatpush1.bf16.msra.mxu0 %v2215
    %2854 = vmatprep.subr.bf16.mxu0 %v2208
    %2855 = vmatpush1.bf16.msra.mxu0 %v2207
    %2856 = vmatprep.subr.bf16.mxu0 %v2328
    %2857 = vmatpush2.bf16.msra.mxu0 %v2327
    %2858 = vmatprep.subr.bf16.mxu0 %v2320
    %2859 = vmatpush2.bf16.msra.mxu0 %v2319
    %2860 = vmatprep.subr.bf16.mxu0 %v2312
    %2861 = vmatpush2.bf16.msra.mxu0 %v2311
    %2862 = vmatprep.subr.bf16.mxu0 %v2304
    %2863 = vmatpush2.bf16.msra.mxu0 %v2303
    %2864 = vmatprep.subr.bf16.mxu0 %v2296
    %2865 = vmatpush2.bf16.msra.mxu0 %v2295
    %2866 = vmatprep.subr.bf16.mxu0 %v2288
    %2867 = vmatpush2.bf16.msra.mxu0 %v2287
    %2868 = vmatprep.subr.bf16.mxu0 %v2280
    %2869 = vmatpush2.bf16.msra.mxu0 %v2279
    %2870 = vmatprep.subr.bf16.mxu0 %v2272
    %2871 = vmatpush2.bf16.msra.mxu0 %v2271
    %2872 = vmatprep.mubr.bf16.mxu0 %v1177
    %2873 = vmatmul.mubr.bf16.gmra.mxu0 %v1176
    %v2874 = vpop.f32.mrf.mxu0
    %v2875 = vadd.f32 %v2729, %v2874
    %v2876 = vpop.f32.mrf.mxu0
    %v2877 = vadd.f32 %v2733, %v2876
    %v2878 = vpop.f32.mrf.mxu0
    %v2879 = vpop.f32.mrf.mxu0
    %2880 = vdwg.mxu0
    %2881 = vmatprep.subr.bf16.mxu0 %v2392
    %2882 = vmatpush1.bf16.msra.mxu0 %v2391
    %2883 = vmatprep.subr.bf16.mxu0 %v2384
    %2884 = vmatpush1.bf16.msra.mxu0 %v2383
    %2885 = vmatprep.subr.bf16.mxu0 %v2376
    %2886 = vmatpush1.bf16.msra.mxu0 %v2375
    %2887 = vmatprep.subr.bf16.mxu0 %v2368
    %2888 = vmatpush1.bf16.msra.mxu0 %v2367
    %2889 = vmatprep.subr.bf16.mxu0 %v2360
    %2890 = vmatpush1.bf16.msra.mxu0 %v2359
    %2891 = vmatprep.subr.bf16.mxu0 %v2352
    %2892 = vmatpush1.bf16.msra.mxu0 %v2351
    %2893 = vmatprep.subr.bf16.mxu0 %v2344
    %2894 = vmatpush1.bf16.msra.mxu0 %v2343
    %2895 = vmatprep.subr.bf16.mxu0 %v2336
    %2896 = vmatpush1.bf16.msra.mxu0 %v2335
    %2897 = vmatprep.subr.bf16.mxu0 %v2456
    %2898 = vmatpush2.bf16.msra.mxu0 %v2455
    %2899 = vmatprep.subr.bf16.mxu0 %v2448
    %2900 = vmatpush2.bf16.msra.mxu0 %v2447
    %2901 = vmatprep.subr.bf16.mxu0 %v2440
    %2902 = vmatpush2.bf16.msra.mxu0 %v2439
    %2903 = vmatprep.subr.bf16.mxu0 %v2432
    %2904 = vmatpush2.bf16.msra.mxu0 %v2431
    %2905 = vmatprep.subr.bf16.mxu0 %v2424
    %2906 = vmatpush2.bf16.msra.mxu0 %v2423
    %2907 = vmatprep.subr.bf16.mxu0 %v2416
    %2908 = vmatpush2.bf16.msra.mxu0 %v2415
    %2909 = vmatprep.subr.bf16.mxu0 %v2408
    %2910 = vmatpush2.bf16.msra.mxu0 %v2407
    %2911 = vmatprep.subr.bf16.mxu0 %v2400
    %2912 = vmatpush2.bf16.msra.mxu0 %v2399
    %2913 = vmatprep.mubr.bf16.mxu0 %v1179
    %2914 = vmatmul.mubr.bf16.gmra.mxu0 %v1178
    %v2915 = vpop.f32.mrf.mxu0
    %v2916 = vadd.f32 %v2875, %v2915
    %v2917 = vpop.f32.mrf.mxu0
    %v2918 = vadd.f32 %v2877, %v2917
    %v2919 = vpop.f32.mrf.mxu0
    %v2920 = vpop.f32.mrf.mxu0
    %2921 = vdwg.mxu0
    %2922 = vmatprep.subr.bf16.mxu0 %v2266
    %2923 = vmatpush1.bf16.msra.mxu0 %v2265
    %2924 = vmatprep.subr.bf16.mxu0 %v2258
    %2925 = vmatpush1.bf16.msra.mxu0 %v2257
    %2926 = vmatprep.subr.bf16.mxu0 %v2250
    %2927 = vmatpush1.bf16.msra.mxu0 %v2249
    %2928 = vmatprep.subr.bf16.mxu0 %v2242
    %2929 = vmatpush1.bf16.msra.mxu0 %v2241
    %2930 = vmatprep.subr.bf16.mxu0 %v2234
    %2931 = vmatpush1.bf16.msra.mxu0 %v2233
    %2932 = vmatprep.subr.bf16.mxu0 %v2226
    %2933 = vmatpush1.bf16.msra.mxu0 %v2225
    %2934 = vmatprep.subr.bf16.mxu0 %v2218
    %2935 = vmatpush1.bf16.msra.mxu0 %v2217
    %2936 = vmatprep.subr.bf16.mxu0 %v2210
    %2937 = vmatpush1.bf16.msra.mxu0 %v2209
    %2938 = vmatprep.subr.bf16.mxu0 %v2330
    %2939 = vmatpush2.bf16.msra.mxu0 %v2329
    %2940 = vmatprep.subr.bf16.mxu0 %v2322
    %2941 = vmatpush2.bf16.msra.mxu0 %v2321
    %2942 = vmatprep.subr.bf16.mxu0 %v2314
    %2943 = vmatpush2.bf16.msra.mxu0 %v2313
    %2944 = vmatprep.subr.bf16.mxu0 %v2306
    %2945 = vmatpush2.bf16.msra.mxu0 %v2305
    %2946 = vmatprep.subr.bf16.mxu0 %v2298
    %2947 = vmatpush2.bf16.msra.mxu0 %v2297
    %2948 = vmatprep.subr.bf16.mxu0 %v2290
    %2949 = vmatpush2.bf16.msra.mxu0 %v2289
    %2950 = vmatprep.subr.bf16.mxu0 %v2282
    %2951 = vmatpush2.bf16.msra.mxu0 %v2281
    %2952 = vmatprep.subr.bf16.mxu0 %v2274
    %2953 = vmatpush2.bf16.msra.mxu0 %v2273
    %2954 = vmatprep.mubr.bf16.mxu0 %v1177
    %2955 = vmatmul.mubr.bf16.gmra.mxu0 %v1176
    %v2956 = vpop.f32.mrf.mxu0
    %v2957 = vadd.f32 %v2737, %v2956
    %v2958 = vpop.f32.mrf.mxu0
    %v2959 = vadd.f32 %v2741, %v2958
    %v2960 = vpop.f32.mrf.mxu0
    %v2961 = vpop.f32.mrf.mxu0
    %2962 = vdwg.mxu0
    %2963 = vmatprep.subr.bf16.mxu0 %v2394
    %2964 = vmatpush1.bf16.msra.mxu0 %v2393
    %2965 = vmatprep.subr.bf16.mxu0 %v2386
    %2966 = vmatpush1.bf16.msra.mxu0 %v2385
    %2967 = vmatprep.subr.bf16.mxu0 %v2378
    %2968 = vmatpush1.bf16.msra.mxu0 %v2377
    %2969 = vmatprep.subr.bf16.mxu0 %v2370
    %2970 = vmatpush1.bf16.msra.mxu0 %v2369
    %2971 = vmatprep.subr.bf16.mxu0 %v2362
    %2972 = vmatpush1.bf16.msra.mxu0 %v2361
    %2973 = vmatprep.subr.bf16.mxu0 %v2354
    %2974 = vmatpush1.bf16.msra.mxu0 %v2353
    %2975 = vmatprep.subr.bf16.mxu0 %v2346
    %2976 = vmatpush1.bf16.msra.mxu0 %v2345
    %2977 = vmatprep.subr.bf16.mxu0 %v2338
    %2978 = vmatpush1.bf16.msra.mxu0 %v2337
    %2979 = vmatprep.subr.bf16.mxu0 %v2458
    %2980 = vmatpush2.bf16.msra.mxu0 %v2457
    %2981 = vmatprep.subr.bf16.mxu0 %v2450
    %2982 = vmatpush2.bf16.msra.mxu0 %v2449
    %2983 = vmatprep.subr.bf16.mxu0 %v2442
    %2984 = vmatpush2.bf16.msra.mxu0 %v2441
    %2985 = vmatprep.subr.bf16.mxu0 %v2434
    %2986 = vmatpush2.bf16.msra.mxu0 %v2433
    %2987 = vmatprep.subr.bf16.mxu0 %v2426
    %2988 = vmatpush2.bf16.msra.mxu0 %v2425
    %2989 = vmatprep.subr.bf16.mxu0 %v2418
    %2990 = vmatpush2.bf16.msra.mxu0 %v2417
    %2991 = vmatprep.subr.bf16.mxu0 %v2410
    %2992 = vmatpush2.bf16.msra.mxu0 %v2409
    %2993 = vmatprep.subr.bf16.mxu0 %v2402
    %2994 = vmatpush2.bf16.msra.mxu0 %v2401
    %2995 = vmatprep.mubr.bf16.mxu0 %v1179
    %2996 = vmatmul.mubr.bf16.gmra.mxu0 %v1178
    %v2997 = vpop.f32.mrf.mxu0
    %v2998 = vadd.f32 %v2957, %v2997
    %v2999 = vpop.f32.mrf.mxu0
    %v3000 = vadd.f32 %v2959, %v2999
    %v3001 = vpop.f32.mrf.mxu0
    %v3002 = vpop.f32.mrf.mxu0
    %3003 = vdwg.mxu0
    %3004 = vmatprep.subr.bf16.mxu0 %v2268
    %3005 = vmatpush1.bf16.msra.mxu0 %v2267
    %3006 = vmatprep.subr.bf16.mxu0 %v2260
    %3007 = vmatpush1.bf16.msra.mxu0 %v2259
    %3008 = vmatprep.subr.bf16.mxu0 %v2252
    %3009 = vmatpush1.bf16.msra.mxu0 %v2251
    %3010 = vmatprep.subr.bf16.mxu0 %v2244
    %3011 = vmatpush1.bf16.msra.mxu0 %v2243
    %3012 = vmatprep.subr.bf16.mxu0 %v2236
    %3013 = vmatpush1.bf16.msra.mxu0 %v2235
    %3014 = vmatprep.subr.bf16.mxu0 %v2228
    %3015 = vmatpush1.bf16.msra.mxu0 %v2227
    %3016 = vmatprep.subr.bf16.mxu0 %v2220
    %3017 = vmatpush1.bf16.msra.mxu0 %v2219
    %3018 = vmatprep.subr.bf16.mxu0 %v2212
    %3019 = vmatpush1.bf16.msra.mxu0 %v2211
    %3020 = vmatprep.subr.bf16.mxu0 %v2332
    %3021 = vmatpush2.bf16.msra.mxu0 %v2331
    %3022 = vmatprep.subr.bf16.mxu0 %v2324
    %3023 = vmatpush2.bf16.msra.mxu0 %v2323
    %3024 = vmatprep.subr.bf16.mxu0 %v2316
    %3025 = vmatpush2.bf16.msra.mxu0 %v2315
    %3026 = vmatprep.subr.bf16.mxu0 %v2308
    %3027 = vmatpush2.bf16.msra.mxu0 %v2307
    %3028 = vmatprep.subr.bf16.mxu0 %v2300
    %3029 = vmatpush2.bf16.msra.mxu0 %v2299
    %3030 = vmatprep.subr.bf16.mxu0 %v2292
    %3031 = vmatpush2.bf16.msra.mxu0 %v2291
    %3032 = vmatprep.subr.bf16.mxu0 %v2284
    %3033 = vmatpush2.bf16.msra.mxu0 %v2283
    %3034 = vmatprep.subr.bf16.mxu0 %v2276
    %3035 = vmatpush2.bf16.msra.mxu0 %v2275
    %3036 = vmatprep.mubr.bf16.mxu0 %v1177
    %3037 = vmatmul.mubr.bf16.gmra.mxu0 %v1176
    %v3038 = vpop.f32.mrf.mxu0
    %v3039 = vadd.f32 %v2745, %v3038
    %v3040 = vpop.f32.mrf.mxu0
    %v3041 = vadd.f32 %v2749, %v3040
    %v3042 = vpop.f32.mrf.mxu0
    %v3043 = vpop.f32.mrf.mxu0
    %3044 = vdwg.mxu0
    %3045 = vmatprep.subr.bf16.mxu0 %v2396
    %3046 = vmatpush1.bf16.msra.mxu0 %v2395
    %3047 = vmatprep.subr.bf16.mxu0 %v2388
    %3048 = vmatpush1.bf16.msra.mxu0 %v2387
    %3049 = vmatprep.subr.bf16.mxu0 %v2380
    %3050 = vmatpush1.bf16.msra.mxu0 %v2379
    %3051 = vmatprep.subr.bf16.mxu0 %v2372
    %3052 = vmatpush1.bf16.msra.mxu0 %v2371
    %3053 = vmatprep.subr.bf16.mxu0 %v2364
    %3054 = vmatpush1.bf16.msra.mxu0 %v2363
    %3055 = vmatprep.subr.bf16.mxu0 %v2356
    %3056 = vmatpush1.bf16.msra.mxu0 %v2355
    %3057 = vmatprep.subr.bf16.mxu0 %v2348
    %3058 = vmatpush1.bf16.msra.mxu0 %v2347
    %3059 = vmatprep.subr.bf16.mxu0 %v2340
    %3060 = vmatpush1.bf16.msra.mxu0 %v2339
    %3061 = vmatprep.subr.bf16.mxu0 %v2460
    %3062 = vmatpush2.bf16.msra.mxu0 %v2459
    %3063 = vmatprep.subr.bf16.mxu0 %v2452
    %3064 = vmatpush2.bf16.msra.mxu0 %v2451
    %3065 = vmatprep.subr.bf16.mxu0 %v2444
    %3066 = vmatpush2.bf16.msra.mxu0 %v2443
    %3067 = vmatprep.subr.bf16.mxu0 %v2436
    %3068 = vmatpush2.bf16.msra.mxu0 %v2435
    %3069 = vmatprep.subr.bf16.mxu0 %v2428
    %3070 = vmatpush2.bf16.msra.mxu0 %v2427
    %3071 = vmatprep.subr.bf16.mxu0 %v2420
    %3072 = vmatpush2.bf16.msra.mxu0 %v2419
    %3073 = vmatprep.subr.bf16.mxu0 %v2412
    %3074 = vmatpush2.bf16.msra.mxu0 %v2411
    %3075 = vmatprep.subr.bf16.mxu0 %v2404
    %3076 = vmatpush2.bf16.msra.mxu0 %v2403
    %3077 = vmatprep.mubr.bf16.mxu0 %v1179
    %3078 = vmatmul.mubr.bf16.gmra.mxu0 %v1178
    %v3079 = vpop.f32.mrf.mxu0
    %v3080 = vadd.f32 %v3039, %v3079
    %v3081 = vpop.f32.mrf.mxu0
    %v3082 = vadd.f32 %v3041, %v3081
    %v3083 = vpop.f32.mrf.mxu0
    %v3084 = vpop.f32.mrf.mxu0
    %3085 = vdwg.mxu0
    %v3086 = vmax.f32 %v2834, 0.0
    %v3087 = vmax.f32 %v2836, 0.0
    %v3088 = vmax.f32 %v2916, 0.0
    %v3089 = vmax.f32 %v2918, 0.0
    %v3090 = vmax.f32 %v2998, 0.0
    %v3091 = vmax.f32 %v3000, 0.0
    %v3092 = vmax.f32 %v3080, 0.0
    %v3093 = vmax.f32 %v3082, 0.0
    %v3094 = vld [vmem:[%s8] sm:$0xff]
    %v3095 = vld [vmem:[%s8 + $0x8] sm:$0xff]
    %v3096 = vld [vmem:[%s8 + $0x10] sm:$0xff]
    %v3097 = vld [vmem:[%s8 + $0x18] sm:$0xff]
    %v3098 = vld [vmem:[%s8 + $0x20] sm:$0xff]
    %v3099 = vld [vmem:[%s8 + $0x28] sm:$0xff]
    %v3100 = vld [vmem:[%s8 + $0x30] sm:$0xff]
    %v3101 = vld [vmem:[%s8 + $0x38] sm:$0xff]
    %v3102 = vld [vmem:[%s8 + $0x40] sm:$0xff]
    %v3103 = vld [vmem:[%s8 + $0x48] sm:$0xff]
    %v3104 = vld [vmem:[%s8 + $0x50] sm:$0xff]
    %v3105 = vld [vmem:[%s8 + $0x58] sm:$0xff]
    %v3106 = vld [vmem:[%s8 + $0x60] sm:$0xff]
    %v3107 = vld [vmem:[%s8 + $0x68] sm:$0xff]
    %v3108 = vld [vmem:[%s8 + $0x70] sm:$0xff]
    %v3109 = vld [vmem:[%s8 + $0x78] sm:$0xff]
    %v3110 = vld [vmem:[%s8 + $0x80] sm:$0xff]
    %v3111 = vld [vmem:[%s8 + $0x88] sm:$0xff]
    %v3112 = vld [vmem:[%s8 + $0x90] sm:$0xff]
    %v3113 = vld [vmem:[%s8 + $0x98] sm:$0xff]
    %v3114 = vld [vmem:[%s8 + $0xa0] sm:$0xff]
    %v3115 = vld [vmem:[%s8 + $0xa8] sm:$0xff]
    %v3116 = vld [vmem:[%s8 + $0xb0] sm:$0xff]
    %v3117 = vld [vmem:[%s8 + $0xb8] sm:$0xff]
    %v3118 = vld [vmem:[%s8 + $0xc0] sm:$0xff]
    %v3119 = vld [vmem:[%s8 + $0xc8] sm:$0xff]
    %v3120 = vld [vmem:[%s8 + $0xd0] sm:$0xff]
    %v3121 = vld [vmem:[%s8 + $0xd8] sm:$0xff]
    %v3122 = vld [vmem:[%s8 + $0xe0] sm:$0xff]
    %v3123 = vld [vmem:[%s8 + $0xe8] sm:$0xff]
    %v3124 = vld [vmem:[%s8 + $0xf0] sm:$0xff]
    %v3125 = vld [vmem:[%s8 + $0xf8] sm:$0xff]
    %v3126 = vld [vmem:[%s8 + $0x100] sm:$0xff]
    %v3127 = vld [vmem:[%s8 + $0x108] sm:$0xff]
    %v3128 = vld [vmem:[%s8 + $0x110] sm:$0xff]
    %v3129 = vld [vmem:[%s8 + $0x118] sm:$0xff]
    %v3130 = vld [vmem:[%s8 + $0x120] sm:$0xff]
    %v3131 = vld [vmem:[%s8 + $0x128] sm:$0xff]
    %v3132 = vld [vmem:[%s8 + $0x130] sm:$0xff]
    %v3133 = vld [vmem:[%s8 + $0x138] sm:$0xff]
    %v3134 = vld [vmem:[%s8 + $0x140] sm:$0xff]
    %v3135 = vld [vmem:[%s8 + $0x148] sm:$0xff]
    %v3136 = vld [vmem:[%s8 + $0x150] sm:$0xff]
    %v3137 = vld [vmem:[%s8 + $0x158] sm:$0xff]
    %v3138 = vld [vmem:[%s8 + $0x160] sm:$0xff]
    %v3139 = vld [vmem:[%s8 + $0x168] sm:$0xff]
    %v3140 = vld [vmem:[%s8 + $0x170] sm:$0xff]
    %v3141 = vld [vmem:[%s8 + $0x178] sm:$0xff]
    %v3142 = vld [vmem:[%s8 + $0x180] sm:$0xff]
    %v3143 = vld [vmem:[%s8 + $0x188] sm:$0xff]
    %v3144 = vld [vmem:[%s8 + $0x190] sm:$0xff]
    %v3145 = vld [vmem:[%s8 + $0x198] sm:$0xff]
    %v3146 = vld [vmem:[%s8 + $0x1a0] sm:$0xff]
    %v3147 = vld [vmem:[%s8 + $0x1a8] sm:$0xff]
    %v3148 = vld [vmem:[%s8 + $0x1b0] sm:$0xff]
    %v3149 = vld [vmem:[%s8 + $0x1b8] sm:$0xff]
    %v3150 = vld [vmem:[%s8 + $0x1c0] sm:$0xff]
    %v3151 = vld [vmem:[%s8 + $0x1c8] sm:$0xff]
    %v3152 = vld [vmem:[%s8 + $0x1d0] sm:$0xff]
    %v3153 = vld [vmem:[%s8 + $0x1d8] sm:$0xff]
    %v3154 = vld [vmem:[%s8 + $0x1e0] sm:$0xff]
    %v3155 = vld [vmem:[%s8 + $0x1e8] sm:$0xff]
    %v3156 = vld [vmem:[%s8 + $0x1f0] sm:$0xff]
    %v3157 = vld [vmem:[%s8 + $0x1f8] sm:$0xff]
    %v3158 = vld [vmem:[%s8 + $0x200] sm:$0xff]
    %v3159 = vld [vmem:[%s8 + $0x208] sm:$0xff]
    %v3160 = vld [vmem:[%s8 + $0x210] sm:$0xff]
    %v3161 = vld [vmem:[%s8 + $0x218] sm:$0xff]
    %v3162 = vld [vmem:[%s8 + $0x220] sm:$0xff]
    %v3163 = vld [vmem:[%s8 + $0x228] sm:$0xff]
    %v3164 = vld [vmem:[%s8 + $0x230] sm:$0xff]
    %v3165 = vld [vmem:[%s8 + $0x238] sm:$0xff]
    %v3166 = vld [vmem:[%s8 + $0x240] sm:$0xff]
    %v3167 = vld [vmem:[%s8 + $0x248] sm:$0xff]
    %v3168 = vld [vmem:[%s8 + $0x250] sm:$0xff]
    %v3169 = vld [vmem:[%s8 + $0x258] sm:$0xff]
    %v3170 = vld [vmem:[%s8 + $0x260] sm:$0xff]
    %v3171 = vld [vmem:[%s8 + $0x268] sm:$0xff]
    %v3172 = vld [vmem:[%s8 + $0x270] sm:$0xff]
    %v3173 = vld [vmem:[%s8 + $0x278] sm:$0xff]
    %v3174 = vld [vmem:[%s8 + $0x280] sm:$0xff]
    %v3175 = vld [vmem:[%s8 + $0x288] sm:$0xff]
    %v3176 = vld [vmem:[%s8 + $0x290] sm:$0xff]
    %v3177 = vld [vmem:[%s8 + $0x298] sm:$0xff]
    %v3178 = vld [vmem:[%s8 + $0x2a0] sm:$0xff]
    %v3179 = vld [vmem:[%s8 + $0x2a8] sm:$0xff]
    %v3180 = vld [vmem:[%s8 + $0x2b0] sm:$0xff]
    %v3181 = vld [vmem:[%s8 + $0x2b8] sm:$0xff]
    %v3182 = vld [vmem:[%s8 + $0x2c0] sm:$0xff]
    %v3183 = vld [vmem:[%s8 + $0x2c8] sm:$0xff]
    %v3184 = vld [vmem:[%s8 + $0x2d0] sm:$0xff]
    %v3185 = vld [vmem:[%s8 + $0x2d8] sm:$0xff]
    %v3186 = vld [vmem:[%s8 + $0x2e0] sm:$0xff]
    %v3187 = vld [vmem:[%s8 + $0x2e8] sm:$0xff]
    %v3188 = vld [vmem:[%s8 + $0x2f0] sm:$0xff]
    %v3189 = vld [vmem:[%s8 + $0x2f8] sm:$0xff]
    %v3190 = vld [vmem:[%s8 + $0x300] sm:$0xff]
    %v3191 = vld [vmem:[%s8 + $0x308] sm:$0xff]
    %v3192 = vld [vmem:[%s8 + $0x310] sm:$0xff]
    %v3193 = vld [vmem:[%s8 + $0x318] sm:$0xff]
    %v3194 = vld [vmem:[%s8 + $0x320] sm:$0xff]
    %v3195 = vld [vmem:[%s8 + $0x328] sm:$0xff]
    %v3196 = vld [vmem:[%s8 + $0x330] sm:$0xff]
    %v3197 = vld [vmem:[%s8 + $0x338] sm:$0xff]
    %v3198 = vld [vmem:[%s8 + $0x340] sm:$0xff]
    %v3199 = vld [vmem:[%s8 + $0x348] sm:$0xff]
    %v3200 = vld [vmem:[%s8 + $0x350] sm:$0xff]
    %v3201 = vld [vmem:[%s8 + $0x358] sm:$0xff]
    %v3202 = vld [vmem:[%s8 + $0x360] sm:$0xff]
    %v3203 = vld [vmem:[%s8 + $0x368] sm:$0xff]
    %v3204 = vld [vmem:[%s8 + $0x370] sm:$0xff]
    %v3205 = vld [vmem:[%s8 + $0x378] sm:$0xff]
    %v3206 = vld [vmem:[%s8 + $0x380] sm:$0xff]
    %v3207 = vld [vmem:[%s8 + $0x388] sm:$0xff]
    %v3208 = vld [vmem:[%s8 + $0x390] sm:$0xff]
    %v3209 = vld [vmem:[%s8 + $0x398] sm:$0xff]
    %v3210 = vld [vmem:[%s8 + $0x3a0] sm:$0xff]
    %v3211 = vld [vmem:[%s8 + $0x3a8] sm:$0xff]
    %v3212 = vld [vmem:[%s8 + $0x3b0] sm:$0xff]
    %v3213 = vld [vmem:[%s8 + $0x3b8] sm:$0xff]
    %v3214 = vld [vmem:[%s8 + $0x3c0] sm:$0xff]
    %v3215 = vld [vmem:[%s8 + $0x3c8] sm:$0xff]
    %v3216 = vld [vmem:[%s8 + $0x3d0] sm:$0xff]
    %v3217 = vld [vmem:[%s8 + $0x3d8] sm:$0xff]
    %v3218 = vld [vmem:[%s8 + $0x3e0] sm:$0xff]
    %v3219 = vld [vmem:[%s8 + $0x3e8] sm:$0xff]
    %v3220 = vld [vmem:[%s8 + $0x3f0] sm:$0xff]
    %v3221 = vld [vmem:[%s8 + $0x3f8] sm:$0xff]
    %v3222 = vld [vmem:[%s9] sm:$0x1]
    %3223 = vmatprep.subr.mxu0 0.0
    %3224 = vmatpush1.msra.mxu0 %v3109
    %3225 = vmatprep.subr.mxu0 0.0
    %3226 = vmatpush1.msra.mxu0 %v3108
    %3227 = vmatprep.subr.mxu0 0.0
    %3228 = vmatpush1.msra.mxu0 %v3107
    %3229 = vmatprep.subr.mxu0 0.0
    %3230 = vmatpush1.msra.mxu0 %v3106
    %3231 = vmatprep.subr.mxu0 0.0
    %3232 = vmatpush1.msra.mxu0 %v3105
    %3233 = vmatprep.subr.mxu0 0.0
    %3234 = vmatpush1.msra.mxu0 %v3104
    %3235 = vmatprep.subr.mxu0 0.0
    %3236 = vmatpush1.msra.mxu0 %v3103
    %3237 = vmatprep.subr.mxu0 0.0
    %3238 = vmatpush1.msra.mxu0 %v3102
    %3239 = vmatprep.subr.mxu0 0.0
    %3240 = vmatpush1.msra.mxu0 %v3101
    %3241 = vmatprep.subr.mxu0 0.0
    %3242 = vmatpush1.msra.mxu0 %v3100
    %3243 = vmatprep.subr.mxu0 0.0
    %3244 = vmatpush1.msra.mxu0 %v3099
    %3245 = vmatprep.subr.mxu0 0.0
    %3246 = vmatpush1.msra.mxu0 %v3098
    %3247 = vmatprep.subr.mxu0 0.0
    %3248 = vmatpush1.msra.mxu0 %v3097
    %3249 = vmatprep.subr.mxu0 0.0
    %3250 = vmatpush1.msra.mxu0 %v3096
    %3251 = vmatprep.subr.mxu0 0.0
    %3252 = vmatpush1.msra.mxu0 %v3095
    %3253 = vmatprep.subr.mxu0 0.0
    %3254 = vmatpush1.msra.mxu0 %v3094
    %3255 = vmatprep.subr.mxu0 0.0
    %3256 = vmatpush2.msra.mxu0 %v3125
    %3257 = vmatprep.subr.mxu0 0.0
    %3258 = vmatpush2.msra.mxu0 %v3124
    %3259 = vmatprep.subr.mxu0 0.0
    %3260 = vmatpush2.msra.mxu0 %v3123
    %3261 = vmatprep.subr.mxu0 0.0
    %3262 = vmatpush2.msra.mxu0 %v3122
    %3263 = vmatprep.subr.mxu0 0.0
    %3264 = vmatpush2.msra.mxu0 %v3121
    %3265 = vmatprep.subr.mxu0 0.0
    %3266 = vmatpush2.msra.mxu0 %v3120
    %3267 = vmatprep.subr.mxu0 0.0
    %3268 = vmatpush2.msra.mxu0 %v3119
    %3269 = vmatprep.subr.mxu0 0.0
    %3270 = vmatpush2.msra.mxu0 %v3118
    %3271 = vmatprep.subr.mxu0 0.0
    %3272 = vmatpush2.msra.mxu0 %v3117
    %3273 = vmatprep.subr.mxu0 0.0
    %3274 = vmatpush2.msra.mxu0 %v3116
    %3275 = vmatprep.subr.mxu0 0.0
    %3276 = vmatpush2.msra.mxu0 %v3115
    %3277 = vmatprep.subr.mxu0 0.0
    %3278 = vmatpush2.msra.mxu0 %v3114
    %3279 = vmatprep.subr.mxu0 0.0
    %3280 = vmatpush2.msra.mxu0 %v3113
    %3281 = vmatprep.subr.mxu0 0.0
    %3282 = vmatpush2.msra.mxu0 %v3112
    %3283 = vmatprep.subr.mxu0 0.0
    %3284 = vmatpush2.msra.mxu0 %v3111
    %3285 = vmatprep.subr.mxu0 0.0
    %3286 = vmatpush2.msra.mxu0 %v3110
    %3287 = vmatprep.mubr.f32.mxu0 %v3087
    %3288 = vmatmul.mubr.f32.gmra.mxu0 %v3086
    %v3289 = vpop.f32.mrf.mxu0
    %v3290 = vadd.f32 %v3222, %v3289
    %v3291 = vpop.f32.mrf.mxu0
    %3292 = vdwg.mxu0
    %3293 = vmatprep.subr.mxu0 0.0
    %3294 = vmatpush1.msra.mxu0 %v3141
    %3295 = vmatprep.subr.mxu0 0.0
    %3296 = vmatpush1.msra.mxu0 %v3140
    %3297 = vmatprep.subr.mxu0 0.0
    %3298 = vmatpush1.msra.mxu0 %v3139
    %3299 = vmatprep.subr.mxu0 0.0
    %3300 = vmatpush1.msra.mxu0 %v3138
    %3301 = vmatprep.subr.mxu0 0.0
    %3302 = vmatpush1.msra.mxu0 %v3137
    %3303 = vmatprep.subr.mxu0 0.0
    %3304 = vmatpush1.msra.mxu0 %v3136
    %3305 = vmatprep.subr.mxu0 0.0
    %3306 = vmatpush1.msra.mxu0 %v3135
    %3307 = vmatprep.subr.mxu0 0.0
    %3308 = vmatpush1.msra.mxu0 %v3134
    %3309 = vmatprep.subr.mxu0 0.0
    %3310 = vmatpush1.msra.mxu0 %v3133
    %3311 = vmatprep.subr.mxu0 0.0
    %3312 = vmatpush1.msra.mxu0 %v3132
    %3313 = vmatprep.subr.mxu0 0.0
    %3314 = vmatpush1.msra.mxu0 %v3131
    %3315 = vmatprep.subr.mxu0 0.0
    %3316 = vmatpush1.msra.mxu0 %v3130
    %3317 = vmatprep.subr.mxu0 0.0
    %3318 = vmatpush1.msra.mxu0 %v3129
    %3319 = vmatprep.subr.mxu0 0.0
    %3320 = vmatpush1.msra.mxu0 %v3128
    %3321 = vmatprep.subr.mxu0 0.0
    %3322 = vmatpush1.msra.mxu0 %v3127
    %3323 = vmatprep.subr.mxu0 0.0
    %3324 = vmatpush1.msra.mxu0 %v3126
    %3325 = vmatprep.subr.mxu0 0.0
    %3326 = vmatpush2.msra.mxu0 %v3157
    %3327 = vmatprep.subr.mxu0 0.0
    %3328 = vmatpush2.msra.mxu0 %v3156
    %3329 = vmatprep.subr.mxu0 0.0
    %3330 = vmatpush2.msra.mxu0 %v3155
    %3331 = vmatprep.subr.mxu0 0.0
    %3332 = vmatpush2.msra.mxu0 %v3154
    %3333 = vmatprep.subr.mxu0 0.0
    %3334 = vmatpush2.msra.mxu0 %v3153
    %3335 = vmatprep.subr.mxu0 0.0
    %3336 = vmatpush2.msra.mxu0 %v3152
    %3337 = vmatprep.subr.mxu0 0.0
    %3338 = vmatpush2.msra.mxu0 %v3151
    %3339 = vmatprep.subr.mxu0 0.0
    %3340 = vmatpush2.msra.mxu0 %v3150
    %3341 = vmatprep.subr.mxu0 0.0
    %3342 = vmatpush2.msra.mxu0 %v3149
    %3343 = vmatprep.subr.mxu0 0.0
    %3344 = vmatpush2.msra.mxu0 %v3148
    %3345 = vmatprep.subr.mxu0 0.0
    %3346 = vmatpush2.msra.mxu0 %v3147
    %3347 = vmatprep.subr.mxu0 0.0
    %3348 = vmatpush2.msra.mxu0 %v3146
    %3349 = vmatprep.subr.mxu0 0.0
    %3350 = vmatpush2.msra.mxu0 %v3145
    %3351 = vmatprep.subr.mxu0 0.0
    %3352 = vmatpush2.msra.mxu0 %v3144
    %3353 = vmatprep.subr.mxu0 0.0
    %3354 = vmatpush2.msra.mxu0 %v3143
    %3355 = vmatprep.subr.mxu0 0.0
    %3356 = vmatpush2.msra.mxu0 %v3142
    %3357 = vmatprep.mubr.f32.mxu0 %v3089
    %3358 = vmatmul.mubr.f32.gmra.mxu0 %v3088
    %v3359 = vpop.f32.mrf.mxu0
    %v3360 = vadd.f32 %v3290, %v3359
    %v3361 = vpop.f32.mrf.mxu0
    %3362 = vdwg.mxu0
    %3363 = vmatprep.subr.mxu0 0.0
    %3364 = vmatpush1.msra.mxu0 %v3173
    %3365 = vmatprep.subr.mxu0 0.0
    %3366 = vmatpush1.msra.mxu0 %v3172
    %3367 = vmatprep.subr.mxu0 0.0
    %3368 = vmatpush1.msra.mxu0 %v3171
    %3369 = vmatprep.subr.mxu0 0.0
    %3370 = vmatpush1.msra.mxu0 %v3170
    %3371 = vmatprep.subr.mxu0 0.0
    %3372 = vmatpush1.msra.mxu0 %v3169
    %3373 = vmatprep.subr.mxu0 0.0
    %3374 = vmatpush1.msra.mxu0 %v3168
    %3375 = vmatprep.subr.mxu0 0.0
    %3376 = vmatpush1.msra.mxu0 %v3167
    %3377 = vmatprep.subr.mxu0 0.0
    %3378 = vmatpush1.msra.mxu0 %v3166
    %3379 = vmatprep.subr.mxu0 0.0
    %3380 = vmatpush1.msra.mxu0 %v3165
    %3381 = vmatprep.subr.mxu0 0.0
    %3382 = vmatpush1.msra.mxu0 %v3164
    %3383 = vmatprep.subr.mxu0 0.0
    %3384 = vmatpush1.msra.mxu0 %v3163
    %3385 = vmatprep.subr.mxu0 0.0
    %3386 = vmatpush1.msra.mxu0 %v3162
    %3387 = vmatprep.subr.mxu0 0.0
    %3388 = vmatpush1.msra.mxu0 %v3161
    %3389 = vmatprep.subr.mxu0 0.0
    %3390 = vmatpush1.msra.mxu0 %v3160
    %3391 = vmatprep.subr.mxu0 0.0
    %3392 = vmatpush1.msra.mxu0 %v3159
    %3393 = vmatprep.subr.mxu0 0.0
    %3394 = vmatpush1.msra.mxu0 %v3158
    %3395 = vmatprep.subr.mxu0 0.0
    %3396 = vmatpush2.msra.mxu0 %v3189
    %3397 = vmatprep.subr.mxu0 0.0
    %3398 = vmatpush2.msra.mxu0 %v3188
    %3399 = vmatprep.subr.mxu0 0.0
    %3400 = vmatpush2.msra.mxu0 %v3187
    %3401 = vmatprep.subr.mxu0 0.0
    %3402 = vmatpush2.msra.mxu0 %v3186
    %3403 = vmatprep.subr.mxu0 0.0
    %3404 = vmatpush2.msra.mxu0 %v3185
    %3405 = vmatprep.subr.mxu0 0.0
    %3406 = vmatpush2.msra.mxu0 %v3184
    %3407 = vmatprep.subr.mxu0 0.0
    %3408 = vmatpush2.msra.mxu0 %v3183
    %3409 = vmatprep.subr.mxu0 0.0
    %3410 = vmatpush2.msra.mxu0 %v3182
    %3411 = vmatprep.subr.mxu0 0.0
    %3412 = vmatpush2.msra.mxu0 %v3181
    %3413 = vmatprep.subr.mxu0 0.0
    %3414 = vmatpush2.msra.mxu0 %v3180
    %3415 = vmatprep.subr.mxu0 0.0
    %3416 = vmatpush2.msra.mxu0 %v3179
    %3417 = vmatprep.subr.mxu0 0.0
    %3418 = vmatpush2.msra.mxu0 %v3178
    %3419 = vmatprep.subr.mxu0 0.0
    %3420 = vmatpush2.msra.mxu0 %v3177
    %3421 = vmatprep.subr.mxu0 0.0
    %3422 = vmatpush2.msra.mxu0 %v3176
    %3423 = vmatprep.subr.mxu0 0.0
    %3424 = vmatpush2.msra.mxu0 %v3175
    %3425 = vmatprep.subr.mxu0 0.0
    %3426 = vmatpush2.msra.mxu0 %v3174
    %3427 = vmatprep.mubr.f32.mxu0 %v3091
    %3428 = vmatmul.mubr.f32.gmra.mxu0 %v3090
    %v3429 = vpop.f32.mrf.mxu0
    %v3430 = vadd.f32 %v3360, %v3429
    %v3431 = vpop.f32.mrf.mxu0
    %3432 = vdwg.mxu0
    %3433 = vmatprep.subr.mxu0 0.0
    %3434 = vmatpush1.msra.mxu0 %v3205
    %3435 = vmatprep.subr.mxu0 0.0
    %3436 = vmatpush1.msra.mxu0 %v3204
    %3437 = vmatprep.subr.mxu0 0.0
    %3438 = vmatpush1.msra.mxu0 %v3203
    %3439 = vmatprep.subr.mxu0 0.0
    %3440 = vmatpush1.msra.mxu0 %v3202
    %3441 = vmatprep.subr.mxu0 0.0
    %3442 = vmatpush1.msra.mxu0 %v3201
    %3443 = vmatprep.subr.mxu0 0.0
    %3444 = vmatpush1.msra.mxu0 %v3200
    %3445 = vmatprep.subr.mxu0 0.0
    %3446 = vmatpush1.msra.mxu0 %v3199
    %3447 = vmatprep.subr.mxu0 0.0
    %3448 = vmatpush1.msra.mxu0 %v3198
    %3449 = vmatprep.subr.mxu0 0.0
    %3450 = vmatpush1.msra.mxu0 %v3197
    %3451 = vmatprep.subr.mxu0 0.0
    %3452 = vmatpush1.msra.mxu0 %v3196
    %3453 = vmatprep.subr.mxu0 0.0
    %3454 = vmatpush1.msra.mxu0 %v3195
    %3455 = vmatprep.subr.mxu0 0.0
    %3456 = vmatpush1.msra.mxu0 %v3194
    %3457 = vmatprep.subr.mxu0 0.0
    %3458 = vmatpush1.msra.mxu0 %v3193
    %3459 = vmatprep.subr.mxu0 0.0
    %3460 = vmatpush1.msra.mxu0 %v3192
    %3461 = vmatprep.subr.mxu0 0.0
    %3462 = vmatpush1.msra.mxu0 %v3191
    %3463 = vmatprep.subr.mxu0 0.0
    %3464 = vmatpush1.msra.mxu0 %v3190
    %3465 = vmatprep.subr.mxu0 0.0
    %3466 = vmatpush2.msra.mxu0 %v3221
    %3467 = vmatprep.subr.mxu0 0.0
    %3468 = vmatpush2.msra.mxu0 %v3220
    %3469 = vmatprep.subr.mxu0 0.0
    %3470 = vmatpush2.msra.mxu0 %v3219
    %3471 = vmatprep.subr.mxu0 0.0
    %3472 = vmatpush2.msra.mxu0 %v3218
    %3473 = vmatprep.subr.mxu0 0.0
    %3474 = vmatpush2.msra.mxu0 %v3217
    %3475 = vmatprep.subr.mxu0 0.0
    %3476 = vmatpush2.msra.mxu0 %v3216
    %3477 = vmatprep.subr.mxu0 0.0
    %3478 = vmatpush2.msra.mxu0 %v3215
    %3479 = vmatprep.subr.mxu0 0.0
    %3480 = vmatpush2.msra.mxu0 %v3214
    %3481 = vmatprep.subr.mxu0 0.0
    %3482 = vmatpush2.msra.mxu0 %v3213
    %3483 = vmatprep.subr.mxu0 0.0
    %3484 = vmatpush2.msra.mxu0 %v3212
    %3485 = vmatprep.subr.mxu0 0.0
    %3486 = vmatpush2.msra.mxu0 %v3211
    %3487 = vmatprep.subr.mxu0 0.0
    %3488 = vmatpush2.msra.mxu0 %v3210
    %3489 = vmatprep.subr.mxu0 0.0
    %3490 = vmatpush2.msra.mxu0 %v3209
    %3491 = vmatprep.subr.mxu0 0.0
    %3492 = vmatpush2.msra.mxu0 %v3208
    %3493 = vmatprep.subr.mxu0 0.0
    %3494 = vmatpush2.msra.mxu0 %v3207
    %3495 = vmatprep.subr.mxu0 0.0
    %3496 = vmatpush2.msra.mxu0 %v3206
    %3497 = vmatprep.mubr.f32.mxu0 %v3093
    %3498 = vmatmul.mubr.f32.gmra.mxu0 %v3092
    %v3499 = vpop.f32.mrf.mxu0
    %v3500 = vadd.f32 %v3430, %v3499
    %v3501 = vpop.f32.mrf.mxu0
    %3502 = vdwg.mxu0
    %v3503 = vxor.u32 %v3500, 2147483648
    %v3504 = vmul.f32 %v3503, 1.442695
    %v3505 = vpow.pop %v3504
    %v3506 = vadd.f32 %v3505, 1.0
    %v3507 = vrcp.pop %v3506
    %v3508 = vmul.f32 1.0, %v3507
    %vm3509 = vcmask 81920
    %3510 = vst.msk [vmem:[#allocation4] sm:$0x1] %vm3509, %v3508
    // Predicated region
    $region42: #{tpu_custom_call.1} parent=1 // pred_check
      _
    $region43: #{tpu_custom_call.1} parent=1 // pred_check_branch
      %3512 = sbr.rel (0) target = $region45
    $region44: #{tpu_custom_call.1} parent=1 // pred_region
      %s3514 = ssub.s32 16, 16
      %3515 = vsyncadd [#allocation5], %s3514
      %s3517 = sshll.u32 [#allocation4], 4
      %s3518 = int_to_ptr.vmem [resolvable:$true] %s3517
      %3520 = dma.vmem_to_hbm [thread:$0]  %s3518, 16, %s10, [#allocation5]
    $region45: #{tpu_custom_call.1} parent=1 // pred_fallthru
      _
    // Predicated region
    $region46: #{tpu_custom_call.1} parent=1 // pred_check
      _
    $region47: #{tpu_custom_call.1} parent=1 // pred_check_branch
      %3522 = sbr.rel (0) target = $region49
    $region48: #{tpu_custom_call.1} parent=1 // pred_region
      %3523 = dma.done [#allocation5], 16
    $region49: #{tpu_custom_call.1} parent=1 // pred_fallthru
      _
    %3524 = vsyncpa [#allocation5], 1
  %3525 = vsyncmov [#allocation3]
  %s3526 = vpop.sfrf %3525
  %p3527 = scmp.eq.s32.totalorder %s3526, 0
  %p3528 = pneg %p3527
  %3530 = shalt.err (%p3528)

</llo_original>
